<compile_context>
chip_gen: v5e
topology: v5e:2x2
jax: 0.10.0
libtpu: 0.0.40
codegen_flags: <defaults>
</compile_context>

<pallas_src>
import jax
import jax.numpy as jnp
from jax.experimental import pallas as pl
from jax.experimental.pallas import tpu as pltpu


# ----------------------------------------------------------------------------
# Kernel
# ----------------------------------------------------------------------------
def bottleneck_kernel(x_a_ref, x_c_ref, x_b_ref,
                      w1_ref, w2_ref, w3_ref,
                      b1_ref, b2_ref, b3_ref,
                      o_ref):
    r = pl.program_id(1)
    _, TH, W, Cin = x_c_ref.shape
    width = w1_ref.shape[1]
    Cout = w3_ref.shape[1]
    H = pl.num_programs(1) * TH

    x_c = x_c_ref[0]                                     # (TH, W, Cin) bf16
    w1 = w1_ref[...]                                     # (Cin, width) bf16, BN1-scale folded
    b1 = b1_ref[...]                                     # (1, width) f32

    # --- conv1 (1x1) + BN1 shift + ReLU --------------------------------------
    # Split into center tile + the two halo rows so only width-wide (= Cin/4)
    # intermediates are concatenated / kept live.
    h_c = jnp.maximum(jnp.dot(x_c.reshape(TH * W, Cin), w1,
                              preferred_element_type=jnp.float32) + b1, 0.0)
    h_a = jnp.maximum(jnp.dot(x_a_ref[0].reshape(W, Cin), w1,
                              preferred_element_type=jnp.float32) + b1, 0.0)
    h_b = jnp.maximum(jnp.dot(x_b_ref[0].reshape(W, Cin), w1,
                              preferred_element_type=jnp.float32) + b1, 0.0)

    # Zero only the halo rows that fall outside the image (conv2's H zero-pad).
    h_a = h_a * (r * TH - 1 >= 0).astype(h_a.dtype)
    h_b = h_b * ((r + 1) * TH < H).astype(h_b.dtype)

    h = jnp.concatenate([h_a.reshape(1, W, width),
                         h_c.reshape(TH, W, width),
                         h_b.reshape(1, W, width)], axis=0)   # (TH+2, W, width) f32

    # --- conv2 (3x3, stride=1, pad=1) + BN2 shift + ReLU ----------------------
    # kx taps via XLU rolls + edge masks (f32: v5e has no bf16 VALU; cast to
    # bf16 only for the MXU operand).  ky taps are cheap leading-dim slices;
    # all 9 taps are stacked on the lane axis -> a single K=9*width dot.
    col = jax.lax.broadcasted_iota(jnp.int32, (1, W, 1), 1)
    h_l = jnp.where(col >= 1, pltpu.roll(h, shift=1, axis=1), 0.0)          # in[x-1]
    h_r = jnp.where(col < W - 1, pltpu.roll(h, shift=W - 1, axis=1), 0.0)   # in[x+1]
    hx = jnp.concatenate([h_l, h, h_r], axis=-1).astype(jnp.bfloat16)       # (TH+2, W, 3w)
    cols = jnp.concatenate([hx[0:TH], hx[1:TH + 1], hx[2:TH + 2]], axis=-1) # (TH, W, 9w)
    h2 = jnp.dot(cols.reshape(TH * W, 9 * width), w2_ref[...],
                 preferred_element_type=jnp.float32)
    h2 = jnp.maximum(h2 + b2_ref[...], 0.0)

    # --- conv3 (1x1) + BN3 shift + residual (f32) + ReLU ----------------------
    h3 = jnp.dot(h2.astype(jnp.bfloat16), w3_ref[...],
                 preferred_element_type=jnp.float32)
    h3 = h3 + b3_ref[...] + x_c.reshape(TH * W, Cout).astype(jnp.float32)
    o_ref[...] = jnp.maximum(h3, 0.0).reshape(1, TH, W, Cout).astype(o_ref.dtype)


# ----------------------------------------------------------------------------
# Tile-size / VMEM-budget heuristics
# ----------------------------------------------------------------------------
def _vmem_budget_bytes():
    try:
        info = pltpu.get_tpu_info()
        cap = getattr(info, "vmem_capacity_bytes", None)
        if cap:
            return int(0.7 * cap)       # v5e/v6e ~90 MiB, v7x ~45 MiB
    except Exception:
        pass
    return 44 * 1024 * 1024             # safe default, below v7x's 64 MiB physical


def _vmem_estimate_bytes(TH, W, Cin, width, Cout):
    act = 2                                               # bf16 activations
    x_blk = (TH + 2) * W * Cin * act
    out_blk = TH * W * Cout * act
    io = 2 * (x_blk + out_blk)                            # double-buffered pipeline
    weights = 2 * 2 * (Cin * width + 9 * width * width + width * Cout)
    temps = ((TH + 2) * W * width * (4 + 4 + 4 + 6)       # h, h_l, h_r, hx(bf16 3w)
             + TH * W * (9 * width * 2 + width * 4 + Cout * 4 + Cout * 2))
    return int(1.25 * (io + weights + temps)) + (2 << 20)


def _choose_row_tile(H, W, Cin, width, Cout, budget_bytes):
    divisors = [d for d in range(1, H + 1) if H % d == 0]
    fitting = [d for d in divisors
               if _vmem_estimate_bytes(d, W, Cin, width, Cout) <= budget_bytes]
    if not fitting:
        return 1
    # Prefer M = TH*W large enough to fill the MXU, but keep blocks a few MiB.
    capped = [d for d in fitting if d * W <= 4096]
    return max(capped) if capped else min(fitting)


# ----------------------------------------------------------------------------
# Wrapper
# ----------------------------------------------------------------------------
def bottleneck_forward_nhwc(x, params, *, row_tile=None):
    """Fused Bottleneck forward.

    x: (B, H, W, Cin) NHWC, bf16 (the layer-to-layer production layout; NCHW
    callers should transpose/cast once at the network boundary, not per layer).
    Returns (B, H, W, Cout) bf16.
    """
    w1, w2, w3, b1, b2, b3 = params
    x = x.astype(jnp.bfloat16)
    B, H, W, Cin = x.shape
    width = w1.shape[1]
    Cout = w3.shape[1]
    assert Cin == Cout, "identity residual requires inplanes == planes * 4"
    assert w2.shape == (9 * width, width)

    budget = _vmem_budget_bytes()
    TH = row_tile if row_tile is not None else _choose_row_tile(
        H, W, Cin, width, Cout, budget)
    assert H % TH == 0
    R = H // TH

    n_act = B * H * W
    cost = pl.CostEstimate(
        flops=2 * n_act * (Cin * width + 9 * width * width + width * Cout),
        transcendentals=0,
        bytes_accessed=(n_act * (Cin + Cout)) * 2
        + (w1.size + w2.size + w3.size) * 2
        + (b1.size + b2.size + b3.size) * 4)

    def run(single_buffer_resident):
        x_above = pl.BlockSpec(
            (1, 1, W, Cin), lambda b, r: (b, jnp.maximum(r * TH - 1, 0), 0, 0))
        x_center = pl.BlockSpec((1, TH, W, Cin), lambda b, r: (b, r, 0, 0))
        x_below = pl.BlockSpec(
            (1, 1, W, Cin), lambda b, r: (b, jnp.minimum((r + 1) * TH, H - 1), 0, 0))

        def resident(arr):  # full-shape block, constant index -> fetched once
            nd = arr.ndim
            kw = {"pipeline_mode": pl.Buffered(1)} if single_buffer_resident else {}
            return pl.BlockSpec(arr.shape, lambda b, r, _nd=nd: (0,) * _nd, **kw)

        return pl.pallas_call(
            bottleneck_kernel,
            out_shape=jax.ShapeDtypeStruct((B, H, W, Cout), jnp.bfloat16),
            grid=(B, R),
            in_specs=[x_above, x_center, x_below,
                      resident(w1), resident(w2), resident(w3),
                      resident(b1), resident(b2), resident(b3)],
            out_specs=pl.BlockSpec((1, TH, W, Cout), lambda b, r: (b, r, 0, 0)),
            compiler_params=pltpu.CompilerParams(
                dimension_semantics=("parallel", "parallel"),
                vmem_limit_bytes=int(budget)),
            cost_estimate=cost,
        )(x, x, x, w1, w2, w3, b1, b2, b3)

    try:
        return run(True)     # single-buffered resident weights (halves their VMEM)
    except Exception:
        # TODO(synk): pipeline_mode=pl.Buffered(1) unsupported on this jax build;
        # fall back to default double-buffered resident operands.
        return run(False)


# ----------------------------------------------------------------------------
# Parameters (PyTorch layouts + kernel packing)
# ----------------------------------------------------------------------------
def fold_bn(gamma, beta, mean, var, eps=1e-5):
    scale = gamma / jnp.sqrt(var + eps)
    shift = beta - mean * scale
    return scale, shift


def make_params(key, inplanes, planes, base_width=64, groups=1):
    width = int(planes * (base_width / 64.0)) * groups
    cout = planes * 4                                    # Bottleneck.expansion = 4
    ks = jax.random.split(key, 6)

    # PyTorch conv weights are OIHW.
    w1_oihw = jax.random.normal(ks[0], (width, inplanes, 1, 1), jnp.float32) * 0.2
    w2_oihw = jax.random.normal(ks[1], (width, width, 3, 3), jnp.float32) * 0.2
    w3_oihw = jax.random.normal(ks[2], (cout, width, 1, 1), jnp.float32) * 0.2

    def bn_params(k, c):
        k1, k2, k3, k4 = jax.random.split(k, 4)
        return (jax.random.uniform(k1, (c,), jnp.float32, 0.5, 1.5),
                jax.random.normal(k2, (c,), jnp.float32) * 0.1,
                jax.random.normal(k3, (c,), jnp.float32) * 0.1,
                jax.random.uniform(k4, (c,), jnp.float32, 0.5, 1.5))

    bn1 = bn_params(ks[3], width)
    bn2 = bn_params(ks[4], width)
    bn3 = bn_params(ks[5], cout)
    s1, b1 = fold_bn(*bn1)
    s2, b2 = fold_bn(*bn2)
    s3, b3 = fold_bn(*bn3)

    # Fold BN scale into the conv weights (output-channel scaling) so in-kernel
    # epilogues are shift+ReLU only.
    w1_f = w1_oihw * s1.reshape(-1, 1, 1, 1)
    w2_f = w2_oihw * s2.reshape(-1, 1, 1, 1)
    w3_f = w3_oihw * s3.reshape(-1, 1, 1, 1)

    # Matmul-layout bf16 weights:
    #   w1p: (Cin, width), w3p: (width, Cout),
    #   w2p: (9*width, width) with rows ordered (kh, kw, in) to match the
    #        kernel's [ky][in[x-1], in[x], in[x+1]] im2col lane order.
    w1p = w1_f[:, :, 0, 0].T.astype(jnp.bfloat16)
    w2p = jnp.transpose(w2_f, (2, 3, 1, 0)).reshape(9 * width, width).astype(jnp.bfloat16)
    w3p = w3_f[:, :, 0, 0].T.astype(jnp.bfloat16)

    packed = (w1p, w2p, w3p,
              b1.reshape(1, -1), b2.reshape(1, -1), b3.reshape(1, -1))
    raw = (w1_oihw, w2_oihw, w3_oihw, bn1, bn2, bn3)
    folded = (w1_f, w2_f, w3_f, b1, b2, b3)
    return packed, raw, folded


# ----------------------------------------------------------------------------
# Pure-JAX references
# ----------------------------------------------------------------------------
def reference_forward_f32(x, raw):
    """Mirrors the PyTorch module exactly (eval-mode BN), all f32, NCHW."""
    w1, w2, w3, bn1, bn2, bn3 = raw

    def conv(v, w, pad=0):
        return jax.lax.conv_general_dilated(
            v, w, (1, 1), [(pad, pad), (pad, pad)],
            dimension_numbers=('NCHW', 'OIHW', 'NCHW'))

    def bn(v, p, eps=1e-5):
        gamma, beta, mean, var = p
        s = gamma / jnp.sqrt(var + eps)
        b = beta - mean * s
        return v * s[None, :, None, None] + b[None, :, None, None]

    out = jax.nn.relu(bn(conv(x, w1), bn1))
    out = jax.nn.relu(bn(conv(out, w2, pad=1), bn2))
    out = bn(conv(out, w3), bn3)
    return jax.nn.relu(out + x)


def reference_forward_mixed(x, folded):
    """Mirrors the kernel's mixed precision: bf16 activations, BN-scale-folded
    bf16 weights, f32 accumulation, f32 shift/residual/ReLU.  NCHW layout."""
    w1, w2, w3, b1, b2, b3 = folded

    def conv(v, w, pad=0):
        return jax.lax.conv_general_dilated(
            v.astype(jnp.bfloat16), w.astype(jnp.bfloat16), (1, 1),
            [(pad, pad), (pad, pad)],
            dimension_numbers=('NCHW', 'OIHW', 'NCHW'),
            preferred_element_type=jnp.float32)

    def shift(v, b):
        return v + b.reshape(1, -1, 1, 1)

    xb = x.astype(jnp.bfloat16)
    out = jax.nn.relu(shift(conv(xb, w1), b1))
    out = jax.nn.relu(shift(conv(out, w2, pad=1), b2))
    out = shift(conv(out, w3), b3)
    return jax.nn.relu(out + xb.astype(jnp.float32))


# ----------------------------------------------------------------------------
if __name__ == "__main__":
    key = jax.random.PRNGKey(0)
    k_x, k_p = jax.random.split(key)

    B, planes, H, W = 2, 32, 16, 16
    inplanes = planes * 4            # identity add works without a downsample branch

    x_nchw = jax.random.normal(k_x, (B, inplanes, H, W), jnp.float32)
    params, raw, folded = make_params(k_p, inplanes, planes)

    # Production layout: NHWC bf16 activations between layers (single boundary
    # transpose here, none per layer).
    x_nhwc = jnp.transpose(x_nchw, (0, 2, 3, 1)).astype(jnp.bfloat16)

    out = jax.block_until_ready(bottleneck_forward_nhwc(x_nhwc, params))
    assert out.shape == (B, H, W, inplanes) and out.dtype == jnp.bfloat16
    out_f32 = out.astype(jnp.float32)

    # Tight check vs. a reference with the kernel's exact mixed precision,
    # quantized to the kernel's bf16 output dtype.
    ref_mixed = jnp.transpose(reference_forward_mixed(x_nchw, folded), (0, 2, 3, 1))
    ref_mixed_q = ref_mixed.astype(jnp.bfloat16).astype(jnp.float32)
    assert jnp.allclose(out_f32, ref_mixed_q, rtol=1e-2, atol=1e-2), (
        float(jnp.max(jnp.abs(out_f32 - ref_mixed_q))))

    # Loose semantic check vs. the full-f32, PyTorch-faithful reference
    # (bf16 weights/activations => relaxed tolerance).
    ref_f32 = jnp.transpose(reference_forward_f32(x_nchw, raw), (0, 2, 3, 1))
    assert jnp.allclose(out_f32, ref_f32, rtol=5e-2, atol=5e-1), (
        float(jnp.max(jnp.abs(out_f32 - ref_f32))))

    print("KERNEL_OK")
</pallas_src>

<mosaic_0001>
module attributes {stable_mosaic.version = 11 : i64} {
  func.func @bottleneck_kernel(%arg0: i32, %arg1: i32, %arg2: memref<1x1x16x128xbf16, #tpu.memory_space<vmem>>, %arg3: memref<1x16x16x128xbf16, #tpu.memory_space<vmem>>, %arg4: memref<1x1x16x128xbf16, #tpu.memory_space<vmem>>, %arg5: memref<128x32xbf16, #tpu.memory_space<vmem>>, %arg6: memref<288x32xbf16, #tpu.memory_space<vmem>>, %arg7: memref<32x128xbf16, #tpu.memory_space<vmem>>, %arg8: memref<1x32xf32, #tpu.memory_space<vmem>>, %arg9: memref<1x32xf32, #tpu.memory_space<vmem>>, %arg10: memref<1x128xf32, #tpu.memory_space<vmem>>, %arg11: memref<1x16x16x128xbf16, #tpu.memory_space<vmem>>) attributes {dimension_semantics = [#tpu.dimension_semantics<parallel>, #tpu.dimension_semantics<parallel>], iteration_bounds = array<i64: 2, 1>, scalar_prefetch = 0 : i64, scratch_operands = 0 : i64, tpu.core_type = #tpu.core_type<tc>, window_params = [{transform_indices = @transform_0, window_bounds = array<i64: 1, 1, 16, 128>}, {transform_indices = @transform_1, window_bounds = array<i64: 1, 16, 16, 128>}, {transform_indices = @transform_2, window_bounds = array<i64: 1, 1, 16, 128>}, {pipeline_mode = #tpu.pipeline_mode<synchronous>, transform_indices = @transform_3, window_bounds = array<i64: 128, 32>}, {pipeline_mode = #tpu.pipeline_mode<synchronous>, transform_indices = @transform_4, window_bounds = array<i64: 288, 32>}, {pipeline_mode = #tpu.pipeline_mode<synchronous>, transform_indices = @transform_5, window_bounds = array<i64: 32, 128>}, {pipeline_mode = #tpu.pipeline_mode<synchronous>, transform_indices = @transform_6, window_bounds = array<i64: 1, 32>}, {pipeline_mode = #tpu.pipeline_mode<synchronous>, transform_indices = @transform_7, window_bounds = array<i64: 1, 32>}, {pipeline_mode = #tpu.pipeline_mode<synchronous>, transform_indices = @transform_8, window_bounds = array<i64: 1, 128>}, {transform_indices = @transform_9, window_bounds = array<i64: 1, 16, 16, 128>}]} {
    %c0 = arith.constant 0 : index
    %c0_0 = arith.constant 0 : index
    %c0_1 = arith.constant 0 : index
    %c0_2 = arith.constant 0 : index
    %0 = vector.load %arg3[%c0, %c0_0, %c0_1, %c0_2] : memref<1x16x16x128xbf16, #tpu.memory_space<vmem>>, vector<1x16x16x128xbf16>
    %1 = vector.shape_cast %0 : vector<1x16x16x128xbf16> to vector<16x16x128xbf16>
    %c0_3 = arith.constant 0 : index
    %c0_4 = arith.constant 0 : index
    %2 = vector.load %arg5[%c0_3, %c0_4] : memref<128x32xbf16, #tpu.memory_space<vmem>>, vector<128x32xbf16>
    %c0_5 = arith.constant 0 : index
    %c0_6 = arith.constant 0 : index
    %3 = vector.load %arg8[%c0_5, %c0_6] : memref<1x32xf32, #tpu.memory_space<vmem>>, vector<1x32xf32>
    %4 = vector.shape_cast %1 : vector<16x16x128xbf16> to vector<256x128xbf16>
    %cst = arith.constant dense<0.000000e+00> : vector<256x32xf32>
    %5 = tpu.matmul %4, %2, %cst {dimension_numbers = #tpu.dot_dimension_numbers<[1], [0], [0], [1], [0, 0, 1, 1], [], []>} : vector<256x128xbf16>, vector<128x32xbf16>, vector<256x32xf32> -> vector<256x32xf32>
    %6 = vector.broadcast %3 : vector<1x32xf32> to vector<256x32xf32>
    %7 = arith.addf %5, %6 : vector<256x32xf32>
    %cst_7 = arith.constant 0.000000e+00 : f32
    %8 = vector.broadcast %cst_7 : f32 to vector<256x32xf32>
    %9 = arith.maximumf %7, %8 : vector<256x32xf32>
    %c0_8 = arith.constant 0 : index
    %c0_9 = arith.constant 0 : index
    %c0_10 = arith.constant 0 : index
    %c0_11 = arith.constant 0 : index
    %10 = vector.load %arg2[%c0_8, %c0_9, %c0_10, %c0_11] : memref<1x1x16x128xbf16, #tpu.memory_space<vmem>>, vector<1x1x16x128xbf16>
    %11 = vector.shape_cast %10 : vector<1x1x16x128xbf16> to vector<1x16x128xbf16>
    %12 = vector.shape_cast %11 : vector<1x16x128xbf16> to vector<16x128xbf16>
    %cst_12 = arith.constant dense<0.000000e+00> : vector<16x32xf32>
    %13 = tpu.matmul %12, %2, %cst_12 {dimension_numbers = #tpu.dot_dimension_numbers<[1], [0], [0], [1], [0, 0, 1, 1], [], []>} : vector<16x128xbf16>, vector<128x32xbf16>, vector<16x32xf32> -> vector<16x32xf32>
    %14 = vector.broadcast %3 : vector<1x32xf32> to vector<16x32xf32>
    %15 = arith.addf %13, %14 : vector<16x32xf32>
    %cst_13 = arith.constant 0.000000e+00 : f32
    %16 = vector.broadcast %cst_13 : f32 to vector<16x32xf32>
    %17 = arith.maximumf %15, %16 : vector<16x32xf32>
    %c0_14 = arith.constant 0 : index
    %c0_15 = arith.constant 0 : index
    %c0_16 = arith.constant 0 : index
    %c0_17 = arith.constant 0 : index
    %18 = vector.load %arg4[%c0_14, %c0_15, %c0_16, %c0_17] : memref<1x1x16x128xbf16, #tpu.memory_space<vmem>>, vector<1x1x16x128xbf16>
    %19 = vector.shape_cast %18 : vector<1x1x16x128xbf16> to vector<1x16x128xbf16>
    %20 = vector.shape_cast %19 : vector<1x16x128xbf16> to vector<16x128xbf16>
    %cst_18 = arith.constant dense<0.000000e+00> : vector<16x32xf32>
    %21 = tpu.matmul %20, %2, %cst_18 {dimension_numbers = #tpu.dot_dimension_numbers<[1], [0], [0], [1], [0, 0, 1, 1], [], []>} : vector<16x128xbf16>, vector<128x32xbf16>, vector<16x32xf32> -> vector<16x32xf32>
    %22 = vector.broadcast %3 : vector<1x32xf32> to vector<16x32xf32>
    %23 = arith.addf %21, %22 : vector<16x32xf32>
    %cst_19 = arith.constant 0.000000e+00 : f32
    %24 = vector.broadcast %cst_19 : f32 to vector<16x32xf32>
    %25 = arith.maximumf %23, %24 : vector<16x32xf32>
    %c16_i32 = arith.constant 16 : i32
    %26 = arith.muli %arg1, %c16_i32 : i32
    %c1_i32 = arith.constant 1 : i32
    %27 = arith.subi %26, %c1_i32 : i32
    %c0_i32 = arith.constant 0 : i32
    %28 = arith.cmpi sge, %27, %c0_i32 : i32
    %29 = arith.extui %28 : i1 to i32
    %30 = arith.sitofp %29 : i32 to f32
    %31 = vector.broadcast %30 : f32 to vector<16x32xf32>
    %32 = arith.mulf %17, %31 : vector<16x32xf32>
    %c1_i32_20 = arith.constant 1 : i32
    %33 = arith.addi %arg1, %c1_i32_20 : i32
    %c16_i32_21 = arith.constant 16 : i32
    %34 = arith.muli %33, %c16_i32_21 : i32
    %c16_i32_22 = arith.constant 16 : i32
    %35 = arith.cmpi slt, %34, %c16_i32_22 : i32
    %36 = arith.extui %35 : i1 to i32
    %37 = arith.sitofp %36 : i32 to f32
    %38 = vector.broadcast %37 : f32 to vector<16x32xf32>
    %39 = arith.mulf %25, %38 : vector<16x32xf32>
    %40 = vector.shape_cast %32 : vector<16x32xf32> to vector<1x16x32xf32>
    %41 = vector.shape_cast %9 : vector<256x32xf32> to vector<16x16x32xf32>
    %42 = vector.shape_cast %39 : vector<16x32xf32> to vector<1x16x32xf32>
    %43 = tpu.concatenate %40, %41, %42 in 0 : vector<1x16x32xf32>, vector<16x16x32xf32>, vector<1x16x32xf32> -> vector<18x16x32xf32>
    %44 = tpu.iota {dimensions = array<i32: 1>} : vector<1x16x1xi32>
    %c1_i32_23 = arith.constant 1 : i32
    %45 = vector.broadcast %c1_i32_23 : i32 to vector<1x16x1xi32>
    %46 = arith.cmpi sge, %44, %45 : vector<1x16x1xi32>
    %c1_i32_24 = arith.constant 1 : i32
    %47 = tpu.dynamic_rotate %43 by %c1_i32_24 dim 1 : vector<18x16x32xf32>, i32 -> vector<18x16x32xf32>
    %cst_25 = arith.constant 0.000000e+00 : f32
    %48 = vector.shape_cast %46 : vector<1x16x1xi1> to vector<1x16x1xi1>
    %49 = vector.broadcast %48 : vector<1x16x1xi1> to vector<18x16x32xi1>
    %50 = vector.broadcast %cst_25 : f32 to vector<18x16x32xf32>
    %51 = arith.select %49, %47, %50 : vector<18x16x32xi1>, vector<18x16x32xf32>
    %c15_i32 = arith.constant 15 : i32
    %52 = vector.broadcast %c15_i32 : i32 to vector<1x16x1xi32>
    %53 = arith.cmpi slt, %44, %52 : vector<1x16x1xi32>
    %c15_i32_26 = arith.constant 15 : i32
    %54 = tpu.dynamic_rotate %43 by %c15_i32_26 dim 1 : vector<18x16x32xf32>, i32 -> vector<18x16x32xf32>
    %cst_27 = arith.constant 0.000000e+00 : f32
    %55 = vector.shape_cast %53 : vector<1x16x1xi1> to vector<1x16x1xi1>
    %56 = vector.broadcast %55 : vector<1x16x1xi1> to vector<18x16x32xi1>
    %57 = vector.broadcast %cst_27 : f32 to vector<18x16x32xf32>
    %58 = arith.select %56, %54, %57 : vector<18x16x32xi1>, vector<18x16x32xf32>
    %59 = tpu.concatenate %51, %43, %58 in 2 : vector<18x16x32xf32>, vector<18x16x32xf32>, vector<18x16x32xf32> -> vector<18x16x96xf32>
    %60 = arith.truncf %59 : vector<18x16x96xf32> to vector<18x16x96xbf16>
    %61 = vector.extract_strided_slice %60 {offsets = [0, 0, 0], sizes = [16, 16, 96], strides = [1, 1, 1]} : vector<18x16x96xbf16> to vector<16x16x96xbf16>
    %62 = vector.extract_strided_slice %60 {offsets = [1, 0, 0], sizes = [16, 16, 96], strides = [1, 1, 1]} : vector<18x16x96xbf16> to vector<16x16x96xbf16>
    %63 = vector.extract_strided_slice %60 {offsets = [2, 0, 0], sizes = [16, 16, 96], strides = [1, 1, 1]} : vector<18x16x96xbf16> to vector<16x16x96xbf16>
    %64 = tpu.concatenate %61, %62, %63 in 2 : vector<16x16x96xbf16>, vector<16x16x96xbf16>, vector<16x16x96xbf16> -> vector<16x16x288xbf16>
    %65 = vector.shape_cast %64 : vector<16x16x288xbf16> to vector<256x288xbf16>
    %c0_28 = arith.constant 0 : index
    %c0_29 = arith.constant 0 : index
    %66 = vector.load %arg6[%c0_28, %c0_29] : memref<288x32xbf16, #tpu.memory_space<vmem>>, vector<288x32xbf16>
    %cst_30 = arith.constant dense<0.000000e+00> : vector<256x32xf32>
    %67 = tpu.matmul %65, %66, %cst_30 {dimension_numbers = #tpu.dot_dimension_numbers<[1], [0], [0], [1], [0, 0, 1, 1], [], []>} : vector<256x288xbf16>, vector<288x32xbf16>, vector<256x32xf32> -> vector<256x32xf32>
    %c0_31 = arith.constant 0 : index
    %c0_32 = arith.constant 0 : index
    %68 = vector.load %arg9[%c0_31, %c0_32] : memref<1x32xf32, #tpu.memory_space<vmem>>, vector<1x32xf32>
    %69 = vector.broadcast %68 : vector<1x32xf32> to vector<256x32xf32>
    %70 = arith.addf %67, %69 : vector<256x32xf32>
    %cst_33 = arith.constant 0.000000e+00 : f32
    %71 = vector.broadcast %cst_33 : f32 to vector<256x32xf32>
    %72 = arith.maximumf %70, %71 : vector<256x32xf32>
    %73 = arith.truncf %72 : vector<256x32xf32> to vector<256x32xbf16>
    %c0_34 = arith.constant 0 : index
    %c0_35 = arith.constant 0 : index
    %74 = vector.load %arg7[%c0_34, %c0_35] : memref<32x128xbf16, #tpu.memory_space<vmem>>, vector<32x128xbf16>
    %cst_36 = arith.constant dense<0.000000e+00> : vector<256x128xf32>
    %75 = tpu.matmul %73, %74, %cst_36 {dimension_numbers = #tpu.dot_dimension_numbers<[1], [0], [0], [1], [0, 0, 1, 1], [], []>} : vector<256x32xbf16>, vector<32x128xbf16>, vector<256x128xf32> -> vector<256x128xf32>
    %c0_37 = arith.constant 0 : index
    %c0_38 = arith.constant 0 : index
    %76 = vector.load %arg10[%c0_37, %c0_38] : memref<1x128xf32, #tpu.memory_space<vmem>>, vector<1x128xf32>
    %77 = vector.broadcast %76 : vector<1x128xf32> to vector<256x128xf32>
    %78 = arith.addf %75, %77 : vector<256x128xf32>
    %79 = vector.shape_cast %1 : vector<16x16x128xbf16> to vector<256x128xbf16>
    %80 = arith.extf %79 : vector<256x128xbf16> to vector<256x128xf32>
    %81 = arith.addf %78, %80 : vector<256x128xf32>
    %cst_39 = arith.constant 0.000000e+00 : f32
    %82 = vector.broadcast %cst_39 : f32 to vector<256x128xf32>
    %83 = arith.maximumf %81, %82 : vector<256x128xf32>
    %84 = vector.shape_cast %83 : vector<256x128xf32> to vector<1x16x16x128xf32>
    %85 = arith.truncf %84 : vector<1x16x16x128xf32> to vector<1x16x16x128xbf16>
    %c0_40 = arith.constant 0 : index
    %c0_41 = arith.constant 0 : index
    %c0_42 = arith.constant 0 : index
    %c0_43 = arith.constant 0 : index
    %86 = vector.load %arg11[%c0_40, %c0_41, %c0_42, %c0_43] : memref<1x16x16x128xbf16, #tpu.memory_space<vmem>>, vector<1x16x16x128xbf16>
    tpu.vector_store %arg11[%c0_40, %c0_41, %c0_42, %c0_43], %85 {strides = array<i32>} : memref<1x16x16x128xbf16, #tpu.memory_space<vmem>>, vector<1x16x16x128xbf16>,
    return
  }
  func.func @transform_0(%arg0: i32, %arg1: i32) -> (i32, i32, i32, i32) {
    %c16_i32 = arith.constant 16 : i32
    %0 = arith.muli %arg1, %c16_i32 : i32
    %c1_i32 = arith.constant 1 : i32
    %1 = arith.subi %0, %c1_i32 : i32
    %c0_i32 = arith.constant 0 : i32
    %2 = arith.maxsi %1, %c0_i32 : i32
    %c0_i32_0 = arith.constant 0 : i32
    %c0_i32_1 = arith.constant 0 : i32
    %c0_i32_2 = arith.constant 0 : i32
    return %arg0, %2, %c0_i32_0, %c0_i32_1 : i32, i32, i32, i32
  }
  func.func @transform_1(%arg0: i32, %arg1: i32) -> (i32, i32, i32, i32) {
    %c0_i32 = arith.constant 0 : i32
    %c0_i32_0 = arith.constant 0 : i32
    %c0_i32_1 = arith.constant 0 : i32
    return %arg0, %arg1, %c0_i32, %c0_i32_0 : i32, i32, i32, i32
  }
  func.func @transform_2(%arg0: i32, %arg1: i32) -> (i32, i32, i32, i32) {
    %c1_i32 = arith.constant 1 : i32
    %0 = arith.addi %arg1, %c1_i32 : i32
    %c16_i32 = arith.constant 16 : i32
    %1 = arith.muli %0, %c16_i32 : i32
    %c15_i32 = arith.constant 15 : i32
    %2 = arith.minsi %1, %c15_i32 : i32
    %c0_i32 = arith.constant 0 : i32
    %c0_i32_0 = arith.constant 0 : i32
    %c0_i32_1 = arith.constant 0 : i32
    return %arg0, %2, %c0_i32, %c0_i32_0 : i32, i32, i32, i32
  }
  func.func @transform_3(%arg0: i32, %arg1: i32) -> (i32, i32) {
    %c0_i32 = arith.constant 0 : i32
    %c0_i32_0 = arith.constant 0 : i32
    %c0_i32_1 = arith.constant 0 : i32
    return %c0_i32, %c0_i32_0 : i32, i32
  }
  func.func @transform_4(%arg0: i32, %arg1: i32) -> (i32, i32) {
    %c0_i32 = arith.constant 0 : i32
    %c0_i32_0 = arith.constant 0 : i32
    %c0_i32_1 = arith.constant 0 : i32
    return %c0_i32, %c0_i32_0 : i32, i32
  }
  func.func @transform_5(%arg0: i32, %arg1: i32) -> (i32, i32) {
    %c0_i32 = arith.constant 0 : i32
    %c0_i32_0 = arith.constant 0 : i32
    %c0_i32_1 = arith.constant 0 : i32
    return %c0_i32, %c0_i32_0 : i32, i32
  }
  func.func @transform_6(%arg0: i32, %arg1: i32) -> (i32, i32) {
    %c0_i32 = arith.constant 0 : i32
    %c0_i32_0 = arith.constant 0 : i32
    %c0_i32_1 = arith.constant 0 : i32
    return %c0_i32, %c0_i32_0 : i32, i32
  }
  func.func @transform_7(%arg0: i32, %arg1: i32) -> (i32, i32) {
    %c0_i32 = arith.constant 0 : i32
    %c0_i32_0 = arith.constant 0 : i32
    %c0_i32_1 = arith.constant 0 : i32
    return %c0_i32, %c0_i32_0 : i32, i32
  }
  func.func @transform_8(%arg0: i32, %arg1: i32) -> (i32, i32) {
    %c0_i32 = arith.constant 0 : i32
    %c0_i32_0 = arith.constant 0 : i32
    %c0_i32_1 = arith.constant 0 : i32
    return %c0_i32, %c0_i32_0 : i32, i32
  }
  func.func @transform_9(%arg0: i32, %arg1: i32) -> (i32, i32, i32, i32) {
    %c0_i32 = arith.constant 0 : i32
    %c0_i32_0 = arith.constant 0 : i32
    %c0_i32_1 = arith.constant 0 : i32
    return %arg0, %arg1, %c0_i32, %c0_i32_0 : i32, i32, i32, i32
  }
}

module attributes {stable_mosaic.version = 11 : i64} {
  func.func @bottleneck_kernel(%arg0: i32, %arg1: i32, %arg2: memref<1x1x16x128xbf16, #tpu.memory_space<vmem>>, %arg3: memref<1x16x16x128xbf16, #tpu.memory_space<vmem>>, %arg4: memref<1x1x16x128xbf16, #tpu.memory_space<vmem>>, %arg5: memref<128x32xbf16, #tpu.memory_space<vmem>>, %arg6: memref<288x32xbf16, #tpu.memory_space<vmem>>, %arg7: memref<32x128xbf16, #tpu.memory_space<vmem>>, %arg8: memref<1x32xf32, #tpu.memory_space<vmem>>, %arg9: memref<1x32xf32, #tpu.memory_space<vmem>>, %arg10: memref<1x128xf32, #tpu.memory_space<vmem>>, %arg11: memref<1x16x16x128xbf16, #tpu.memory_space<vmem>>) attributes {dimension_semantics = [#tpu.dimension_semantics<parallel>, #tpu.dimension_semantics<parallel>], iteration_bounds = array<i64: 2, 1>, scalar_prefetch = 0 : i64, scratch_operands = 0 : i64, tpu.core_type = #tpu.core_type<tc>, window_params = [{transform_indices = @transform_0, window_bounds = array<i64: 1, 1, 16, 128>}, {transform_indices = @transform_1, window_bounds = array<i64: 1, 16, 16, 128>}, {transform_indices = @transform_2, window_bounds = array<i64: 1, 1, 16, 128>}, {pipeline_mode = #tpu.pipeline_mode<synchronous>, transform_indices = @transform_3, window_bounds = array<i64: 128, 32>}, {pipeline_mode = #tpu.pipeline_mode<synchronous>, transform_indices = @transform_4, window_bounds = array<i64: 288, 32>}, {pipeline_mode = #tpu.pipeline_mode<synchronous>, transform_indices = @transform_5, window_bounds = array<i64: 32, 128>}, {pipeline_mode = #tpu.pipeline_mode<synchronous>, transform_indices = @transform_6, window_bounds = array<i64: 1, 32>}, {pipeline_mode = #tpu.pipeline_mode<synchronous>, transform_indices = @transform_7, window_bounds = array<i64: 1, 32>}, {pipeline_mode = #tpu.pipeline_mode<synchronous>, transform_indices = @transform_8, window_bounds = array<i64: 1, 128>}, {transform_indices = @transform_9, window_bounds = array<i64: 1, 16, 16, 128>}]} {
    %c0 = arith.constant 0 : index
    %c0_0 = arith.constant 0 : index
    %c0_1 = arith.constant 0 : index
    %c0_2 = arith.constant 0 : index
    %0 = vector.load %arg3[%c0, %c0_0, %c0_1, %c0_2] : memref<1x16x16x128xbf16, #tpu.memory_space<vmem>>, vector<1x16x16x128xbf16>
    %1 = vector.shape_cast %0 : vector<1x16x16x128xbf16> to vector<16x16x128xbf16>
    %c0_3 = arith.constant 0 : index
    %c0_4 = arith.constant 0 : index
    %2 = vector.load %arg5[%c0_3, %c0_4] : memref<128x32xbf16, #tpu.memory_space<vmem>>, vector<128x32xbf16>
    %c0_5 = arith.constant 0 : index
    %c0_6 = arith.constant 0 : index
    %3 = vector.load %arg8[%c0_5, %c0_6] : memref<1x32xf32, #tpu.memory_space<vmem>>, vector<1x32xf32>
    %4 = vector.shape_cast %1 : vector<16x16x128xbf16> to vector<256x128xbf16>
    %cst = arith.constant dense<0.000000e+00> : vector<256x32xf32>
    %5 = tpu.matmul %4, %2, %cst {dimension_numbers = #tpu.dot_dimension_numbers<[1], [0], [0], [1], [0, 0, 1, 1], [], []>} : vector<256x128xbf16>, vector<128x32xbf16>, vector<256x32xf32> -> vector<256x32xf32>
    %6 = vector.broadcast %3 : vector<1x32xf32> to vector<256x32xf32>
    %7 = arith.addf %5, %6 : vector<256x32xf32>
    %cst_7 = arith.constant 0.000000e+00 : f32
    %8 = vector.broadcast %cst_7 : f32 to vector<256x32xf32>
    %9 = arith.maximumf %7, %8 : vector<256x32xf32>
    %c0_8 = arith.constant 0 : index
    %c0_9 = arith.constant 0 : index
    %c0_10 = arith.constant 0 : index
    %c0_11 = arith.constant 0 : index
    %10 = vector.load %arg2[%c0_8, %c0_9, %c0_10, %c0_11] : memref<1x1x16x128xbf16, #tpu.memory_space<vmem>>, vector<1x1x16x128xbf16>
    %11 = vector.shape_cast %10 : vector<1x1x16x128xbf16> to vector<1x16x128xbf16>
    %12 = vector.shape_cast %11 : vector<1x16x128xbf16> to vector<16x128xbf16>
    %cst_12 = arith.constant dense<0.000000e+00> : vector<16x32xf32>
    %13 = tpu.matmul %12, %2, %cst_12 {dimension_numbers = #tpu.dot_dimension_numbers<[1], [0], [0], [1], [0, 0, 1, 1], [], []>} : vector<16x128xbf16>, vector<128x32xbf16>, vector<16x32xf32> -> vector<16x32xf32>
    %14 = vector.broadcast %3 : vector<1x32xf32> to vector<16x32xf32>
    %15 = arith.addf %13, %14 : vector<16x32xf32>
    %cst_13 = arith.constant 0.000000e+00 : f32
    %16 = vector.broadcast %cst_13 : f32 to vector<16x32xf32>
    %17 = arith.maximumf %15, %16 : vector<16x32xf32>
    %c0_14 = arith.constant 0 : index
    %c0_15 = arith.constant 0 : index
    %c0_16 = arith.constant 0 : index
    %c0_17 = arith.constant 0 : index
    %18 = vector.load %arg4[%c0_14, %c0_15, %c0_16, %c0_17] : memref<1x1x16x128xbf16, #tpu.memory_space<vmem>>, vector<1x1x16x128xbf16>
    %19 = vector.shape_cast %18 : vector<1x1x16x128xbf16> to vector<1x16x128xbf16>
    %20 = vector.shape_cast %19 : vector<1x16x128xbf16> to vector<16x128xbf16>
    %cst_18 = arith.constant dense<0.000000e+00> : vector<16x32xf32>
    %21 = tpu.matmul %20, %2, %cst_18 {dimension_numbers = #tpu.dot_dimension_numbers<[1], [0], [0], [1], [0, 0, 1, 1], [], []>} : vector<16x128xbf16>, vector<128x32xbf16>, vector<16x32xf32> -> vector<16x32xf32>
    %22 = vector.broadcast %3 : vector<1x32xf32> to vector<16x32xf32>
    %23 = arith.addf %21, %22 : vector<16x32xf32>
    %cst_19 = arith.constant 0.000000e+00 : f32
    %24 = vector.broadcast %cst_19 : f32 to vector<16x32xf32>
    %25 = arith.maximumf %23, %24 : vector<16x32xf32>
    %c16_i32 = arith.constant 16 : i32
    %26 = arith.muli %arg1, %c16_i32 : i32
    %c1_i32 = arith.constant 1 : i32
    %27 = arith.subi %26, %c1_i32 : i32
    %c0_i32 = arith.constant 0 : i32
    %28 = arith.cmpi sge, %27, %c0_i32 : i32
    %29 = arith.extui %28 : i1 to i32
    %30 = arith.sitofp %29 : i32 to f32
    %31 = vector.broadcast %30 : f32 to vector<16x32xf32>
    %32 = arith.mulf %17, %31 : vector<16x32xf32>
    %c1_i32_20 = arith.constant 1 : i32
    %33 = arith.addi %arg1, %c1_i32_20 : i32
    %c16_i32_21 = arith.constant 16 : i32
    %34 = arith.muli %33, %c16_i32_21 : i32
    %c16_i32_22 = arith.constant 16 : i32
    %35 = arith.cmpi slt, %34, %c16_i32_22 : i32
    %36 = arith.extui %35 : i1 to i32
    %37 = arith.sitofp %36 : i32 to f32
    %38 = vector.broadcast %37 : f32 to vector<16x32xf32>
    %39 = arith.mulf %25, %38 : vector<16x32xf32>
    %40 = vector.shape_cast %32 : vector<16x32xf32> to vector<1x16x32xf32>
    %41 = vector.shape_cast %9 : vector<256x32xf32> to vector<16x16x32xf32>
    %42 = vector.shape_cast %39 : vector<16x32xf32> to vector<1x16x32xf32>
    %43 = tpu.concatenate %40, %41, %42 in 0 : vector<1x16x32xf32>, vector<16x16x32xf32>, vector<1x16x32xf32> -> vector<18x16x32xf32>
    %44 = tpu.iota {dimensions = array<i32: 1>} : vector<1x16x1xi32>
    %c1_i32_23 = arith.constant 1 : i32
    %45 = vector.broadcast %c1_i32_23 : i32 to vector<1x16x1xi32>
    %46 = arith.cmpi sge, %44, %45 : vector<1x16x1xi32>
    %c1_i32_24 = arith.constant 1 : i32
    %47 = tpu.dynamic_rotate %43 by %c1_i32_24 dim 1 : vector<18x16x32xf32>, i32 -> vector<18x16x32xf32>
    %cst_25 = arith.constant 0.000000e+00 : f32
    %48 = vector.shape_cast %46 : vector<1x16x1xi1> to vector<1x16x1xi1>
    %49 = vector.broadcast %48 : vector<1x16x1xi1> to vector<18x16x32xi1>
    %50 = vector.broadcast %cst_25 : f32 to vector<18x16x32xf32>
    %51 = arith.select %49, %47, %50 : vector<18x16x32xi1>, vector<18x16x32xf32>
    %c15_i32 = arith.constant 15 : i32
    %52 = vector.broadcast %c15_i32 : i32 to vector<1x16x1xi32>
    %53 = arith.cmpi slt, %44, %52 : vector<1x16x1xi32>
    %c15_i32_26 = arith.constant 15 : i32
    %54 = tpu.dynamic_rotate %43 by %c15_i32_26 dim 1 : vector<18x16x32xf32>, i32 -> vector<18x16x32xf32>
    %cst_27 = arith.constant 0.000000e+00 : f32
    %55 = vector.shape_cast %53 : vector<1x16x1xi1> to vector<1x16x1xi1>
    %56 = vector.broadcast %55 : vector<1x16x1xi1> to vector<18x16x32xi1>
    %57 = vector.broadcast %cst_27 : f32 to vector<18x16x32xf32>
    %58 = arith.select %56, %54, %57 : vector<18x16x32xi1>, vector<18x16x32xf32>
    %59 = tpu.concatenate %51, %43, %58 in 2 : vector<18x16x32xf32>, vector<18x16x32xf32>, vector<18x16x32xf32> -> vector<18x16x96xf32>
    %60 = arith.truncf %59 : vector<18x16x96xf32> to vector<18x16x96xbf16>
    %61 = vector.extract_strided_slice %60 {offsets = [0, 0, 0], sizes = [16, 16, 96], strides = [1, 1, 1]} : vector<18x16x96xbf16> to vector<16x16x96xbf16>
    %62 = vector.extract_strided_slice %60 {offsets = [1, 0, 0], sizes = [16, 16, 96], strides = [1, 1, 1]} : vector<18x16x96xbf16> to vector<16x16x96xbf16>
    %63 = vector.extract_strided_slice %60 {offsets = [2, 0, 0], sizes = [16, 16, 96], strides = [1, 1, 1]} : vector<18x16x96xbf16> to vector<16x16x96xbf16>
    %64 = tpu.concatenate %61, %62, %63 in 2 : vector<16x16x96xbf16>, vector<16x16x96xbf16>, vector<16x16x96xbf16> -> vector<16x16x288xbf16>
    %65 = vector.shape_cast %64 : vector<16x16x288xbf16> to vector<256x288xbf16>
    %c0_28 = arith.constant 0 : index
    %c0_29 = arith.constant 0 : index
    %66 = vector.load %arg6[%c0_28, %c0_29] : memref<288x32xbf16, #tpu.memory_space<vmem>>, vector<288x32xbf16>
    %cst_30 = arith.constant dense<0.000000e+00> : vector<256x32xf32>
    %67 = tpu.matmul %65, %66, %cst_30 {dimension_numbers = #tpu.dot_dimension_numbers<[1], [0], [0], [1], [0, 0, 1, 1], [], []>} : vector<256x288xbf16>, vector<288x32xbf16>, vector<256x32xf32> -> vector<256x32xf32>
    %c0_31 = arith.constant 0 : index
    %c0_32 = arith.constant 0 : index
    %68 = vector.load %arg9[%c0_31, %c0_32] : memref<1x32xf32, #tpu.memory_space<vmem>>, vector<1x32xf32>
    %69 = vector.broadcast %68 : vector<1x32xf32> to vector<256x32xf32>
    %70 = arith.addf %67, %69 : vector<256x32xf32>
    %cst_33 = arith.constant 0.000000e+00 : f32
    %71 = vector.broadcast %cst_33 : f32 to vector<256x32xf32>
    %72 = arith.maximumf %70, %71 : vector<256x32xf32>
    %73 = arith.truncf %72 : vector<256x32xf32> to vector<256x32xbf16>
    %c0_34 = arith.constant 0 : index
    %c0_35 = arith.constant 0 : index
    %74 = vector.load %arg7[%c0_34, %c0_35] : memref<32x128xbf16, #tpu.memory_space<vmem>>, vector<32x128xbf16>
    %cst_36 = arith.constant dense<0.000000e+00> : vector<256x128xf32>
    %75 = tpu.matmul %73, %74, %cst_36 {dimension_numbers = #tpu.dot_dimension_numbers<[1], [0], [0], [1], [0, 0, 1, 1], [], []>} : vector<256x32xbf16>, vector<32x128xbf16>, vector<256x128xf32> -> vector<256x128xf32>
    %c0_37 = arith.constant 0 : index
    %c0_38 = arith.constant 0 : index
    %76 = vector.load %arg10[%c0_37, %c0_38] : memref<1x128xf32, #tpu.memory_space<vmem>>, vector<1x128xf32>
    %77 = vector.broadcast %76 : vector<1x128xf32> to vector<256x128xf32>
    %78 = arith.addf %75, %77 : vector<256x128xf32>
    %79 = vector.shape_cast %1 : vector<16x16x128xbf16> to vector<256x128xbf16>
    %80 = arith.extf %79 : vector<256x128xbf16> to vector<256x128xf32>
    %81 = arith.addf %78, %80 : vector<256x128xf32>
    %cst_39 = arith.constant 0.000000e+00 : f32
    %82 = vector.broadcast %cst_39 : f32 to vector<256x128xf32>
    %83 = arith.maximumf %81, %82 : vector<256x128xf32>
    %84 = vector.shape_cast %83 : vector<256x128xf32> to vector<1x16x16x128xf32>
    %85 = arith.truncf %84 : vector<1x16x16x128xf32> to vector<1x16x16x128xbf16>
    %c0_40 = arith.constant 0 : index
    %c0_41 = arith.constant 0 : index
    %c0_42 = arith.constant 0 : index
    %c0_43 = arith.constant 0 : index
    %86 = vector.load %arg11[%c0_40, %c0_41, %c0_42, %c0_43] : memref<1x16x16x128xbf16, #tpu.memory_space<vmem>>, vector<1x16x16x128xbf16>
    tpu.vector_store %arg11[%c0_40, %c0_41, %c0_42, %c0_43], %85 {strides = array<i32>} : memref<1x16x16x128xbf16, #tpu.memory_space<vmem>>, vector<1x16x16x128xbf16>,
    return
  }
  func.func @transform_0(%arg0: i32, %arg1: i32) -> (i32, i32, i32, i32) {
    %c16_i32 = arith.constant 16 : i32
    %0 = arith.muli %arg1, %c16_i32 : i32
    %c1_i32 = arith.constant 1 : i32
    %1 = arith.subi %0, %c1_i32 : i32
    %c0_i32 = arith.constant 0 : i32
    %2 = arith.maxsi %1, %c0_i32 : i32
    %c0_i32_0 = arith.constant 0 : i32
    %c0_i32_1 = arith.constant 0 : i32
    %c0_i32_2 = arith.constant 0 : i32
    return %arg0, %2, %c0_i32_0, %c0_i32_1 : i32, i32, i32, i32
  }
  func.func @transform_1(%arg0: i32, %arg1: i32) -> (i32, i32, i32, i32) {
    %c0_i32 = arith.constant 0 : i32
    %c0_i32_0 = arith.constant 0 : i32
    %c0_i32_1 = arith.constant 0 : i32
    return %arg0, %arg1, %c0_i32, %c0_i32_0 : i32, i32, i32, i32
  }
  func.func @transform_2(%arg0: i32, %arg1: i32) -> (i32, i32, i32, i32) {
    %c1_i32 = arith.constant 1 : i32
    %0 = arith.addi %arg1, %c1_i32 : i32
    %c16_i32 = arith.constant 16 : i32
    %1 = arith.muli %0, %c16_i32 : i32
    %c15_i32 = arith.constant 15 : i32
    %2 = arith.minsi %1, %c15_i32 : i32
    %c0_i32 = arith.constant 0 : i32
    %c0_i32_0 = arith.constant 0 : i32
    %c0_i32_1 = arith.constant 0 : i32
    return %arg0, %2, %c0_i32, %c0_i32_0 : i32, i32, i32, i32
  }
  func.func @transform_3(%arg0: i32, %arg1: i32) -> (i32, i32) {
    %c0_i32 = arith.constant 0 : i32
    %c0_i32_0 = arith.constant 0 : i32
    %c0_i32_1 = arith.constant 0 : i32
    return %c0_i32, %c0_i32_0 : i32, i32
  }
  func.func @transform_4(%arg0: i32, %arg1: i32) -> (i32, i32) {
    %c0_i32 = arith.constant 0 : i32
    %c0_i32_0 = arith.constant 0 : i32
    %c0_i32_1 = arith.constant 0 : i32
    return %c0_i32, %c0_i32_0 : i32, i32
  }
  func.func @transform_5(%arg0: i32, %arg1: i32) -> (i32, i32) {
    %c0_i32 = arith.constant 0 : i32
    %c0_i32_0 = arith.constant 0 : i32
    %c0_i32_1 = arith.constant 0 : i32
    return %c0_i32, %c0_i32_0 : i32, i32
  }
  func.func @transform_6(%arg0: i32, %arg1: i32) -> (i32, i32) {
    %c0_i32 = arith.constant 0 : i32
    %c0_i32_0 = arith.constant 0 : i32
    %c0_i32_1 = arith.constant 0 : i32
    return %c0_i32, %c0_i32_0 : i32, i32
  }
  func.func @transform_7(%arg0: i32, %arg1: i32) -> (i32, i32) {
    %c0_i32 = arith.constant 0 : i32
    %c0_i32_0 = arith.constant 0 : i32
    %c0_i32_1 = arith.constant 0 : i32
    return %c0_i32, %c0_i32_0 : i32, i32
  }
  func.func @transform_8(%arg0: i32, %arg1: i32) -> (i32, i32) {
    %c0_i32 = arith.constant 0 : i32
    %c0_i32_0 = arith.constant 0 : i32
    %c0_i32_1 = arith.constant 0 : i32
    return %c0_i32, %c0_i32_0 : i32, i32
  }
  func.func @transform_9(%arg0: i32, %arg1: i32) -> (i32, i32, i32, i32) {
    %c0_i32 = arith.constant 0 : i32
    %c0_i32_0 = arith.constant 0 : i32
    %c0_i32_1 = arith.constant 0 : i32
    return %arg0, %arg1, %c0_i32, %c0_i32_0 : i32, i32, i32, i32
  }
}

</mosaic_0001>

<llo_original>
// kernel: tpu_custom_call.1
$region0: #{tpu_custom_call.1}
  #allocation0 [shape = 'u32[]', space=smem, size = 0x4, offset = 0x4, fixed_abs, tag = 'smem constant byte address 0x4 - core index']
  #allocation1 [shape = 'u32[72,128]{1,0:T(1,128)}', space=vmem, size = 0x9000, scoped, tag = 'internal scratch']
  %s0 = inlined_call_operand.vmem [shape: bf16[2,16,16,128], index: 0, kind: input, shape index: {}]
  %s1 = inlined_call_operand.hbm [shape: bf16[2,16,16,128], index: 1, kind: input, shape index: {}]
  %s2 = inlined_call_operand.hbm [shape: bf16[2,16,16,128], index: 2, kind: input, shape index: {}]
  %s3 = inlined_call_operand.vmem [shape: bf16[128,32], index: 3, kind: input, shape index: {}]
  %s4 = inlined_call_operand.vmem [shape: bf16[288,32], index: 4, kind: input, shape index: {}]
  %s5 = inlined_call_operand.vmem [shape: bf16[32,128], index: 5, kind: input, shape index: {}]
  %s6 = inlined_call_operand.vmem [shape: f32[1,32], index: 6, kind: input, shape index: {}]
  %s7 = inlined_call_operand.vmem [shape: f32[1,32], index: 7, kind: input, shape index: {}]
  %s8 = inlined_call_operand.vmem [shape: f32[1,128], index: 8, kind: input, shape index: {}]
  %s9 = inlined_call_operand.hbm [shape: bf16[2,16,16,128], index: 9, kind: output, shape index: {}]
  %s10 = sld [smem:[#allocation0]]
  $region77: #{tpu_custom_call.1} parent=0
    _
  %s12 = ssub.s32 1, %s10
  %s13 = scalar_select 0, %s12, %s10
  $region1: #{tpu_custom_call.1} parent=0
    #allocation2 [shape = 'u8[131072]{0}', space=vmem, size = 0x20000, scoped, tag = 'input window, operand 1']
    #allocation3 [shape = 's32[2]{0}', space=sflag, size = 0x8, scoped, tag = 'scoped memory for tpu_custom_call.1']
    #allocation4 [shape = 's32[2]{0}', space=sflag, size = 0x8, scoped, tag = 'scoped memory for tpu_custom_call.1']
    #allocation5 [shape = 'u8[8192]{0}', space=vmem, size = 0x2000, scoped, tag = 'input window, operand 2']
    #allocation6 [shape = 's32[2]{0}', space=sflag, size = 0x8, scoped, tag = 'scoped memory for tpu_custom_call.1']
    #allocation7 [shape = 'u8[131072]{0}', space=vmem, size = 0x20000, scoped, tag = 'output window, operand 0']
    %14 = vsyncpa [#allocation3], 0
    %s15 = scalar_lea.sflag [#allocation3], 1
    %16 = vsyncpa %s15, 0
    %17 = vsyncpa [#allocation6], 0
    %s18 = scalar_lea.sflag [#allocation6], 1
    %19 = vsyncpa %s18, 0
    %20 = vsyncpa [#allocation4], 0
    %s21 = scalar_lea.sflag [#allocation4], 1
    %22 = vsyncpa %s21, 0
    loop: start=0, step=1, limit=4
    $region2: #{tpu_custom_call.1} parent=1 // loop_pre_header
      _
    $region3: #{tpu_custom_call.1} parent=1 // loop_header
      %s24 = sphi 0, %s28
      %p25 = scmp.ge.s32.totalorder %s24, 4
      %s31 = sphi 0, %s43
      %s32 = sphi 0, %s39
      %s33 = sphi 0, %s31
      %s34 = sphi 0, %s32
      %s35 = sphi 0, %s33
      %s36 = sphi 0, %s34
      %s56 = sphi 0, %s58
      %s59 = sphi 0, %s56
      %s60 = sphi 0, %s59
      %s76 = sphi 0, %s60
      %s84 = sphi 0, %s86
      %s87 = sphi 0, %s84
      %s88 = sphi 0, %s87
      %s104 = sphi 0, %s88
      %s120 = sphi 0, %s122
      %s123 = sphi 0, %s120
      %s124 = sphi 0, %s123
      %s140 = sphi 0, %s124
      %s144 = sphi 0, %s144
      %s146 = sphi 0, %s144
      %s147 = sphi 0, %s146
      %s161 = sphi 0, %s147
      %s165 = sphi 0, %s165
      %s167 = sphi 0, %s165
      %s168 = sphi 0, %s167
      %s182 = sphi 0, %s168
      %s186 = sphi 0, %s186
      %s188 = sphi 0, %s186
      %s189 = sphi 0, %s188
      %s203 = sphi 0, %s189
      %s207 = sphi 0, %s207
      %s209 = sphi 0, %s207
      %s210 = sphi 0, %s209
      %s224 = sphi 0, %s210
      %s228 = sphi 0, %s228
      %s230 = sphi 0, %s228
      %s231 = sphi 0, %s230
      %s245 = sphi 0, %s231
      %s249 = sphi 0, %s249
      %s251 = sphi 0, %s249
      %s252 = sphi 0, %s251
      %s266 = sphi 0, %s252
      %s274 = sphi 0, %s276
      %s277 = sphi 0, %s274
      %s278 = sphi 0, %s277
      %s294 = sphi 0, %s278
    $region4: #{tpu_custom_call.1} parent=1 // loop_header_branch
      %27 = sbr.rel (%p25) target = $region8
    $region5: #{tpu_custom_call.1} parent=1 // loop_body
      %s29 = ssub.s32 %s24, 1
      %s30 = ssub.s32 %s24, 2
      %s37 = sadd.s32 1, %s32
      %p38 = scmp.ge.s32.totalorder %s37, 1
      %s39 = scalar_select %p38, 0, %s37
      %s40 = sadd.s32 1, %s31
      %s41 = scalar_select %p38, %s40, %s31
      %p42 = scmp.ge.s32.totalorder %s41, 2
      %s43 = scalar_select %p42, 0, %s41
      %s44 = smul.u32 %s32, 16
      %s45 = ssub.s32 %s44, 1
      %p46 = scmp.gt.s32.totalorder %s45, 0
      %s47 = scalar_select %p46, %s45, 0
      %s48 = smul.u32 %s39, 16
      %s49 = ssub.s32 %s48, 1
      %p50 = scmp.gt.s32.totalorder %s49, 0
      %s51 = scalar_select %p50, %s49, 0
      %s52 = ssub.s32 %s31, %s43
      %s53 = ssub.s32 %s47, %s51
      %s54 = sor.u32 %s52, %s53
      %p55 = scmp.eq.s32.totalorder %s54, 0
      %s57 = sadd.s32 %s56, 1
      %s58 = scalar_select %p55, %s56, %s57
      %p61 = pneg %p55
      %p62 = scmp.eq.s32.totalorder %s24, 1
      %p63 = por %p61, %p62
      %p64 = scmp.ne.s32.totalorder %s56, %s59
      %p65 = scmp.eq.s32.totalorder %s24, 0
      %p66 = por %p64, %p65
      %p67 = scmp.ne.s32.totalorder %s56, %s59
      %p68 = scmp.eq.s32.totalorder %s29, 1
      %p69 = por %p67, %p68
      %p70 = scmp.ne.s32.totalorder %s59, %s60
      %p71 = scmp.eq.s32.totalorder %s29, 0
      %p72 = por %p70, %p71
      %p73 = scmp.ne.s32.totalorder %s59, %s60
      %p74 = scmp.eq.s32.totalorder %s30, 1
      %p75 = por %p73, %p74
      %p77 = scmp.ne.s32.totalorder %s60, %s76
      %p78 = scmp.eq.s32.totalorder %s30, 0
      %p79 = por %p77, %p78
      %s80 = ssub.s32 %s31, %s43
      %s81 = ssub.s32 %s32, %s39
      %s82 = sor.u32 %s80, %s81
      %p83 = scmp.eq.s32.totalorder %s82, 0
      %s85 = sadd.s32 %s84, 1
      %s86 = scalar_select %p83, %s84, %s85
      %p89 = pneg %p83
      %p90 = scmp.eq.s32.totalorder %s24, 1
      %p91 = por %p89, %p90
      %p92 = scmp.ne.s32.totalorder %s84, %s87
      %p93 = scmp.eq.s32.totalorder %s24, 0
      %p94 = por %p92, %p93
      %p95 = scmp.ne.s32.totalorder %s84, %s87
      %p96 = scmp.eq.s32.totalorder %s29, 1
      %p97 = por %p95, %p96
      %p98 = scmp.ne.s32.totalorder %s87, %s88
      %p99 = scmp.eq.s32.totalorder %s29, 0
      %p100 = por %p98, %p99
      %p101 = scmp.ne.s32.totalorder %s87, %s88
      %p102 = scmp.eq.s32.totalorder %s30, 1
      %p103 = por %p101, %p102
      %p105 = scmp.ne.s32.totalorder %s88, %s104
      %p106 = scmp.eq.s32.totalorder %s30, 0
      %p107 = por %p105, %p106
      %s108 = sadd.s32 %s32, 1
      %s109 = smul.u32 %s108, 16
      %p110 = scmp.lt.s32.totalorder %s109, 15
      %s111 = scalar_select %p110, %s109, 15
      %s112 = sadd.s32 %s39, 1
      %s113 = smul.u32 %s112, 16
      %p114 = scmp.lt.s32.totalorder %s113, 15
      %s115 = scalar_select %p114, %s113, 15
      %s116 = ssub.s32 %s31, %s43
      %s117 = ssub.s32 %s111, %s115
      %s118 = sor.u32 %s116, %s117
      %p119 = scmp.eq.s32.totalorder %s118, 0
      %s121 = sadd.s32 %s120, 1
      %s122 = scalar_select %p119, %s120, %s121
      %p125 = pneg %p119
      %p126 = scmp.eq.s32.totalorder %s24, 1
      %p127 = por %p125, %p126
      %p128 = scmp.ne.s32.totalorder %s120, %s123
      %p129 = scmp.eq.s32.totalorder %s24, 0
      %p130 = por %p128, %p129
      %p131 = scmp.ne.s32.totalorder %s120, %s123
      %p132 = scmp.eq.s32.totalorder %s29, 1
      %p133 = por %p131, %p132
      %p134 = scmp.ne.s32.totalorder %s123, %s124
      %p135 = scmp.eq.s32.totalorder %s29, 0
      %p136 = por %p134, %p135
      %p137 = scmp.ne.s32.totalorder %s123, %s124
      %p138 = scmp.eq.s32.totalorder %s30, 1
      %p139 = por %p137, %p138
      %p141 = scmp.ne.s32.totalorder %s124, %s140
      %p142 = scmp.eq.s32.totalorder %s30, 0
      %p143 = por %p141, %p142
      %s145 = sadd.s32 %s144, 1
      %p148 = scmp.eq.s32.totalorder %s24, 1
      %p149 = scmp.ne.s32.totalorder %s144, %s146
      %p150 = scmp.eq.s32.totalorder %s24, 0
      %p151 = por %p149, %p150
      %p152 = scmp.ne.s32.totalorder %s144, %s146
      %p153 = scmp.eq.s32.totalorder %s29, 1
      %p154 = por %p152, %p153
      %p155 = scmp.ne.s32.totalorder %s146, %s147
      %p156 = scmp.eq.s32.totalorder %s29, 0
      %p157 = por %p155, %p156
      %p158 = scmp.ne.s32.totalorder %s146, %s147
      %p159 = scmp.eq.s32.totalorder %s30, 1
      %p160 = por %p158, %p159
      %p162 = scmp.ne.s32.totalorder %s147, %s161
      %p163 = scmp.eq.s32.totalorder %s30, 0
      %p164 = por %p162, %p163
      %s166 = sadd.s32 %s165, 1
      %p169 = scmp.eq.s32.totalorder %s24, 1
      %p170 = scmp.ne.s32.totalorder %s165, %s167
      %p171 = scmp.eq.s32.totalorder %s24, 0
      %p172 = por %p170, %p171
      %p173 = scmp.ne.s32.totalorder %s165, %s167
      %p174 = scmp.eq.s32.totalorder %s29, 1
      %p175 = por %p173, %p174
      %p176 = scmp.ne.s32.totalorder %s167, %s168
      %p177 = scmp.eq.s32.totalorder %s29, 0
      %p178 = por %p176, %p177
      %p179 = scmp.ne.s32.totalorder %s167, %s168
      %p180 = scmp.eq.s32.totalorder %s30, 1
      %p181 = por %p179, %p180
      %p183 = scmp.ne.s32.totalorder %s168, %s182
      %p184 = scmp.eq.s32.totalorder %s30, 0
      %p185 = por %p183, %p184
      %s187 = sadd.s32 %s186, 1
      %p190 = scmp.eq.s32.totalorder %s24, 1
      %p191 = scmp.ne.s32.totalorder %s186, %s188
      %p192 = scmp.eq.s32.totalorder %s24, 0
      %p193 = por %p191, %p192
      %p194 = scmp.ne.s32.totalorder %s186, %s188
      %p195 = scmp.eq.s32.totalorder %s29, 1
      %p196 = por %p194, %p195
      %p197 = scmp.ne.s32.totalorder %s188, %s189
      %p198 = scmp.eq.s32.totalorder %s29, 0
      %p199 = por %p197, %p198
      %p200 = scmp.ne.s32.totalorder %s188, %s189
      %p201 = scmp.eq.s32.totalorder %s30, 1
      %p202 = por %p200, %p201
      %p204 = scmp.ne.s32.totalorder %s189, %s203
      %p205 = scmp.eq.s32.totalorder %s30, 0
      %p206 = por %p204, %p205
      %s208 = sadd.s32 %s207, 1
      %p211 = scmp.eq.s32.totalorder %s24, 1
      %p212 = scmp.ne.s32.totalorder %s207, %s209
      %p213 = scmp.eq.s32.totalorder %s24, 0
      %p214 = por %p212, %p213
      %p215 = scmp.ne.s32.totalorder %s207, %s209
      %p216 = scmp.eq.s32.totalorder %s29, 1
      %p217 = por %p215, %p216
      %p218 = scmp.ne.s32.totalorder %s209, %s210
      %p219 = scmp.eq.s32.totalorder %s29, 0
      %p220 = por %p218, %p219
      %p221 = scmp.ne.s32.totalorder %s209, %s210
      %p222 = scmp.eq.s32.totalorder %s30, 1
      %p223 = por %p221, %p222
      %p225 = scmp.ne.s32.totalorder %s210, %s224
      %p226 = scmp.eq.s32.totalorder %s30, 0
      %p227 = por %p225, %p226
      %s229 = sadd.s32 %s228, 1
      %p232 = scmp.eq.s32.totalorder %s24, 1
      %p233 = scmp.ne.s32.totalorder %s228, %s230
      %p234 = scmp.eq.s32.totalorder %s24, 0
      %p235 = por %p233, %p234
      %p236 = scmp.ne.s32.totalorder %s228, %s230
      %p237 = scmp.eq.s32.totalorder %s29, 1
      %p238 = por %p236, %p237
      %p239 = scmp.ne.s32.totalorder %s230, %s231
      %p240 = scmp.eq.s32.totalorder %s29, 0
      %p241 = por %p239, %p240
      %p242 = scmp.ne.s32.totalorder %s230, %s231
      %p243 = scmp.eq.s32.totalorder %s30, 1
      %p244 = por %p242, %p243
      %p246 = scmp.ne.s32.totalorder %s231, %s245
      %p247 = scmp.eq.s32.totalorder %s30, 0
      %p248 = por %p246, %p247
      %s250 = sadd.s32 %s249, 1
      %p253 = scmp.eq.s32.totalorder %s24, 1
      %p254 = scmp.ne.s32.totalorder %s249, %s251
      %p255 = scmp.eq.s32.totalorder %s24, 0
      %p256 = por %p254, %p255
      %p257 = scmp.ne.s32.totalorder %s249, %s251
      %p258 = scmp.eq.s32.totalorder %s29, 1
      %p259 = por %p257, %p258
      %p260 = scmp.ne.s32.totalorder %s251, %s252
      %p261 = scmp.eq.s32.totalorder %s29, 0
      %p262 = por %p260, %p261
      %p263 = scmp.ne.s32.totalorder %s251, %s252
      %p264 = scmp.eq.s32.totalorder %s30, 1
      %p265 = por %p263, %p264
      %p267 = scmp.ne.s32.totalorder %s252, %s266
      %p268 = scmp.eq.s32.totalorder %s30, 0
      %p269 = por %p267, %p268
      %s270 = ssub.s32 %s31, %s43
      %s271 = ssub.s32 %s32, %s39
      %s272 = sor.u32 %s270, %s271
      %p273 = scmp.eq.s32.totalorder %s272, 0
      %s275 = sadd.s32 %s274, 1
      %s276 = scalar_select %p273, %s274, %s275
      %p279 = pneg %p273
      %p280 = scmp.eq.s32.totalorder %s24, 1
      %p281 = por %p279, %p280
      %p282 = scmp.ne.s32.totalorder %s274, %s277
      %p283 = scmp.eq.s32.totalorder %s24, 0
      %p284 = por %p282, %p283
      %p285 = scmp.ne.s32.totalorder %s274, %s277
      %p286 = scmp.eq.s32.totalorder %s29, 1
      %p287 = por %p285, %p286
      %p288 = scmp.ne.s32.totalorder %s277, %s278
      %p289 = scmp.eq.s32.totalorder %s29, 0
      %p290 = por %p288, %p289
      %p291 = scmp.ne.s32.totalorder %s277, %s278
      %p292 = scmp.eq.s32.totalorder %s30, 1
      %p293 = por %p291, %p292
      %p295 = scmp.ne.s32.totalorder %s278, %s294
      %p296 = scmp.eq.s32.totalorder %s30, 0
      %p297 = por %p295, %p296
      %p298 = scmp.le.s32.totalorder 1, %s24
      %p299 = scmp.lt.s32.totalorder %s24, 3
      %p300 = pnand %p298, %p299
      %p301 = pneg %p300
      // Predicated region
      $region9: #{tpu_custom_call.1} parent=5 // pred_check
        _
      $region10: #{tpu_custom_call.1} parent=5 // pred_check_branch
        %303 = sbr.rel (%p300) target = $region12
      $region11: #{tpu_custom_call.1} parent=5 // pred_region
        %s304 = ssub.s32 %s24, 1
        // Predicated region
        $region13: #{tpu_custom_call.1} parent=11 // pred_check
          %p305 = pneg %p157
        $region14: #{tpu_custom_call.1} parent=11 // pred_check_branch
          %307 = sbr.rel (%p305) target = $region16
        $region15: #{tpu_custom_call.1} parent=11 // pred_region
          _
        $region16: #{tpu_custom_call.1} parent=11 // pred_fallthru
          _
        // Predicated region
        $region17: #{tpu_custom_call.1} parent=11 // pred_check
          %p308 = pneg %p178
        $region18: #{tpu_custom_call.1} parent=11 // pred_check_branch
          %310 = sbr.rel (%p308) target = $region20
        $region19: #{tpu_custom_call.1} parent=11 // pred_region
          _
        $region20: #{tpu_custom_call.1} parent=11 // pred_fallthru
          _
        // Predicated region
        $region21: #{tpu_custom_call.1} parent=11 // pred_check
          %p311 = pneg %p199
        $region22: #{tpu_custom_call.1} parent=11 // pred_check_branch
          %313 = sbr.rel (%p311) target = $region24
        $region23: #{tpu_custom_call.1} parent=11 // pred_region
          _
        $region24: #{tpu_custom_call.1} parent=11 // pred_fallthru
          _
        // Predicated region
        $region25: #{tpu_custom_call.1} parent=11 // pred_check
          %p314 = pneg %p220
        $region26: #{tpu_custom_call.1} parent=11 // pred_check_branch
          %316 = sbr.rel (%p314) target = $region28
        $region27: #{tpu_custom_call.1} parent=11 // pred_region
          _
        $region28: #{tpu_custom_call.1} parent=11 // pred_fallthru
          _
        // Predicated region
        $region29: #{tpu_custom_call.1} parent=11 // pred_check
          %p317 = pneg %p241
        $region30: #{tpu_custom_call.1} parent=11 // pred_check_branch
          %319 = sbr.rel (%p317) target = $region32
        $region31: #{tpu_custom_call.1} parent=11 // pred_region
          _
        $region32: #{tpu_custom_call.1} parent=11 // pred_fallthru
          _
        // Predicated region
        $region33: #{tpu_custom_call.1} parent=11 // pred_check
          %p320 = pneg %p262
        $region34: #{tpu_custom_call.1} parent=11 // pred_check_branch
          %322 = sbr.rel (%p320) target = $region36
        $region35: #{tpu_custom_call.1} parent=11 // pred_region
          _
        $region36: #{tpu_custom_call.1} parent=11 // pred_fallthru
          _
      $region12: #{tpu_custom_call.1} parent=5 // pred_fallthru
        _
      %p323 = scmp.lt.s32.totalorder %s24, 2
      // Predicated region
      $region37: #{tpu_custom_call.1} parent=5 // pred_check
        %p324 = pneg %p323
      $region38: #{tpu_custom_call.1} parent=5 // pred_check_branch
        %326 = sbr.rel (%p324) target = $region40
      $region39: #{tpu_custom_call.1} parent=5 // pred_region
        // Predicated region
        $region41: #{tpu_custom_call.1} parent=39 // pred_check
          %p327 = pneg %p66
        $region42: #{tpu_custom_call.1} parent=39 // pred_check_branch
          %329 = sbr.rel (%p327) target = $region44
        $region43: #{tpu_custom_call.1} parent=39 // pred_region
          %s330 = smul.u32 %s32, 16
          %s331 = ssub.s32 %s330, 1
          %p332 = scmp.gt.s32.totalorder %s331, 0
          %s333 = scalar_select %p332, %s331, 0
          %p334 = scmp.lt.s32.totalorder %s31, 1
          %s335 = scalar_select %p334, %s31, 1
          %p336 = scmp.lt.s32.totalorder %s333, 15
          %s337 = scalar_select %p336, %s333, 15
          %s338 = smul.addr %s337, 2
          %s339 = smul.addr %s335, 32
          %s340 = sadd.s32 %s338, %s339
          %s341 = smul.addr %s340, 4
          %s342 = scalar_lea.vmem %s0, %s341
          %s343 = smul.u32 %s32, 16
          %s344 = ssub.s32 %s343, 1
          %p345 = scmp.gt.s32.totalorder %s344, 0
          %s346 = scalar_select %p345, %s344, 0
        $region44: #{tpu_custom_call.1} parent=39 // pred_fallthru
          _
        // Predicated region
        $region45: #{tpu_custom_call.1} parent=39 // pred_check
          %p347 = pneg %p94
        $region46: #{tpu_custom_call.1} parent=39 // pred_check_branch
          %349 = sbr.rel (%p347) target = $region48
        $region47: #{tpu_custom_call.1} parent=39 // pred_region
          %s350 = sand.u32 %s84, 1
          %s351 = scalar_lea.sflag [#allocation3], %s350
          %s352 = sand.u32 %s84, 1
          %s353 = smul.addr %s352, 128
          %s354 = scalar_lea.vmem [#allocation2], %s353
          %s355 = smul.u32 16, %s32
          %357 = vsyncadd %s351, 0
          %s358 = smul.addr %s355, 2
          %s359 = smul.addr %s31, 32
          %s360 = sadd.s32 %s358, %s359
          %s361 = smul.addr %s360, 4
          %s362 = scalar_lea.hbm %s1, %s361
          %s363 = sshll.u32 %s362, 4
          %s364 = int_to_ptr.hbm [resolvable:$true] %s363
          %s365 = sshll.u32 %s354, 4
          %s366 = int_to_ptr.vmem [resolvable:$true] %s365
          %371 = dma.hbm_to_vmem [thread:$0]  %s364, 2048, %s366, %s351, 64, 64, 4
        $region48: #{tpu_custom_call.1} parent=39 // pred_fallthru
          _
        // Predicated region
        $region49: #{tpu_custom_call.1} parent=39 // pred_check
          %p372 = pneg %p130
        $region50: #{tpu_custom_call.1} parent=39 // pred_check_branch
          %374 = sbr.rel (%p372) target = $region52
        $region51: #{tpu_custom_call.1} parent=39 // pred_region
          %s375 = sand.u32 %s120, 1
          %s376 = scalar_lea.sflag [#allocation6], %s375
          %s377 = sand.u32 %s120, 1
          %s378 = smul.addr %s377, 8
          %s379 = scalar_lea.vmem [#allocation5], %s378
          %s380 = sadd.s32 %s32, 1
          %s381 = smul.u32 %s380, 16
          %p382 = scmp.lt.s32.totalorder %s381, 15
          %s383 = scalar_select %p382, %s381, 15
          %385 = vsyncadd %s376, 0
          %s386 = smul.addr %s383, 2
          %s387 = smul.addr %s31, 32
          %s388 = sadd.s32 %s386, %s387
          %s389 = smul.addr %s388, 4
          %s390 = scalar_lea.hbm %s2, %s389
          %s391 = sshll.u32 %s390, 4
          %s392 = int_to_ptr.hbm [resolvable:$true] %s391
          %s393 = sshll.u32 %s379, 4
          %s394 = int_to_ptr.vmem [resolvable:$true] %s393
          %399 = dma.hbm_to_vmem [thread:$0]  %s392, 128, %s394, %s376, 64, 64, 4
        $region52: #{tpu_custom_call.1} parent=39 // pred_fallthru
          _
      $region40: #{tpu_custom_call.1} parent=5 // pred_fallthru
        _
      %p400 = scmp.le.s32.totalorder 1, %s24
      %p401 = scmp.lt.s32.totalorder %s24, 3
      %p402 = pnand %p400, %p401
      %p403 = pneg %p402
      // Predicated region
      $region53: #{tpu_custom_call.1} parent=5 // pred_check
        _
      $region54: #{tpu_custom_call.1} parent=5 // pred_check_branch
        %405 = sbr.rel (%p402) target = $region56
      $region55: #{tpu_custom_call.1} parent=5 // pred_region
        %s406 = ssub.s32 %s24, 1
        %s407 = sand.u32 %s87, 1
        %s408 = scalar_lea.sflag [#allocation3], %s407
        %s409 = sand.u32 %s87, 1
        %s410 = smul.addr %s409, 128
        %s411 = scalar_lea.vmem [#allocation2], %s410
        // Predicated region
        $region57: #{tpu_custom_call.1} parent=55 // pred_check
          %p412 = pneg %p100
        $region58: #{tpu_custom_call.1} parent=55 // pred_check_branch
          %414 = sbr.rel (%p412) target = $region60
        $region59: #{tpu_custom_call.1} parent=55 // pred_region
          %416 = dma.done %s408, 2048
        $region60: #{tpu_custom_call.1} parent=55 // pred_fallthru
          _
        %s417 = sand.u32 %s123, 1
        %s418 = scalar_lea.sflag [#allocation6], %s417
        %s419 = sand.u32 %s123, 1
        %s420 = smul.addr %s419, 8
        %s421 = scalar_lea.vmem [#allocation5], %s420
        // Predicated region
        $region61: #{tpu_custom_call.1} parent=55 // pred_check
          %p422 = pneg %p136
        $region62: #{tpu_custom_call.1} parent=55 // pred_check_branch
          %424 = sbr.rel (%p422) target = $region64
        $region63: #{tpu_custom_call.1} parent=55 // pred_region
          %426 = dma.done %s418, 128
        $region64: #{tpu_custom_call.1} parent=55 // pred_fallthru
          _
        %s427 = smul.u32 %s34, 16
        %s428 = ssub.s32 %s427, 1
        %p429 = scmp.gt.s32.totalorder %s428, 0
        %s430 = scalar_select %p429, %s428, 0
        %p431 = scmp.lt.s32.totalorder %s33, 1
        %s432 = scalar_select %p431, %s33, 1
        %p433 = scmp.lt.s32.totalorder %s430, 15
        %s434 = scalar_select %p433, %s430, 15
        %s435 = smul.addr %s434, 2
        %s436 = smul.addr %s432, 32
        %s437 = sadd.s32 %s435, %s436
        %s438 = smul.addr %s437, 4
        %s439 = scalar_lea.vmem %s0, %s438
        %p440 = pneg %p72
        %p441 = pneg %p69
        %s442 = sand.u32 %s87, 1
        %s443 = scalar_lea.sflag [#allocation3], %s442
        %s444 = sand.u32 %s87, 1
        %s445 = smul.addr %s444, 128
        %s446 = scalar_lea.vmem [#allocation2], %s445
        %p447 = pneg %p100
        %p448 = pneg %p97
        %s449 = sand.u32 %s123, 1
        %s450 = scalar_lea.sflag [#allocation6], %s449
        %s451 = sand.u32 %s123, 1
        %s452 = smul.addr %s451, 8
        %s453 = scalar_lea.vmem [#allocation5], %s452
        %p454 = pneg %p136
        %p455 = pneg %p133
        %p456 = pneg %p157
        %p457 = pneg %p154
        %p458 = pneg %p178
        %p459 = pneg %p175
        %p460 = pneg %p199
        %p461 = pneg %p196
        %p462 = pneg %p220
        %p463 = pneg %p217
        %p464 = pneg %p241
        %p465 = pneg %p238
        %p466 = pneg %p262
        %p467 = pneg %p259
        %p468 = pneg %p290
        %p469 = pneg %p287
        %s470 = sand.u32 %s277, 1
        %s471 = scalar_lea.sflag [#allocation4], %s470
        %s472 = sand.u32 %s277, 1
        %s473 = smul.addr %s472, 128
        %s474 = scalar_lea.vmem [#allocation7], %s473
        %s475 = smul.u32 %s34, 16
        %s476 = ssub.s32 %s475, 1
        %p477 = scmp.gt.s32.totalorder %s476, 0
        %s478 = scalar_select %p477, %s476, 0
        %p479 = scmp.lt.s32.totalorder %s33, 1
        %s480 = scalar_select %p479, %s33, 1
        %p481 = scmp.lt.s32.totalorder %s478, 15
        %s482 = scalar_select %p481, %s478, 15
        %s483 = smul.addr %s482, 2
        %s484 = smul.addr %s480, 32
        %s485 = sadd.s32 %s483, %s484
        %s486 = smul.addr %s485, 4
        %s487 = scalar_lea.vmem %s0, %s486
        %s488 = smul.u32 %s34, 16
        %s489 = ssub.s32 %s488, 1
        %p490 = scmp.gt.s32.totalorder %s489, 0
        %s491 = scalar_select %p490, %s489, 0
        %s492 = smul.u32 16, %s34
        %s493 = sadd.s32 %s34, 1
        %s494 = smul.u32 %s493, 16
        %p495 = scmp.lt.s32.totalorder %s494, 15
        %s496 = scalar_select %p495, %s494, 15
        %s497 = smul.u32 16, %s34
        %v499 = vld [vmem:[%s411] sm:$0xf]
        %v500 = vld [vmem:[%s411 + $0x4] sm:$0xf]
        %v501 = vld [vmem:[%s411 + $0x8] sm:$0xf]
        %v502 = vld [vmem:[%s411 + $0xc] sm:$0xf]
        %v503 = vld [vmem:[%s411 + $0x10] sm:$0xf]
        %v504 = vld [vmem:[%s411 + $0x14] sm:$0xf]
        %v505 = vld [vmem:[%s411 + $0x18] sm:$0xf]
        %v506 = vld [vmem:[%s411 + $0x1c] sm:$0xf]
        %v507 = vld [vmem:[%s411 + $0x20] sm:$0xf]
        %v508 = vld [vmem:[%s411 + $0x24] sm:$0xf]
        %v509 = vld [vmem:[%s411 + $0x28] sm:$0xf]
        %v510 = vld [vmem:[%s411 + $0x2c] sm:$0xf]
        %v511 = vld [vmem:[%s411 + $0x30] sm:$0xf]
        %v512 = vld [vmem:[%s411 + $0x34] sm:$0xf]
        %v513 = vld [vmem:[%s411 + $0x38] sm:$0xf]
        %v514 = vld [vmem:[%s411 + $0x3c] sm:$0xf]
        %v515 = vld [vmem:[%s411 + $0x40] sm:$0xf]
        %v516 = vld [vmem:[%s411 + $0x44] sm:$0xf]
        %v517 = vld [vmem:[%s411 + $0x48] sm:$0xf]
        %v518 = vld [vmem:[%s411 + $0x4c] sm:$0xf]
        %v519 = vld [vmem:[%s411 + $0x50] sm:$0xf]
        %v520 = vld [vmem:[%s411 + $0x54] sm:$0xf]
        %v521 = vld [vmem:[%s411 + $0x58] sm:$0xf]
        %v522 = vld [vmem:[%s411 + $0x5c] sm:$0xf]
        %v523 = vld [vmem:[%s411 + $0x60] sm:$0xf]
        %v524 = vld [vmem:[%s411 + $0x64] sm:$0xf]
        %v525 = vld [vmem:[%s411 + $0x68] sm:$0xf]
        %v526 = vld [vmem:[%s411 + $0x6c] sm:$0xf]
        %v527 = vld [vmem:[%s411 + $0x70] sm:$0xf]
        %v528 = vld [vmem:[%s411 + $0x74] sm:$0xf]
        %v529 = vld [vmem:[%s411 + $0x78] sm:$0xf]
        %v530 = vld [vmem:[%s411 + $0x7c] sm:$0xf]
        %v531 = vld [vmem:[%s3] sm:$0xf]
        %v532 = vld [vmem:[%s3 + $0x4] sm:$0xf]
        %v533 = vld [vmem:[%s3 + $0x8] sm:$0xf]
        %v534 = vld [vmem:[%s3 + $0xc] sm:$0xf]
        %v535 = vld [vmem:[%s3 + $0x10] sm:$0xf]
        %v536 = vld [vmem:[%s3 + $0x14] sm:$0xf]
        %v537 = vld [vmem:[%s3 + $0x18] sm:$0xf]
        %v538 = vld [vmem:[%s3 + $0x1c] sm:$0xf]
        %v539 = vld [vmem:[%s3 + $0x20] sm:$0xf]
        %v540 = vld [vmem:[%s3 + $0x24] sm:$0xf]
        %v541 = vld [vmem:[%s3 + $0x28] sm:$0xf]
        %v542 = vld [vmem:[%s3 + $0x2c] sm:$0xf]
        %v543 = vld [vmem:[%s3 + $0x30] sm:$0xf]
        %v544 = vld [vmem:[%s3 + $0x34] sm:$0xf]
        %v545 = vld [vmem:[%s3 + $0x38] sm:$0xf]
        %v546 = vld [vmem:[%s3 + $0x3c] sm:$0xf]
        %v547 = vld [vmem:[%s6] sm:$0x1]
        %v549 = vperm.slane %v547, 0
        %v583 = vunpack.c.l.b16 %v499
        %v584 = vunpack.c.l.b16 %v500
        %v585 = vunpack.c.l.b16 %v501
        %v586 = vunpack.c.l.b16 %v502
        %v587 = vunpack.c.l.b16 %v503
        %v588 = vunpack.c.l.b16 %v504
        %v589 = vunpack.c.l.b16 %v505
        %v590 = vunpack.c.l.b16 %v506
        %v591 = vunpack.c.l.b16 %v507
        %v592 = vunpack.c.l.b16 %v508
        %v593 = vunpack.c.l.b16 %v509
        %v594 = vunpack.c.l.b16 %v510
        %v595 = vunpack.c.l.b16 %v511
        %v596 = vunpack.c.l.b16 %v512
        %v597 = vunpack.c.l.b16 %v513
        %v598 = vunpack.c.l.b16 %v514
        %v599 = vunpack.c.l.b16 %v515
        %v600 = vunpack.c.l.b16 %v516
        %v601 = vunpack.c.l.b16 %v517
        %v602 = vunpack.c.l.b16 %v518
        %v603 = vunpack.c.l.b16 %v519
        %v604 = vunpack.c.l.b16 %v520
        %v605 = vunpack.c.l.b16 %v521
        %v606 = vunpack.c.l.b16 %v522
        %v607 = vunpack.c.l.b16 %v523
        %v608 = vunpack.c.l.b16 %v524
        %v609 = vunpack.c.l.b16 %v525
        %v610 = vunpack.c.l.b16 %v526
        %v611 = vunpack.c.l.b16 %v527
        %v612 = vunpack.c.l.b16 %v528
        %v613 = vunpack.c.l.b16 %v529
        %v614 = vunpack.c.l.b16 %v530
        %v615 = vpack.c.b16 %v584, %v583
        %v616 = vpack.c.b16 %v586, %v585
        %v617 = vpack.c.b16 %v588, %v587
        %v618 = vpack.c.b16 %v590, %v589
        %v619 = vpack.c.b16 %v592, %v591
        %v620 = vpack.c.b16 %v594, %v593
        %v621 = vpack.c.b16 %v596, %v595
        %v622 = vpack.c.b16 %v598, %v597
        %v623 = vpack.c.b16 %v600, %v599
        %v624 = vpack.c.b16 %v602, %v601
        %v625 = vpack.c.b16 %v604, %v603
        %v626 = vpack.c.b16 %v606, %v605
        %v627 = vpack.c.b16 %v608, %v607
        %v628 = vpack.c.b16 %v610, %v609
        %v629 = vpack.c.b16 %v612, %v611
        %v630 = vpack.c.b16 %v614, %v613
        %v663 = vunpack.c.l.b16 %v531
        %v664 = vunpack.c.l.b16 %v532
        %v665 = vunpack.c.l.b16 %v533
        %v666 = vunpack.c.l.b16 %v534
        %v667 = vunpack.c.l.b16 %v535
        %v668 = vunpack.c.l.b16 %v536
        %v669 = vunpack.c.l.b16 %v537
        %v670 = vunpack.c.l.b16 %v538
        %v671 = vunpack.c.l.b16 %v539
        %v672 = vunpack.c.l.b16 %v540
        %v673 = vunpack.c.l.b16 %v541
        %v674 = vunpack.c.l.b16 %v542
        %v675 = vunpack.c.l.b16 %v543
        %v676 = vunpack.c.l.b16 %v544
        %v677 = vunpack.c.l.b16 %v545
        %v678 = vunpack.c.l.b16 %v546
        %v679 = vpack.c.b16 %v664, %v663
        %v680 = vpack.c.b16 %v666, %v665
        %v681 = vpack.c.b16 %v668, %v667
        %v682 = vpack.c.b16 %v670, %v669
        %v683 = vpack.c.b16 %v672, %v671
        %v684 = vpack.c.b16 %v674, %v673
        %v685 = vpack.c.b16 %v676, %v675
        %v686 = vpack.c.b16 %v678, %v677
        %695 = vmatpush.bf16.msra.mxu0 %v686
        %696 = vmatpush.bf16.msra.mxu0 %v685
        %697 = vmatpush.bf16.msra.mxu0 %v684
        %698 = vmatpush.bf16.msra.mxu0 %v683
        %699 = vmatpush.bf16.msra.mxu0 %v682
        %700 = vmatpush.bf16.msra.mxu0 %v681
        %701 = vmatpush.bf16.msra.mxu0 %v680
        %702 = vmatpush.bf16.msra.mxu0 %v679
        %703 = vmatmul.bf16.gmra.mxu0 %v615
        %v704 = vpop.f32.mrf.mxu0
        %v705 = vadd.f32 %v549, %v704
        %v706 = vpop.f32.mrf.mxu0
        %v707 = vadd.f32 %v549, %v706
        %708 = vmatmul.bf16.gmra.mxu0 %v616
        %v709 = vpop.f32.mrf.mxu0
        %v710 = vadd.f32 %v549, %v709
        %v711 = vpop.f32.mrf.mxu0
        %v712 = vadd.f32 %v549, %v711
        %713 = vmatmul.bf16.gmra.mxu0 %v617
        %v714 = vpop.f32.mrf.mxu0
        %v715 = vadd.f32 %v549, %v714
        %v716 = vpop.f32.mrf.mxu0
        %v717 = vadd.f32 %v549, %v716
        %718 = vmatmul.bf16.gmra.mxu0 %v618
        %v719 = vpop.f32.mrf.mxu0
        %v720 = vadd.f32 %v549, %v719
        %v721 = vpop.f32.mrf.mxu0
        %v722 = vadd.f32 %v549, %v721
        %723 = vmatmul.bf16.gmra.mxu0 %v619
        %v724 = vpop.f32.mrf.mxu0
        %v725 = vadd.f32 %v549, %v724
        %v726 = vpop.f32.mrf.mxu0
        %v727 = vadd.f32 %v549, %v726
        %728 = vmatmul.bf16.gmra.mxu0 %v620
        %v729 = vpop.f32.mrf.mxu0
        %v730 = vadd.f32 %v549, %v729
        %v731 = vpop.f32.mrf.mxu0
        %v732 = vadd.f32 %v549, %v731
        %733 = vmatmul.bf16.gmra.mxu0 %v621
        %v734 = vpop.f32.mrf.mxu0
        %v735 = vadd.f32 %v549, %v734
        %v736 = vpop.f32.mrf.mxu0
        %v737 = vadd.f32 %v549, %v736
        %738 = vmatmul.bf16.gmra.mxu0 %v622
        %v739 = vpop.f32.mrf.mxu0
        %v740 = vadd.f32 %v549, %v739
        %v741 = vpop.f32.mrf.mxu0
        %v742 = vadd.f32 %v549, %v741
        %743 = vmatmul.bf16.gmra.mxu0 %v623
        %v744 = vpop.f32.mrf.mxu0
        %v745 = vadd.f32 %v549, %v744
        %v746 = vpop.f32.mrf.mxu0
        %v747 = vadd.f32 %v549, %v746
        %748 = vmatmul.bf16.gmra.mxu0 %v624
        %v749 = vpop.f32.mrf.mxu0
        %v750 = vadd.f32 %v549, %v749
        %v751 = vpop.f32.mrf.mxu0
        %v752 = vadd.f32 %v549, %v751
        %753 = vmatmul.bf16.gmra.mxu0 %v625
        %v754 = vpop.f32.mrf.mxu0
        %v755 = vadd.f32 %v549, %v754
        %v756 = vpop.f32.mrf.mxu0
        %v757 = vadd.f32 %v549, %v756
        %758 = vmatmul.bf16.gmra.mxu0 %v626
        %v759 = vpop.f32.mrf.mxu0
        %v760 = vadd.f32 %v549, %v759
        %v761 = vpop.f32.mrf.mxu0
        %v762 = vadd.f32 %v549, %v761
        %763 = vmatmul.bf16.gmra.mxu0 %v627
        %v764 = vpop.f32.mrf.mxu0
        %v765 = vadd.f32 %v549, %v764
        %v766 = vpop.f32.mrf.mxu0
        %v767 = vadd.f32 %v549, %v766
        %768 = vmatmul.bf16.gmra.mxu0 %v628
        %v769 = vpop.f32.mrf.mxu0
        %v770 = vadd.f32 %v549, %v769
        %v771 = vpop.f32.mrf.mxu0
        %v772 = vadd.f32 %v549, %v771
        %773 = vmatmul.bf16.gmra.mxu0 %v629
        %v774 = vpop.f32.mrf.mxu0
        %v775 = vadd.f32 %v549, %v774
        %v776 = vpop.f32.mrf.mxu0
        %v777 = vadd.f32 %v549, %v776
        %778 = vmatmul.bf16.gmra.mxu0 %v630
        %v779 = vpop.f32.mrf.mxu0
        %v780 = vadd.f32 %v549, %v779
        %v781 = vpop.f32.mrf.mxu0
        %v782 = vadd.f32 %v549, %v781
        %783 = vdwg.mxu0
        %v784 = vmax.f32 %v705, 0.0
        %v785 = vmax.f32 %v707, 0.0
        %v786 = vmax.f32 %v710, 0.0
        %v787 = vmax.f32 %v712, 0.0
        %v788 = vmax.f32 %v715, 0.0
        %v789 = vmax.f32 %v717, 0.0
        %v790 = vmax.f32 %v720, 0.0
        %v791 = vmax.f32 %v722, 0.0
        %v792 = vmax.f32 %v725, 0.0
        %v793 = vmax.f32 %v727, 0.0
        %v794 = vmax.f32 %v730, 0.0
        %v795 = vmax.f32 %v732, 0.0
        %v796 = vmax.f32 %v735, 0.0
        %v797 = vmax.f32 %v737, 0.0
        %v798 = vmax.f32 %v740, 0.0
        %v799 = vmax.f32 %v742, 0.0
        %v800 = vmax.f32 %v745, 0.0
        %v801 = vmax.f32 %v747, 0.0
        %v802 = vmax.f32 %v750, 0.0
        %v803 = vmax.f32 %v752, 0.0
        %v804 = vmax.f32 %v755, 0.0
        %v805 = vmax.f32 %v757, 0.0
        %v806 = vmax.f32 %v760, 0.0
        %v807 = vmax.f32 %v762, 0.0
        %v808 = vmax.f32 %v765, 0.0
        %v809 = vmax.f32 %v767, 0.0
        %v810 = vmax.f32 %v770, 0.0
        %v811 = vmax.f32 %v772, 0.0
        %v812 = vmax.f32 %v775, 0.0
        %v813 = vmax.f32 %v777, 0.0
        %v814 = vmax.f32 %v780, 0.0
        %v815 = vmax.f32 %v782, 0.0
        %v816 = vld [vmem:[%s487] sm:$0xf]
        %v817 = vld [vmem:[%s487 + $0x4] sm:$0xf]
        %v820 = vunpack.c.l.b16 %v816
        %v821 = vunpack.c.l.b16 %v817
        %v822 = vpack.c.b16 %v821, %v820
        %824 = vmatpush.bf16.msra.mxu0 %v686
        %825 = vmatpush.bf16.msra.mxu0 %v685
        %826 = vmatpush.bf16.msra.mxu0 %v684
        %827 = vmatpush.bf16.msra.mxu0 %v683
        %828 = vmatpush.bf16.msra.mxu0 %v682
        %829 = vmatpush.bf16.msra.mxu0 %v681
        %830 = vmatpush.bf16.msra.mxu0 %v680
        %831 = vmatpush.bf16.msra.mxu0 %v679
        %832 = vmatmul.bf16.gmra.mxu0 %v822
        %v833 = vpop.f32.mrf.mxu0
        %v834 = vadd.f32 %v549, %v833
        %v835 = vpop.f32.mrf.mxu0
        %v836 = vadd.f32 %v549, %v835
        %837 = vdwg.mxu0
        %v838 = vmax.f32 %v834, 0.0
        %v839 = vmax.f32 %v836, 0.0
        %v840 = vld [vmem:[%s421] sm:$0xf]
        %v841 = vld [vmem:[%s421 + $0x4] sm:$0xf]
        %v844 = vunpack.c.l.b16 %v840
        %v845 = vunpack.c.l.b16 %v841
        %v846 = vpack.c.b16 %v845, %v844
        %848 = vmatpush.bf16.msra.mxu0 %v686
        %849 = vmatpush.bf16.msra.mxu0 %v685
        %850 = vmatpush.bf16.msra.mxu0 %v684
        %851 = vmatpush.bf16.msra.mxu0 %v683
        %852 = vmatpush.bf16.msra.mxu0 %v682
        %853 = vmatpush.bf16.msra.mxu0 %v681
        %854 = vmatpush.bf16.msra.mxu0 %v680
        %855 = vmatpush.bf16.msra.mxu0 %v679
        %856 = vmatmul.bf16.gmra.mxu0 %v846
        %v857 = vpop.f32.mrf.mxu0
        %v858 = vadd.f32 %v549, %v857
        %v859 = vpop.f32.mrf.mxu0
        %v860 = vadd.f32 %v549, %v859
        %861 = vdwg.mxu0
        %v862 = vmax.f32 %v858, 0.0
        %v863 = vmax.f32 %v860, 0.0
        %s864 = smul.u32 %s34, 16
        %s865 = ssub.s32 %s864, 1
        %p866 = scmp.ge.s32.totalorder %s865, 0
        %s867 = scalar_select %p866, 1, 0
        %s868 = scvt.s32.f32 %s867
        %v869 = vstv %s868
        %v870 = vmul.f32 %v838, %v869
        %v871 = vmul.f32 %v839, %v869
        %s872 = sadd.s32 %s34, 1
        %s873 = smul.u32 %s872, 16
        %p874 = scmp.lt.s32.totalorder %s873, 16
        %s875 = scalar_select %p874, 1, 0
        %s876 = scvt.s32.f32 %s875
        %v877 = vstv %s876
        %v878 = vmul.f32 %v862, %v877
        %v879 = vmul.f32 %v863, %v877
        %v880 = vlaneseq
        %v881 = vshrl.u32 %v880, 7
        %v882 = vadd.s32 %v881, 8
        %vm883 = vcmp.ge.s32.totalorder %v881, 1
        %vm884 = vcmp.ge.s32.totalorder %v882, 1
        %v885 = vrot.slane %v870, 7
        %v886 = vrot.slane %v784, 7
        %v887 = vrot.slane %v786, 7
        %v888 = vrot.slane %v788, 7
        %v889 = vrot.slane %v790, 7
        %v890 = vrot.slane %v792, 7
        %v891 = vrot.slane %v794, 7
        %v892 = vrot.slane %v796, 7
        %v893 = vrot.slane %v798, 7
        %v894 = vrot.slane %v800, 7
        %v895 = vrot.slane %v802, 7
        %v896 = vrot.slane %v804, 7
        %v897 = vrot.slane %v806, 7
        %v898 = vrot.slane %v808, 7
        %v899 = vrot.slane %v810, 7
        %v900 = vrot.slane %v812, 7
        %v901 = vrot.slane %v814, 7
        %v902 = vrot.slane %v878, 7
        %v903 = vrot.slane %v871, 7
        %v904 = vrot.slane %v785, 7
        %v905 = vrot.slane %v787, 7
        %v906 = vrot.slane %v789, 7
        %v907 = vrot.slane %v791, 7
        %v908 = vrot.slane %v793, 7
        %v909 = vrot.slane %v795, 7
        %v910 = vrot.slane %v797, 7
        %v911 = vrot.slane %v799, 7
        %v912 = vrot.slane %v801, 7
        %v913 = vrot.slane %v803, 7
        %v914 = vrot.slane %v805, 7
        %v915 = vrot.slane %v807, 7
        %v916 = vrot.slane %v809, 7
        %v917 = vrot.slane %v811, 7
        %v918 = vrot.slane %v813, 7
        %v919 = vrot.slane %v815, 7
        %v920 = vrot.slane %v879, 7
        %vm921 = vcmp.lt.s32.totalorder %v881, 1
        %v922 = vsel %vm921, %v885, %v903
        %v923 = vsel %vm921, %v886, %v904
        %v924 = vsel %vm921, %v887, %v905
        %v925 = vsel %vm921, %v888, %v906
        %v926 = vsel %vm921, %v889, %v907
        %v927 = vsel %vm921, %v890, %v908
        %v928 = vsel %vm921, %v891, %v909
        %v929 = vsel %vm921, %v892, %v910
        %v930 = vsel %vm921, %v893, %v911
        %v931 = vsel %vm921, %v894, %v912
        %v932 = vsel %vm921, %v895, %v913
        %v933 = vsel %vm921, %v896, %v914
        %v934 = vsel %vm921, %v897, %v915
        %v935 = vsel %vm921, %v898, %v916
        %v936 = vsel %vm921, %v899, %v917
        %v937 = vsel %vm921, %v900, %v918
        %v938 = vsel %vm921, %v901, %v919
        %v939 = vsel %vm921, %v902, %v920
        %v940 = vsel %vm921, %v903, %v885
        %v941 = vsel %vm921, %v904, %v886
        %v942 = vsel %vm921, %v905, %v887
        %v943 = vsel %vm921, %v906, %v888
        %v944 = vsel %vm921, %v907, %v889
        %v945 = vsel %vm921, %v908, %v890
        %v946 = vsel %vm921, %v909, %v891
        %v947 = vsel %vm921, %v910, %v892
        %v948 = vsel %vm921, %v911, %v893
        %v949 = vsel %vm921, %v912, %v894
        %v950 = vsel %vm921, %v913, %v895
        %v951 = vsel %vm921, %v914, %v896
        %v952 = vsel %vm921, %v915, %v897
        %v953 = vsel %vm921, %v916, %v898
        %v954 = vsel %vm921, %v917, %v899
        %v955 = vsel %vm921, %v918, %v900
        %v956 = vsel %vm921, %v919, %v901
        %v957 = vsel %vm921, %v920, %v902
        %v958 = vsel %vm883, 1, 0
        %v959 = vsel %vm884, 1, 0
        %vm960 = vcmp.eq.s32.totalorder %v958, 1
        %vm961 = vcmp.eq.s32.totalorder %v959, 1
        %v962 = vsel %vm960, %v940, 0.0
        %v963 = vsel %vm961, %v922, 0.0
        %v964 = vsel %vm960, %v941, 0.0
        %v965 = vsel %vm961, %v923, 0.0
        %v966 = vsel %vm960, %v942, 0.0
        %v967 = vsel %vm961, %v924, 0.0
        %v968 = vsel %vm960, %v943, 0.0
        %v969 = vsel %vm961, %v925, 0.0
        %v970 = vsel %vm960, %v944, 0.0
        %v971 = vsel %vm961, %v926, 0.0
        %v972 = vsel %vm960, %v945, 0.0
        %v973 = vsel %vm961, %v927, 0.0
        %v974 = vsel %vm960, %v946, 0.0
        %v975 = vsel %vm961, %v928, 0.0
        %v976 = vsel %vm960, %v947, 0.0
        %v977 = vsel %vm961, %v929, 0.0
        %v978 = vsel %vm960, %v948, 0.0
        %v979 = vsel %vm961, %v930, 0.0
        %v980 = vsel %vm960, %v949, 0.0
        %v981 = vsel %vm961, %v931, 0.0
        %v982 = vsel %vm960, %v950, 0.0
        %v983 = vsel %vm961, %v932, 0.0
        %v984 = vsel %vm960, %v951, 0.0
        %v985 = vsel %vm961, %v933, 0.0
        %v986 = vsel %vm960, %v952, 0.0
        %v987 = vsel %vm961, %v934, 0.0
        %v988 = vsel %vm960, %v953, 0.0
        %v989 = vsel %vm961, %v935, 0.0
        %v990 = vsel %vm960, %v954, 0.0
        %v991 = vsel %vm961, %v936, 0.0
        %v992 = vsel %vm960, %v955, 0.0
        %v993 = vsel %vm961, %v937, 0.0
        %v994 = vsel %vm960, %v956, 0.0
        %v995 = vsel %vm961, %v938, 0.0
        %v996 = vsel %vm960, %v957, 0.0
        %v997 = vsel %vm961, %v939, 0.0
        %vm998 = vcmp.lt.s32.totalorder %v881, 15
        %vm999 = vcmp.lt.s32.totalorder %v882, 15
        %v1000 = vrot.slane %v870, 1
        %v1001 = vrot.slane %v784, 1
        %v1002 = vrot.slane %v786, 1
        %v1003 = vrot.slane %v788, 1
        %v1004 = vrot.slane %v790, 1
        %v1005 = vrot.slane %v792, 1
        %v1006 = vrot.slane %v794, 1
        %v1007 = vrot.slane %v796, 1
        %v1008 = vrot.slane %v798, 1
        %v1009 = vrot.slane %v800, 1
        %v1010 = vrot.slane %v802, 1
        %v1011 = vrot.slane %v804, 1
        %v1012 = vrot.slane %v806, 1
        %v1013 = vrot.slane %v808, 1
        %v1014 = vrot.slane %v810, 1
        %v1015 = vrot.slane %v812, 1
        %v1016 = vrot.slane %v814, 1
        %v1017 = vrot.slane %v878, 1
        %v1018 = vrot.slane %v871, 1
        %v1019 = vrot.slane %v785, 1
        %v1020 = vrot.slane %v787, 1
        %v1021 = vrot.slane %v789, 1
        %v1022 = vrot.slane %v791, 1
        %v1023 = vrot.slane %v793, 1
        %v1024 = vrot.slane %v795, 1
        %v1025 = vrot.slane %v797, 1
        %v1026 = vrot.slane %v799, 1
        %v1027 = vrot.slane %v801, 1
        %v1028 = vrot.slane %v803, 1
        %v1029 = vrot.slane %v805, 1
        %v1030 = vrot.slane %v807, 1
        %v1031 = vrot.slane %v809, 1
        %v1032 = vrot.slane %v811, 1
        %v1033 = vrot.slane %v813, 1
        %v1034 = vrot.slane %v815, 1
        %v1035 = vrot.slane %v879, 1
        %vm1036 = vcmp.lt.s32.totalorder %v881, 7
        %v1037 = vsel %vm1036, %v1000, %v1018
        %v1038 = vsel %vm1036, %v1001, %v1019
        %v1039 = vsel %vm1036, %v1002, %v1020
        %v1040 = vsel %vm1036, %v1003, %v1021
        %v1041 = vsel %vm1036, %v1004, %v1022
        %v1042 = vsel %vm1036, %v1005, %v1023
        %v1043 = vsel %vm1036, %v1006, %v1024
        %v1044 = vsel %vm1036, %v1007, %v1025
        %v1045 = vsel %vm1036, %v1008, %v1026
        %v1046 = vsel %vm1036, %v1009, %v1027
        %v1047 = vsel %vm1036, %v1010, %v1028
        %v1048 = vsel %vm1036, %v1011, %v1029
        %v1049 = vsel %vm1036, %v1012, %v1030
        %v1050 = vsel %vm1036, %v1013, %v1031
        %v1051 = vsel %vm1036, %v1014, %v1032
        %v1052 = vsel %vm1036, %v1015, %v1033
        %v1053 = vsel %vm1036, %v1016, %v1034
        %v1054 = vsel %vm1036, %v1017, %v1035
        %v1055 = vsel %vm1036, %v1018, %v1000
        %v1056 = vsel %vm1036, %v1019, %v1001
        %v1057 = vsel %vm1036, %v1020, %v1002
        %v1058 = vsel %vm1036, %v1021, %v1003
        %v1059 = vsel %vm1036, %v1022, %v1004
        %v1060 = vsel %vm1036, %v1023, %v1005
        %v1061 = vsel %vm1036, %v1024, %v1006
        %v1062 = vsel %vm1036, %v1025, %v1007
        %v1063 = vsel %vm1036, %v1026, %v1008
        %v1064 = vsel %vm1036, %v1027, %v1009
        %v1065 = vsel %vm1036, %v1028, %v1010
        %v1066 = vsel %vm1036, %v1029, %v1011
        %v1067 = vsel %vm1036, %v1030, %v1012
        %v1068 = vsel %vm1036, %v1031, %v1013
        %v1069 = vsel %vm1036, %v1032, %v1014
        %v1070 = vsel %vm1036, %v1033, %v1015
        %v1071 = vsel %vm1036, %v1034, %v1016
        %v1072 = vsel %vm1036, %v1035, %v1017
        %v1073 = vsel %vm998, 1, 0
        %v1074 = vsel %vm999, 1, 0
        %vm1075 = vcmp.eq.s32.totalorder %v1073, 1
        %vm1076 = vcmp.eq.s32.totalorder %v1074, 1
        %v1077 = vsel %vm1075, %v1037, 0.0
        %v1078 = vsel %vm1076, %v1055, 0.0
        %v1079 = vsel %vm1075, %v1038, 0.0
        %v1080 = vsel %vm1076, %v1056, 0.0
        %v1081 = vsel %vm1075, %v1039, 0.0
        %v1082 = vsel %vm1076, %v1057, 0.0
        %v1083 = vsel %vm1075, %v1040, 0.0
        %v1084 = vsel %vm1076, %v1058, 0.0
        %v1085 = vsel %vm1075, %v1041, 0.0
        %v1086 = vsel %vm1076, %v1059, 0.0
        %v1087 = vsel %vm1075, %v1042, 0.0
        %v1088 = vsel %vm1076, %v1060, 0.0
        %v1089 = vsel %vm1075, %v1043, 0.0
        %v1090 = vsel %vm1076, %v1061, 0.0
        %v1091 = vsel %vm1075, %v1044, 0.0
        %v1092 = vsel %vm1076, %v1062, 0.0
        %v1093 = vsel %vm1075, %v1045, 0.0
        %v1094 = vsel %vm1076, %v1063, 0.0
        %v1095 = vsel %vm1075, %v1046, 0.0
        %v1096 = vsel %vm1076, %v1064, 0.0
        %v1097 = vsel %vm1075, %v1047, 0.0
        %v1098 = vsel %vm1076, %v1065, 0.0
        %v1099 = vsel %vm1075, %v1048, 0.0
        %v1100 = vsel %vm1076, %v1066, 0.0
        %v1101 = vsel %vm1075, %v1049, 0.0
        %v1102 = vsel %vm1076, %v1067, 0.0
        %v1103 = vsel %vm1075, %v1050, 0.0
        %v1104 = vsel %vm1076, %v1068, 0.0
        %v1105 = vsel %vm1075, %v1051, 0.0
        %v1106 = vsel %vm1076, %v1069, 0.0
        %v1107 = vsel %vm1075, %v1052, 0.0
        %v1108 = vsel %vm1076, %v1070, 0.0
        %v1109 = vsel %vm1075, %v1053, 0.0
        %v1110 = vsel %vm1076, %v1071, 0.0
        %v1111 = vsel %vm1075, %v1054, 0.0
        %v1112 = vsel %vm1076, %v1072, 0.0
        %1149 = vrot.lane.b32.xlu0 %v870, 32
        %v1150 = vpop.permute.xlu0 %1149
        %1151 = vrot.lane.b32.xlu0 %v871, 32
        %v1152 = vpop.permute.xlu0 %1151
        %1153 = vrot.lane.b32.xlu0 %v784, 32
        %v1154 = vpop.permute.xlu0 %1153
        %1155 = vrot.lane.b32.xlu0 %v785, 32
        %v1156 = vpop.permute.xlu0 %1155
        %1157 = vrot.lane.b32.xlu0 %v786, 32
        %v1158 = vpop.permute.xlu0 %1157
        %1159 = vrot.lane.b32.xlu0 %v787, 32
        %v1160 = vpop.permute.xlu0 %1159
        %1161 = vrot.lane.b32.xlu0 %v788, 32
        %v1162 = vpop.permute.xlu0 %1161
        %1163 = vrot.lane.b32.xlu0 %v789, 32
        %v1164 = vpop.permute.xlu0 %1163
        %1165 = vrot.lane.b32.xlu0 %v790, 32
        %v1166 = vpop.permute.xlu0 %1165
        %1167 = vrot.lane.b32.xlu0 %v791, 32
        %v1168 = vpop.permute.xlu0 %1167
        %1169 = vrot.lane.b32.xlu0 %v792, 32
        %v1170 = vpop.permute.xlu0 %1169
        %1171 = vrot.lane.b32.xlu0 %v793, 32
        %v1172 = vpop.permute.xlu0 %1171
        %1173 = vrot.lane.b32.xlu0 %v794, 32
        %v1174 = vpop.permute.xlu0 %1173
        %1175 = vrot.lane.b32.xlu0 %v795, 32
        %v1176 = vpop.permute.xlu0 %1175
        %1177 = vrot.lane.b32.xlu0 %v796, 32
        %v1178 = vpop.permute.xlu0 %1177
        %1179 = vrot.lane.b32.xlu0 %v797, 32
        %v1180 = vpop.permute.xlu0 %1179
        %1181 = vrot.lane.b32.xlu0 %v798, 32
        %v1182 = vpop.permute.xlu0 %1181
        %1183 = vrot.lane.b32.xlu0 %v799, 32
        %v1184 = vpop.permute.xlu0 %1183
        %1185 = vrot.lane.b32.xlu0 %v800, 32
        %v1186 = vpop.permute.xlu0 %1185
        %1187 = vrot.lane.b32.xlu0 %v801, 32
        %v1188 = vpop.permute.xlu0 %1187
        %1189 = vrot.lane.b32.xlu0 %v802, 32
        %v1190 = vpop.permute.xlu0 %1189
        %1191 = vrot.lane.b32.xlu0 %v803, 32
        %v1192 = vpop.permute.xlu0 %1191
        %1193 = vrot.lane.b32.xlu0 %v804, 32
        %v1194 = vpop.permute.xlu0 %1193
        %1195 = vrot.lane.b32.xlu0 %v805, 32
        %v1196 = vpop.permute.xlu0 %1195
        %1197 = vrot.lane.b32.xlu0 %v806, 32
        %v1198 = vpop.permute.xlu0 %1197
        %1199 = vrot.lane.b32.xlu0 %v807, 32
        %v1200 = vpop.permute.xlu0 %1199
        %1201 = vrot.lane.b32.xlu0 %v808, 32
        %v1202 = vpop.permute.xlu0 %1201
        %1203 = vrot.lane.b32.xlu0 %v809, 32
        %v1204 = vpop.permute.xlu0 %1203
        %1205 = vrot.lane.b32.xlu0 %v810, 32
        %v1206 = vpop.permute.xlu0 %1205
        %1207 = vrot.lane.b32.xlu0 %v811, 32
        %v1208 = vpop.permute.xlu0 %1207
        %1209 = vrot.lane.b32.xlu0 %v812, 32
        %v1210 = vpop.permute.xlu0 %1209
        %1211 = vrot.lane.b32.xlu0 %v813, 32
        %v1212 = vpop.permute.xlu0 %1211
        %1213 = vrot.lane.b32.xlu0 %v814, 32
        %v1214 = vpop.permute.xlu0 %1213
        %1215 = vrot.lane.b32.xlu0 %v815, 32
        %v1216 = vpop.permute.xlu0 %1215
        %1217 = vrot.lane.b32.xlu0 %v878, 32
        %v1218 = vpop.permute.xlu0 %1217
        %1219 = vrot.lane.b32.xlu0 %v879, 32
        %v1220 = vpop.permute.xlu0 %1219
        %1293 = vrot.lane.b32.xlu0 %v1077, 64
        %v1294 = vpop.permute.xlu0 %1293
        %1295 = vrot.lane.b32.xlu0 %v1078, 64
        %v1296 = vpop.permute.xlu0 %1295
        %1297 = vrot.lane.b32.xlu0 %v1079, 64
        %v1298 = vpop.permute.xlu0 %1297
        %1299 = vrot.lane.b32.xlu0 %v1080, 64
        %v1300 = vpop.permute.xlu0 %1299
        %1301 = vrot.lane.b32.xlu0 %v1081, 64
        %v1302 = vpop.permute.xlu0 %1301
        %1303 = vrot.lane.b32.xlu0 %v1082, 64
        %v1304 = vpop.permute.xlu0 %1303
        %1305 = vrot.lane.b32.xlu0 %v1083, 64
        %v1306 = vpop.permute.xlu0 %1305
        %1307 = vrot.lane.b32.xlu0 %v1084, 64
        %v1308 = vpop.permute.xlu0 %1307
        %1309 = vrot.lane.b32.xlu0 %v1085, 64
        %v1310 = vpop.permute.xlu0 %1309
        %1311 = vrot.lane.b32.xlu0 %v1086, 64
        %v1312 = vpop.permute.xlu0 %1311
        %1313 = vrot.lane.b32.xlu0 %v1087, 64
        %v1314 = vpop.permute.xlu0 %1313
        %1315 = vrot.lane.b32.xlu0 %v1088, 64
        %v1316 = vpop.permute.xlu0 %1315
        %1317 = vrot.lane.b32.xlu0 %v1089, 64
        %v1318 = vpop.permute.xlu0 %1317
        %1319 = vrot.lane.b32.xlu0 %v1090, 64
        %v1320 = vpop.permute.xlu0 %1319
        %1321 = vrot.lane.b32.xlu0 %v1091, 64
        %v1322 = vpop.permute.xlu0 %1321
        %1323 = vrot.lane.b32.xlu0 %v1092, 64
        %v1324 = vpop.permute.xlu0 %1323
        %1325 = vrot.lane.b32.xlu0 %v1093, 64
        %v1326 = vpop.permute.xlu0 %1325
        %1327 = vrot.lane.b32.xlu0 %v1094, 64
        %v1328 = vpop.permute.xlu0 %1327
        %1329 = vrot.lane.b32.xlu0 %v1095, 64
        %v1330 = vpop.permute.xlu0 %1329
        %1331 = vrot.lane.b32.xlu0 %v1096, 64
        %v1332 = vpop.permute.xlu0 %1331
        %1333 = vrot.lane.b32.xlu0 %v1097, 64
        %v1334 = vpop.permute.xlu0 %1333
        %1335 = vrot.lane.b32.xlu0 %v1098, 64
        %v1336 = vpop.permute.xlu0 %1335
        %1337 = vrot.lane.b32.xlu0 %v1099, 64
        %v1338 = vpop.permute.xlu0 %1337
        %1339 = vrot.lane.b32.xlu0 %v1100, 64
        %v1340 = vpop.permute.xlu0 %1339
        %1341 = vrot.lane.b32.xlu0 %v1101, 64
        %v1342 = vpop.permute.xlu0 %1341
        %1343 = vrot.lane.b32.xlu0 %v1102, 64
        %v1344 = vpop.permute.xlu0 %1343
        %1345 = vrot.lane.b32.xlu0 %v1103, 64
        %v1346 = vpop.permute.xlu0 %1345
        %1347 = vrot.lane.b32.xlu0 %v1104, 64
        %v1348 = vpop.permute.xlu0 %1347
        %1349 = vrot.lane.b32.xlu0 %v1105, 64
        %v1350 = vpop.permute.xlu0 %1349
        %1351 = vrot.lane.b32.xlu0 %v1106, 64
        %v1352 = vpop.permute.xlu0 %1351
        %1353 = vrot.lane.b32.xlu0 %v1107, 64
        %v1354 = vpop.permute.xlu0 %1353
        %1355 = vrot.lane.b32.xlu0 %v1108, 64
        %v1356 = vpop.permute.xlu0 %1355
        %1357 = vrot.lane.b32.xlu0 %v1109, 64
        %v1358 = vpop.permute.xlu0 %1357
        %1359 = vrot.lane.b32.xlu0 %v1110, 64
        %v1360 = vpop.permute.xlu0 %1359
        %1361 = vrot.lane.b32.xlu0 %v1111, 64
        %v1362 = vpop.permute.xlu0 %1361
        %1363 = vrot.lane.b32.xlu0 %v1112, 64
        %v1364 = vpop.permute.xlu0 %1363
        %vm1401 = vcmask 261120
        %v1402 = vsel %vm1401, %v962, %v1150
        %v1403 = vsel %vm1401, %v963, %v1152
        %v1404 = vsel %vm1401, %v964, %v1154
        %v1405 = vsel %vm1401, %v965, %v1156
        %v1406 = vsel %vm1401, %v966, %v1158
        %v1407 = vsel %vm1401, %v967, %v1160
        %v1408 = vsel %vm1401, %v968, %v1162
        %v1409 = vsel %vm1401, %v969, %v1164
        %v1410 = vsel %vm1401, %v970, %v1166
        %v1411 = vsel %vm1401, %v971, %v1168
        %v1412 = vsel %vm1401, %v972, %v1170
        %v1413 = vsel %vm1401, %v973, %v1172
        %v1414 = vsel %vm1401, %v974, %v1174
        %v1415 = vsel %vm1401, %v975, %v1176
        %v1416 = vsel %vm1401, %v976, %v1178
        %v1417 = vsel %vm1401, %v977, %v1180
        %v1418 = vsel %vm1401, %v978, %v1182
        %v1419 = vsel %vm1401, %v979, %v1184
        %v1420 = vsel %vm1401, %v980, %v1186
        %v1421 = vsel %vm1401, %v981, %v1188
        %v1422 = vsel %vm1401, %v982, %v1190
        %v1423 = vsel %vm1401, %v983, %v1192
        %v1424 = vsel %vm1401, %v984, %v1194
        %v1425 = vsel %vm1401, %v985, %v1196
        %v1426 = vsel %vm1401, %v986, %v1198
        %v1427 = vsel %vm1401, %v987, %v1200
        %v1428 = vsel %vm1401, %v988, %v1202
        %v1429 = vsel %vm1401, %v989, %v1204
        %v1430 = vsel %vm1401, %v990, %v1206
        %v1431 = vsel %vm1401, %v991, %v1208
        %v1432 = vsel %vm1401, %v992, %v1210
        %v1433 = vsel %vm1401, %v993, %v1212
        %v1434 = vsel %vm1401, %v994, %v1214
        %v1435 = vsel %vm1401, %v995, %v1216
        %v1436 = vsel %vm1401, %v996, %v1218
        %v1437 = vsel %vm1401, %v997, %v1220
        %vm1438 = vcmask 523264
        %v1439 = vsel %vm1438, %v1402, %v1294
        %v1440 = vsel %vm1438, %v1403, %v1296
        %v1441 = vsel %vm1438, %v1404, %v1298
        %v1442 = vsel %vm1438, %v1405, %v1300
        %v1443 = vsel %vm1438, %v1406, %v1302
        %v1444 = vsel %vm1438, %v1407, %v1304
        %v1445 = vsel %vm1438, %v1408, %v1306
        %v1446 = vsel %vm1438, %v1409, %v1308
        %v1447 = vsel %vm1438, %v1410, %v1310
        %v1448 = vsel %vm1438, %v1411, %v1312
        %v1449 = vsel %vm1438, %v1412, %v1314
        %v1450 = vsel %vm1438, %v1413, %v1316
        %v1451 = vsel %vm1438, %v1414, %v1318
        %v1452 = vsel %vm1438, %v1415, %v1320
        %v1453 = vsel %vm1438, %v1416, %v1322
        %v1454 = vsel %vm1438, %v1417, %v1324
        %v1455 = vsel %vm1438, %v1418, %v1326
        %v1456 = vsel %vm1438, %v1419, %v1328
        %v1457 = vsel %vm1438, %v1420, %v1330
        %v1458 = vsel %vm1438, %v1421, %v1332
        %v1459 = vsel %vm1438, %v1422, %v1334
        %v1460 = vsel %vm1438, %v1423, %v1336
        %v1461 = vsel %vm1438, %v1424, %v1338
        %v1462 = vsel %vm1438, %v1425, %v1340
        %v1463 = vsel %vm1438, %v1426, %v1342
        %v1464 = vsel %vm1438, %v1427, %v1344
        %v1465 = vsel %vm1438, %v1428, %v1346
        %v1466 = vsel %vm1438, %v1429, %v1348
        %v1467 = vsel %vm1438, %v1430, %v1350
        %v1468 = vsel %vm1438, %v1431, %v1352
        %v1469 = vsel %vm1438, %v1432, %v1354
        %v1470 = vsel %vm1438, %v1433, %v1356
        %v1471 = vsel %vm1438, %v1434, %v1358
        %v1472 = vsel %vm1438, %v1435, %v1360
        %v1473 = vsel %vm1438, %v1436, %v1362
        %v1474 = vsel %vm1438, %v1437, %v1364
        %v1475 = vpack.c.bf16 %v1439, %v1439
        %v1476 = vpack.c.bf16 %v1440, %v1440
        %v1477 = vpack.c.bf16 %v1441, %v1441
        %v1478 = vpack.c.bf16 %v1442, %v1442
        %v1479 = vpack.c.bf16 %v1443, %v1443
        %v1480 = vpack.c.bf16 %v1444, %v1444
        %v1481 = vpack.c.bf16 %v1445, %v1445
        %v1482 = vpack.c.bf16 %v1446, %v1446
        %v1483 = vpack.c.bf16 %v1447, %v1447
        %v1484 = vpack.c.bf16 %v1448, %v1448
        %v1485 = vpack.c.bf16 %v1449, %v1449
        %v1486 = vpack.c.bf16 %v1450, %v1450
        %v1487 = vpack.c.bf16 %v1451, %v1451
        %v1488 = vpack.c.bf16 %v1452, %v1452
        %v1489 = vpack.c.bf16 %v1453, %v1453
        %v1490 = vpack.c.bf16 %v1454, %v1454
        %v1491 = vpack.c.bf16 %v1455, %v1455
        %v1492 = vpack.c.bf16 %v1456, %v1456
        %v1493 = vpack.c.bf16 %v1457, %v1457
        %v1494 = vpack.c.bf16 %v1458, %v1458
        %v1495 = vpack.c.bf16 %v1459, %v1459
        %v1496 = vpack.c.bf16 %v1460, %v1460
        %v1497 = vpack.c.bf16 %v1461, %v1461
        %v1498 = vpack.c.bf16 %v1462, %v1462
        %v1499 = vpack.c.bf16 %v1463, %v1463
        %v1500 = vpack.c.bf16 %v1464, %v1464
        %v1501 = vpack.c.bf16 %v1465, %v1465
        %v1502 = vpack.c.bf16 %v1466, %v1466
        %v1503 = vpack.c.bf16 %v1467, %v1467
        %v1504 = vpack.c.bf16 %v1468, %v1468
        %v1505 = vpack.c.bf16 %v1469, %v1469
        %v1506 = vpack.c.bf16 %v1470, %v1470
        %v1507 = vpack.c.bf16 %v1471, %v1471
        %v1508 = vpack.c.bf16 %v1472, %v1472
        %v1509 = vpack.c.bf16 %v1473, %v1473
        %v1510 = vpack.c.bf16 %v1474, %v1474
        %v1543 = vunpack.c.l.b16 %v1475
        %v1544 = vunpack.c.l.b16 %v1476
        %v1545 = vunpack.c.l.b16 %v1477
        %v1546 = vunpack.c.l.b16 %v1478
        %v1547 = vunpack.c.l.b16 %v1479
        %v1548 = vunpack.c.l.b16 %v1480
        %v1549 = vunpack.c.l.b16 %v1481
        %v1550 = vunpack.c.l.b16 %v1482
        %v1551 = vunpack.c.l.b16 %v1483
        %v1552 = vunpack.c.l.b16 %v1484
        %v1553 = vunpack.c.l.b16 %v1485
        %v1554 = vunpack.c.l.b16 %v1486
        %v1555 = vunpack.c.l.b16 %v1487
        %v1556 = vunpack.c.l.b16 %v1488
        %v1557 = vunpack.c.l.b16 %v1489
        %v1558 = vunpack.c.l.b16 %v1490
        %v1559 = vunpack.c.l.b16 %v1491
        %v1560 = vunpack.c.l.b16 %v1492
        %v1561 = vunpack.c.l.b16 %v1493
        %v1562 = vunpack.c.l.b16 %v1494
        %v1563 = vunpack.c.l.b16 %v1495
        %v1564 = vunpack.c.l.b16 %v1496
        %v1565 = vunpack.c.l.b16 %v1497
        %v1566 = vunpack.c.l.b16 %v1498
        %v1567 = vunpack.c.l.b16 %v1499
        %v1568 = vunpack.c.l.b16 %v1500
        %v1569 = vunpack.c.l.b16 %v1501
        %v1570 = vunpack.c.l.b16 %v1502
        %v1571 = vunpack.c.l.b16 %v1503
        %v1572 = vunpack.c.l.b16 %v1504
        %v1573 = vunpack.c.l.b16 %v1505
        %v1574 = vunpack.c.l.b16 %v1506
        %v1575 = vpack.c.b16 %v1544, %v1543
        %v1576 = vpack.c.b16 %v1546, %v1545
        %v1577 = vpack.c.b16 %v1548, %v1547
        %v1578 = vpack.c.b16 %v1550, %v1549
        %v1579 = vpack.c.b16 %v1552, %v1551
        %v1580 = vpack.c.b16 %v1554, %v1553
        %v1581 = vpack.c.b16 %v1556, %v1555
        %v1582 = vpack.c.b16 %v1558, %v1557
        %v1583 = vpack.c.b16 %v1560, %v1559
        %v1584 = vpack.c.b16 %v1562, %v1561
        %v1585 = vpack.c.b16 %v1564, %v1563
        %v1586 = vpack.c.b16 %v1566, %v1565
        %v1587 = vpack.c.b16 %v1568, %v1567
        %v1588 = vpack.c.b16 %v1570, %v1569
        %v1589 = vpack.c.b16 %v1572, %v1571
        %v1590 = vpack.c.b16 %v1574, %v1573
        %v1593 = vunpack.c.l.b16 %v1507
        %v1594 = vunpack.c.l.b16 %v1508
        %v1595 = vpack.c.b16 %v1594, %v1593
        %1596 = vrot.lane.b32.xlu0 %v1576, 96
        %v1597 = vpop.permute.xlu0 %1596
        %1598 = vrot.lane.b32.xlu0 %v1577, 96
        %v1599 = vpop.permute.xlu0 %1598
        %1600 = vrot.lane.b32.xlu0 %v1578, 96
        %v1601 = vpop.permute.xlu0 %1600
        %1602 = vrot.lane.b32.xlu0 %v1579, 96
        %v1603 = vpop.permute.xlu0 %1602
        %1604 = vrot.lane.b32.xlu0 %v1580, 96
        %v1605 = vpop.permute.xlu0 %1604
        %1606 = vrot.lane.b32.xlu0 %v1581, 96
        %v1607 = vpop.permute.xlu0 %1606
        %1608 = vrot.lane.b32.xlu0 %v1582, 96
        %v1609 = vpop.permute.xlu0 %1608
        %1610 = vrot.lane.b32.xlu0 %v1583, 96
        %v1611 = vpop.permute.xlu0 %1610
        %1612 = vrot.lane.b32.xlu0 %v1584, 96
        %v1613 = vpop.permute.xlu0 %1612
        %1614 = vrot.lane.b32.xlu0 %v1585, 96
        %v1615 = vpop.permute.xlu0 %1614
        %1616 = vrot.lane.b32.xlu0 %v1586, 96
        %v1617 = vpop.permute.xlu0 %1616
        %1618 = vrot.lane.b32.xlu0 %v1587, 96
        %v1619 = vpop.permute.xlu0 %1618
        %1620 = vrot.lane.b32.xlu0 %v1588, 96
        %v1621 = vpop.permute.xlu0 %1620
        %1622 = vrot.lane.b32.xlu0 %v1589, 96
        %v1623 = vpop.permute.xlu0 %1622
        %1624 = vrot.lane.b32.xlu0 %v1590, 96
        %v1625 = vpop.permute.xlu0 %1624
        %1626 = vrot.lane.b32.xlu0 %v1595, 96
        %v1627 = vpop.permute.xlu0 %1626
        %v1630 = vunpack.c.l.b16 %v1509
        %v1631 = vunpack.c.l.b16 %v1510
        %v1632 = vpack.c.b16 %v1631, %v1630
        %1633 = vrot.lane.b32.xlu0 %v1577, 64
        %v1634 = vpop.permute.xlu0 %1633
        %1635 = vrot.lane.b32.xlu0 %v1578, 64
        %v1636 = vpop.permute.xlu0 %1635
        %1637 = vrot.lane.b32.xlu0 %v1579, 64
        %v1638 = vpop.permute.xlu0 %1637
        %1639 = vrot.lane.b32.xlu0 %v1580, 64
        %v1640 = vpop.permute.xlu0 %1639
        %1641 = vrot.lane.b32.xlu0 %v1581, 64
        %v1642 = vpop.permute.xlu0 %1641
        %1643 = vrot.lane.b32.xlu0 %v1582, 64
        %v1644 = vpop.permute.xlu0 %1643
        %1645 = vrot.lane.b32.xlu0 %v1583, 64
        %v1646 = vpop.permute.xlu0 %1645
        %1647 = vrot.lane.b32.xlu0 %v1584, 64
        %v1648 = vpop.permute.xlu0 %1647
        %1649 = vrot.lane.b32.xlu0 %v1585, 64
        %v1650 = vpop.permute.xlu0 %1649
        %1651 = vrot.lane.b32.xlu0 %v1586, 64
        %v1652 = vpop.permute.xlu0 %1651
        %1653 = vrot.lane.b32.xlu0 %v1587, 64
        %v1654 = vpop.permute.xlu0 %1653
        %1655 = vrot.lane.b32.xlu0 %v1588, 64
        %v1656 = vpop.permute.xlu0 %1655
        %1657 = vrot.lane.b32.xlu0 %v1589, 64
        %v1658 = vpop.permute.xlu0 %1657
        %1659 = vrot.lane.b32.xlu0 %v1590, 64
        %v1660 = vpop.permute.xlu0 %1659
        %1661 = vrot.lane.b32.xlu0 %v1595, 64
        %v1662 = vpop.permute.xlu0 %1661
        %1663 = vrot.lane.b32.xlu0 %v1632, 64
        %v1664 = vpop.permute.xlu0 %1663
        %vm1665 = vcmask 785408
        %v1668 = vsel %vm1665, %v1575, %v1597
        %v1672 = vsel %vm1665, %v1576, %v1599
        %v1676 = vsel %vm1665, %v1577, %v1601
        %v1680 = vsel %vm1665, %v1578, %v1603
        %v1684 = vsel %vm1665, %v1579, %v1605
        %v1688 = vsel %vm1665, %v1580, %v1607
        %v1692 = vsel %vm1665, %v1581, %v1609
        %v1696 = vsel %vm1665, %v1582, %v1611
        %v1700 = vsel %vm1665, %v1583, %v1613
        %v1704 = vsel %vm1665, %v1584, %v1615
        %v1708 = vsel %vm1665, %v1585, %v1617
        %v1712 = vsel %vm1665, %v1586, %v1619
        %v1716 = vsel %vm1665, %v1587, %v1621
        %v1720 = vsel %vm1665, %v1588, %v1623
        %v1724 = vsel %vm1665, %v1589, %v1625
        %v1728 = vsel %vm1665, %v1590, %v1627
        %v1731 = vsel %vm1438, %v1597, %v1634
        %v1734 = vsel %vm1438, %v1599, %v1636
        %v1737 = vsel %vm1438, %v1601, %v1638
        %v1740 = vsel %vm1438, %v1603, %v1640
        %v1743 = vsel %vm1438, %v1605, %v1642
        %v1746 = vsel %vm1438, %v1607, %v1644
        %v1749 = vsel %vm1438, %v1609, %v1646
        %v1752 = vsel %vm1438, %v1611, %v1648
        %v1755 = vsel %vm1438, %v1613, %v1650
        %v1758 = vsel %vm1438, %v1615, %v1652
        %v1761 = vsel %vm1438, %v1617, %v1654
        %v1764 = vsel %vm1438, %v1619, %v1656
        %v1767 = vsel %vm1438, %v1621, %v1658
        %v1770 = vsel %vm1438, %v1623, %v1660
        %v1773 = vsel %vm1438, %v1625, %v1662
        %v1776 = vsel %vm1438, %v1627, %v1664
        %v1778 = vld [vmem:[%s4] sm:$0xf]
        %v1779 = vld [vmem:[%s4 + $0x4] sm:$0xf]
        %v1780 = vld [vmem:[%s4 + $0x8] sm:$0xf]
        %v1781 = vld [vmem:[%s4 + $0xc] sm:$0xf]
        %v1782 = vld [vmem:[%s4 + $0x10] sm:$0xf]
        %v1783 = vld [vmem:[%s4 + $0x14] sm:$0xf]
        %v1784 = vld [vmem:[%s4 + $0x18] sm:$0xf]
        %v1785 = vld [vmem:[%s4 + $0x1c] sm:$0xf]
        %v1786 = vld [vmem:[%s4 + $0x20] sm:$0xf]
        %v1787 = vld [vmem:[%s4 + $0x24] sm:$0xf]
        %v1788 = vld [vmem:[%s4 + $0x28] sm:$0xf]
        %v1789 = vld [vmem:[%s4 + $0x2c] sm:$0xf]
        %v1790 = vld [vmem:[%s4 + $0x30] sm:$0xf]
        %v1791 = vld [vmem:[%s4 + $0x34] sm:$0xf]
        %v1792 = vld [vmem:[%s4 + $0x38] sm:$0xf]
        %v1793 = vld [vmem:[%s4 + $0x3c] sm:$0xf]
        %v1794 = vld [vmem:[%s4 + $0x40] sm:$0xf]
        %v1795 = vld [vmem:[%s4 + $0x44] sm:$0xf]
        %v1796 = vld [vmem:[%s4 + $0x48] sm:$0xf]
        %v1797 = vld [vmem:[%s4 + $0x4c] sm:$0xf]
        %v1798 = vld [vmem:[%s4 + $0x50] sm:$0xf]
        %v1799 = vld [vmem:[%s4 + $0x54] sm:$0xf]
        %v1800 = vld [vmem:[%s4 + $0x58] sm:$0xf]
        %v1801 = vld [vmem:[%s4 + $0x5c] sm:$0xf]
        %v1802 = vld [vmem:[%s4 + $0x60] sm:$0xf]
        %v1803 = vld [vmem:[%s4 + $0x64] sm:$0xf]
        %v1804 = vld [vmem:[%s4 + $0x68] sm:$0xf]
        %v1805 = vld [vmem:[%s4 + $0x6c] sm:$0xf]
        %v1806 = vld [vmem:[%s4 + $0x70] sm:$0xf]
        %v1807 = vld [vmem:[%s4 + $0x74] sm:$0xf]
        %v1808 = vld [vmem:[%s4 + $0x78] sm:$0xf]
        %v1809 = vld [vmem:[%s4 + $0x7c] sm:$0xf]
        %v1810 = vld [vmem:[%s4 + $0x80] sm:$0xf]
        %v1811 = vld [vmem:[%s4 + $0x84] sm:$0xf]
        %v1812 = vld [vmem:[%s4 + $0x88] sm:$0xf]
        %v1813 = vld [vmem:[%s4 + $0x8c] sm:$0xf]
        %v1814 = vld [vmem:[%s7] sm:$0x1]
        %v1816 = vperm.slane %v1814, 0
        %v1854 = vunpack.c.l.b16 %v1778
        %v1855 = vunpack.c.l.b16 %v1779
        %v1856 = vunpack.c.l.b16 %v1780
        %v1857 = vunpack.c.l.b16 %v1781
        %v1858 = vunpack.c.l.b16 %v1782
        %v1859 = vunpack.c.l.b16 %v1783
        %v1860 = vunpack.c.l.b16 %v1784
        %v1861 = vunpack.c.l.b16 %v1785
        %v1862 = vunpack.c.l.b16 %v1786
        %v1863 = vunpack.c.l.b16 %v1787
        %v1864 = vunpack.c.l.b16 %v1788
        %v1865 = vunpack.c.l.b16 %v1789
        %v1866 = vunpack.c.l.b16 %v1790
        %v1867 = vunpack.c.l.b16 %v1791
        %v1868 = vunpack.c.l.b16 %v1792
        %v1869 = vunpack.c.l.b16 %v1793
        %v1870 = vunpack.c.l.b16 %v1794
        %v1871 = vunpack.c.l.b16 %v1795
        %v1872 = vunpack.c.l.b16 %v1796
        %v1873 = vunpack.c.l.b16 %v1797
        %v1874 = vunpack.c.l.b16 %v1798
        %v1875 = vunpack.c.l.b16 %v1799
        %v1876 = vunpack.c.l.b16 %v1800
        %v1877 = vunpack.c.l.b16 %v1801
        %v1878 = vunpack.c.l.b16 %v1802
        %v1879 = vunpack.c.l.b16 %v1803
        %v1880 = vunpack.c.l.b16 %v1804
        %v1881 = vunpack.c.l.b16 %v1805
        %v1882 = vunpack.c.l.b16 %v1806
        %v1883 = vunpack.c.l.b16 %v1807
        %v1884 = vunpack.c.l.b16 %v1808
        %v1885 = vunpack.c.l.b16 %v1809
        %v1886 = vunpack.c.l.b16 %v1810
        %v1887 = vunpack.c.l.b16 %v1811
        %v1888 = vunpack.c.l.b16 %v1812
        %v1889 = vunpack.c.l.b16 %v1813
        %v1890 = vpack.c.b16 %v1855, %v1854
        %v1891 = vpack.c.b16 %v1857, %v1856
        %v1892 = vpack.c.b16 %v1859, %v1858
        %v1893 = vpack.c.b16 %v1861, %v1860
        %v1894 = vpack.c.b16 %v1863, %v1862
        %v1895 = vpack.c.b16 %v1865, %v1864
        %v1896 = vpack.c.b16 %v1867, %v1866
        %v1897 = vpack.c.b16 %v1869, %v1868
        %v1898 = vpack.c.b16 %v1871, %v1870
        %v1899 = vpack.c.b16 %v1873, %v1872
        %v1900 = vpack.c.b16 %v1875, %v1874
        %v1901 = vpack.c.b16 %v1877, %v1876
        %v1902 = vpack.c.b16 %v1879, %v1878
        %v1903 = vpack.c.b16 %v1881, %v1880
        %v1904 = vpack.c.b16 %v1883, %v1882
        %v1905 = vpack.c.b16 %v1885, %v1884
        %v1906 = vpack.c.b16 %v1887, %v1886
        %v1907 = vpack.c.b16 %v1889, %v1888
        %v1926 = vsel %vm1401, %v1634, 0
        %v1928 = vsel %vm1401, %v1636, 0
        %v1930 = vsel %vm1401, %v1638, 0
        %v1932 = vsel %vm1401, %v1640, 0
        %v1934 = vsel %vm1401, %v1642, 0
        %v1936 = vsel %vm1401, %v1644, 0
        %v1938 = vsel %vm1401, %v1646, 0
        %v1940 = vsel %vm1401, %v1648, 0
        %v1942 = vsel %vm1401, %v1650, 0
        %v1944 = vsel %vm1401, %v1652, 0
        %v1946 = vsel %vm1401, %v1654, 0
        %v1948 = vsel %vm1401, %v1656, 0
        %v1950 = vsel %vm1401, %v1658, 0
        %v1952 = vsel %vm1401, %v1660, 0
        %v1954 = vsel %vm1401, %v1662, 0
        %v1956 = vsel %vm1401, %v1664, 0
        %1958 = vmatpush.bf16.msra.mxu0 %v1897
        %1959 = vmatpush.bf16.msra.mxu0 %v1896
        %1960 = vmatpush.bf16.msra.mxu0 %v1895
        %1961 = vmatpush.bf16.msra.mxu0 %v1894
        %1962 = vmatpush.bf16.msra.mxu0 %v1893
        %1963 = vmatpush.bf16.msra.mxu0 %v1892
        %1964 = vmatpush.bf16.msra.mxu0 %v1891
        %1965 = vmatpush.bf16.msra.mxu0 %v1890
        %1966 = vmatmul.bf16.gmra.mxu0 %v1668
        %v1967 = vpop.f32.mrf.mxu0
        %v1968 = vadd.f32 %v1816, %v1967
        %v1969 = vpop.f32.mrf.mxu0
        %v1970 = vadd.f32 %v1816, %v1969
        %1971 = vmatmul.bf16.gmra.mxu0 %v1672
        %v1972 = vpop.f32.mrf.mxu0
        %v1973 = vadd.f32 %v1816, %v1972
        %v1974 = vpop.f32.mrf.mxu0
        %v1975 = vadd.f32 %v1816, %v1974
        %1976 = vmatmul.bf16.gmra.mxu0 %v1676
        %v1977 = vpop.f32.mrf.mxu0
        %v1978 = vadd.f32 %v1816, %v1977
        %v1979 = vpop.f32.mrf.mxu0
        %v1980 = vadd.f32 %v1816, %v1979
        %1981 = vmatmul.bf16.gmra.mxu0 %v1680
        %v1982 = vpop.f32.mrf.mxu0
        %v1983 = vadd.f32 %v1816, %v1982
        %v1984 = vpop.f32.mrf.mxu0
        %v1985 = vadd.f32 %v1816, %v1984
        %1986 = vmatmul.bf16.gmra.mxu0 %v1684
        %v1987 = vpop.f32.mrf.mxu0
        %v1988 = vadd.f32 %v1816, %v1987
        %v1989 = vpop.f32.mrf.mxu0
        %v1990 = vadd.f32 %v1816, %v1989
        %1991 = vmatmul.bf16.gmra.mxu0 %v1688
        %v1992 = vpop.f32.mrf.mxu0
        %v1993 = vadd.f32 %v1816, %v1992
        %v1994 = vpop.f32.mrf.mxu0
        %v1995 = vadd.f32 %v1816, %v1994
        %1996 = vmatmul.bf16.gmra.mxu0 %v1692
        %v1997 = vpop.f32.mrf.mxu0
        %v1998 = vadd.f32 %v1816, %v1997
        %v1999 = vpop.f32.mrf.mxu0
        %v2000 = vadd.f32 %v1816, %v1999
        %2001 = vmatmul.bf16.gmra.mxu0 %v1696
        %v2002 = vpop.f32.mrf.mxu0
        %v2003 = vadd.f32 %v1816, %v2002
        %v2004 = vpop.f32.mrf.mxu0
        %v2005 = vadd.f32 %v1816, %v2004
        %2006 = vmatmul.bf16.gmra.mxu0 %v1700
        %v2007 = vpop.f32.mrf.mxu0
        %v2008 = vadd.f32 %v1816, %v2007
        %v2009 = vpop.f32.mrf.mxu0
        %v2010 = vadd.f32 %v1816, %v2009
        %2011 = vmatmul.bf16.gmra.mxu0 %v1704
        %v2012 = vpop.f32.mrf.mxu0
        %v2013 = vadd.f32 %v1816, %v2012
        %v2014 = vpop.f32.mrf.mxu0
        %v2015 = vadd.f32 %v1816, %v2014
        %2016 = vmatmul.bf16.gmra.mxu0 %v1708
        %v2017 = vpop.f32.mrf.mxu0
        %v2018 = vadd.f32 %v1816, %v2017
        %v2019 = vpop.f32.mrf.mxu0
        %v2020 = vadd.f32 %v1816, %v2019
        %2021 = vmatmul.bf16.gmra.mxu0 %v1712
        %v2022 = vpop.f32.mrf.mxu0
        %v2023 = vadd.f32 %v1816, %v2022
        %v2024 = vpop.f32.mrf.mxu0
        %v2025 = vadd.f32 %v1816, %v2024
        %2026 = vmatmul.bf16.gmra.mxu0 %v1716
        %v2027 = vpop.f32.mrf.mxu0
        %v2028 = vadd.f32 %v1816, %v2027
        %v2029 = vpop.f32.mrf.mxu0
        %v2030 = vadd.f32 %v1816, %v2029
        %2031 = vmatmul.bf16.gmra.mxu0 %v1720
        %v2032 = vpop.f32.mrf.mxu0
        %v2033 = vadd.f32 %v1816, %v2032
        %v2034 = vpop.f32.mrf.mxu0
        %v2035 = vadd.f32 %v1816, %v2034
        %2036 = vmatmul.bf16.gmra.mxu0 %v1724
        %v2037 = vpop.f32.mrf.mxu0
        %v2038 = vadd.f32 %v1816, %v2037
        %v2039 = vpop.f32.mrf.mxu0
        %v2040 = vadd.f32 %v1816, %v2039
        %2041 = vmatmul.bf16.gmra.mxu0 %v1728
        %v2042 = vpop.f32.mrf.mxu0
        %v2043 = vadd.f32 %v1816, %v2042
        %v2044 = vpop.f32.mrf.mxu0
        %v2045 = vadd.f32 %v1816, %v2044
        %2046 = vdwg.mxu0
        %2047 = vmatpush.bf16.msra.mxu0 %v1905
        %2048 = vmatpush.bf16.msra.mxu0 %v1904
        %2049 = vmatpush.bf16.msra.mxu0 %v1903
        %2050 = vmatpush.bf16.msra.mxu0 %v1902
        %2051 = vmatpush.bf16.msra.mxu0 %v1901
        %2052 = vmatpush.bf16.msra.mxu0 %v1900
        %2053 = vmatpush.bf16.msra.mxu0 %v1899
        %2054 = vmatpush.bf16.msra.mxu0 %v1898
        %2055 = vmatmul.bf16.gmra.mxu0 %v1731
        %v2056 = vpop.f32.mrf.mxu0
        %v2057 = vadd.f32 %v1968, %v2056
        %v2058 = vpop.f32.mrf.mxu0
        %v2059 = vadd.f32 %v1970, %v2058
        %2060 = vmatmul.bf16.gmra.mxu0 %v1734
        %v2061 = vpop.f32.mrf.mxu0
        %v2062 = vadd.f32 %v1973, %v2061
        %v2063 = vpop.f32.mrf.mxu0
        %v2064 = vadd.f32 %v1975, %v2063
        %2065 = vmatmul.bf16.gmra.mxu0 %v1737
        %v2066 = vpop.f32.mrf.mxu0
        %v2067 = vadd.f32 %v1978, %v2066
        %v2068 = vpop.f32.mrf.mxu0
        %v2069 = vadd.f32 %v1980, %v2068
        %2070 = vmatmul.bf16.gmra.mxu0 %v1740
        %v2071 = vpop.f32.mrf.mxu0
        %v2072 = vadd.f32 %v1983, %v2071
        %v2073 = vpop.f32.mrf.mxu0
        %v2074 = vadd.f32 %v1985, %v2073
        %2075 = vmatmul.bf16.gmra.mxu0 %v1743
        %v2076 = vpop.f32.mrf.mxu0
        %v2077 = vadd.f32 %v1988, %v2076
        %v2078 = vpop.f32.mrf.mxu0
        %v2079 = vadd.f32 %v1990, %v2078
        %2080 = vmatmul.bf16.gmra.mxu0 %v1746
        %v2081 = vpop.f32.mrf.mxu0
        %v2082 = vadd.f32 %v1993, %v2081
        %v2083 = vpop.f32.mrf.mxu0
        %v2084 = vadd.f32 %v1995, %v2083
        %2085 = vmatmul.bf16.gmra.mxu0 %v1749
        %v2086 = vpop.f32.mrf.mxu0
        %v2087 = vadd.f32 %v1998, %v2086
        %v2088 = vpop.f32.mrf.mxu0
        %v2089 = vadd.f32 %v2000, %v2088
        %2090 = vmatmul.bf16.gmra.mxu0 %v1752
        %v2091 = vpop.f32.mrf.mxu0
        %v2092 = vadd.f32 %v2003, %v2091
        %v2093 = vpop.f32.mrf.mxu0
        %v2094 = vadd.f32 %v2005, %v2093
        %2095 = vmatmul.bf16.gmra.mxu0 %v1755
        %v2096 = vpop.f32.mrf.mxu0
        %v2097 = vadd.f32 %v2008, %v2096
        %v2098 = vpop.f32.mrf.mxu0
        %v2099 = vadd.f32 %v2010, %v2098
        %2100 = vmatmul.bf16.gmra.mxu0 %v1758
        %v2101 = vpop.f32.mrf.mxu0
        %v2102 = vadd.f32 %v2013, %v2101
        %v2103 = vpop.f32.mrf.mxu0
        %v2104 = vadd.f32 %v2015, %v2103
        %2105 = vmatmul.bf16.gmra.mxu0 %v1761
        %v2106 = vpop.f32.mrf.mxu0
        %v2107 = vadd.f32 %v2018, %v2106
        %v2108 = vpop.f32.mrf.mxu0
        %v2109 = vadd.f32 %v2020, %v2108
        %2110 = vmatmul.bf16.gmra.mxu0 %v1764
        %v2111 = vpop.f32.mrf.mxu0
        %v2112 = vadd.f32 %v2023, %v2111
        %v2113 = vpop.f32.mrf.mxu0
        %v2114 = vadd.f32 %v2025, %v2113
        %2115 = vmatmul.bf16.gmra.mxu0 %v1767
        %v2116 = vpop.f32.mrf.mxu0
        %v2117 = vadd.f32 %v2028, %v2116
        %v2118 = vpop.f32.mrf.mxu0
        %v2119 = vadd.f32 %v2030, %v2118
        %2120 = vmatmul.bf16.gmra.mxu0 %v1770
        %v2121 = vpop.f32.mrf.mxu0
        %v2122 = vadd.f32 %v2033, %v2121
        %v2123 = vpop.f32.mrf.mxu0
        %v2124 = vadd.f32 %v2035, %v2123
        %2125 = vmatmul.bf16.gmra.mxu0 %v1773
        %v2126 = vpop.f32.mrf.mxu0
        %v2127 = vadd.f32 %v2038, %v2126
        %v2128 = vpop.f32.mrf.mxu0
        %v2129 = vadd.f32 %v2040, %v2128
        %2130 = vmatmul.bf16.gmra.mxu0 %v1776
        %v2131 = vpop.f32.mrf.mxu0
        %v2132 = vadd.f32 %v2043, %v2131
        %v2133 = vpop.f32.mrf.mxu0
        %v2134 = vadd.f32 %v2045, %v2133
        %2135 = vdwg.mxu0
        %2136 = vmatpush.bf16.msra.mxu0 0
        %2137 = vmatpush.bf16.msra.mxu0 0
        %2138 = vmatpush.bf16.msra.mxu0 0
        %2139 = vmatpush.bf16.msra.mxu0 0
        %2140 = vmatpush.bf16.msra.mxu0 0
        %2141 = vmatpush.bf16.msra.mxu0 0
        %2142 = vmatpush.bf16.msra.mxu0 %v1907
        %2143 = vmatpush.bf16.msra.mxu0 %v1906
        %2144 = vmatmul.bf16.gmra.mxu0 %v1926
        %v2145 = vpop.f32.mrf.mxu0
        %v2146 = vadd.f32 %v2057, %v2145
        %v2147 = vpop.f32.mrf.mxu0
        %v2148 = vadd.f32 %v2059, %v2147
        %2149 = vmatmul.bf16.gmra.mxu0 %v1928
        %v2150 = vpop.f32.mrf.mxu0
        %v2151 = vadd.f32 %v2062, %v2150
        %v2152 = vpop.f32.mrf.mxu0
        %v2153 = vadd.f32 %v2064, %v2152
        %2154 = vmatmul.bf16.gmra.mxu0 %v1930
        %v2155 = vpop.f32.mrf.mxu0
        %v2156 = vadd.f32 %v2067, %v2155
        %v2157 = vpop.f32.mrf.mxu0
        %v2158 = vadd.f32 %v2069, %v2157
        %2159 = vmatmul.bf16.gmra.mxu0 %v1932
        %v2160 = vpop.f32.mrf.mxu0
        %v2161 = vadd.f32 %v2072, %v2160
        %v2162 = vpop.f32.mrf.mxu0
        %v2163 = vadd.f32 %v2074, %v2162
        %2164 = vmatmul.bf16.gmra.mxu0 %v1934
        %v2165 = vpop.f32.mrf.mxu0
        %v2166 = vadd.f32 %v2077, %v2165
        %v2167 = vpop.f32.mrf.mxu0
        %v2168 = vadd.f32 %v2079, %v2167
        %2169 = vmatmul.bf16.gmra.mxu0 %v1936
        %v2170 = vpop.f32.mrf.mxu0
        %v2171 = vadd.f32 %v2082, %v2170
        %v2172 = vpop.f32.mrf.mxu0
        %v2173 = vadd.f32 %v2084, %v2172
        %2174 = vmatmul.bf16.gmra.mxu0 %v1938
        %v2175 = vpop.f32.mrf.mxu0
        %v2176 = vadd.f32 %v2087, %v2175
        %v2177 = vpop.f32.mrf.mxu0
        %v2178 = vadd.f32 %v2089, %v2177
        %2179 = vmatmul.bf16.gmra.mxu0 %v1940
        %v2180 = vpop.f32.mrf.mxu0
        %v2181 = vadd.f32 %v2092, %v2180
        %v2182 = vpop.f32.mrf.mxu0
        %v2183 = vadd.f32 %v2094, %v2182
        %2184 = vmatmul.bf16.gmra.mxu0 %v1942
        %v2185 = vpop.f32.mrf.mxu0
        %v2186 = vadd.f32 %v2097, %v2185
        %v2187 = vpop.f32.mrf.mxu0
        %v2188 = vadd.f32 %v2099, %v2187
        %2189 = vmatmul.bf16.gmra.mxu0 %v1944
        %v2190 = vpop.f32.mrf.mxu0
        %v2191 = vadd.f32 %v2102, %v2190
        %v2192 = vpop.f32.mrf.mxu0
        %v2193 = vadd.f32 %v2104, %v2192
        %2194 = vmatmul.bf16.gmra.mxu0 %v1946
        %v2195 = vpop.f32.mrf.mxu0
        %v2196 = vadd.f32 %v2107, %v2195
        %v2197 = vpop.f32.mrf.mxu0
        %v2198 = vadd.f32 %v2109, %v2197
        %2199 = vmatmul.bf16.gmra.mxu0 %v1948
        %v2200 = vpop.f32.mrf.mxu0
        %v2201 = vadd.f32 %v2112, %v2200
        %v2202 = vpop.f32.mrf.mxu0
        %v2203 = vadd.f32 %v2114, %v2202
        %2204 = vmatmul.bf16.gmra.mxu0 %v1950
        %v2205 = vpop.f32.mrf.mxu0
        %v2206 = vadd.f32 %v2117, %v2205
        %v2207 = vpop.f32.mrf.mxu0
        %v2208 = vadd.f32 %v2119, %v2207
        %2209 = vmatmul.bf16.gmra.mxu0 %v1952
        %v2210 = vpop.f32.mrf.mxu0
        %v2211 = vadd.f32 %v2122, %v2210
        %v2212 = vpop.f32.mrf.mxu0
        %v2213 = vadd.f32 %v2124, %v2212
        %2214 = vmatmul.bf16.gmra.mxu0 %v1954
        %v2215 = vpop.f32.mrf.mxu0
        %v2216 = vadd.f32 %v2127, %v2215
        %v2217 = vpop.f32.mrf.mxu0
        %v2218 = vadd.f32 %v2129, %v2217
        %2219 = vmatmul.bf16.gmra.mxu0 %v1956
        %v2220 = vpop.f32.mrf.mxu0
        %v2221 = vadd.f32 %v2132, %v2220
        %v2222 = vpop.f32.mrf.mxu0
        %v2223 = vadd.f32 %v2134, %v2222
        %2224 = vdwg.mxu0
        %v2225 = vmax.f32 %v2146, 0.0
        %v2226 = vmax.f32 %v2148, 0.0
        %v2227 = vmax.f32 %v2151, 0.0
        %v2228 = vmax.f32 %v2153, 0.0
        %v2229 = vmax.f32 %v2156, 0.0
        %v2230 = vmax.f32 %v2158, 0.0
        %v2231 = vmax.f32 %v2161, 0.0
        %v2232 = vmax.f32 %v2163, 0.0
        %v2233 = vmax.f32 %v2166, 0.0
        %v2234 = vmax.f32 %v2168, 0.0
        %v2235 = vmax.f32 %v2171, 0.0
        %v2236 = vmax.f32 %v2173, 0.0
        %v2237 = vmax.f32 %v2176, 0.0
        %v2238 = vmax.f32 %v2178, 0.0
        %v2239 = vmax.f32 %v2181, 0.0
        %v2240 = vmax.f32 %v2183, 0.0
        %v2241 = vmax.f32 %v2186, 0.0
        %v2242 = vmax.f32 %v2188, 0.0
        %v2243 = vmax.f32 %v2191, 0.0
        %v2244 = vmax.f32 %v2193, 0.0
        %v2245 = vmax.f32 %v2196, 0.0
        %v2246 = vmax.f32 %v2198, 0.0
        %v2247 = vmax.f32 %v2201, 0.0
        %v2248 = vmax.f32 %v2203, 0.0
        %v2249 = vmax.f32 %v2206, 0.0
        %v2250 = vmax.f32 %v2208, 0.0
        %v2251 = vmax.f32 %v2211, 0.0
        %v2252 = vmax.f32 %v2213, 0.0
        %v2253 = vmax.f32 %v2216, 0.0
        %v2254 = vmax.f32 %v2218, 0.0
        %v2255 = vmax.f32 %v2221, 0.0
        %v2256 = vmax.f32 %v2223, 0.0
        %v2257 = vpack.c.bf16 %v2226, %v2225
        %v2258 = vpack.c.bf16 %v2228, %v2227
        %v2259 = vpack.c.bf16 %v2230, %v2229
        %v2260 = vpack.c.bf16 %v2232, %v2231
        %v2261 = vpack.c.bf16 %v2234, %v2233
        %v2262 = vpack.c.bf16 %v2236, %v2235
        %v2263 = vpack.c.bf16 %v2238, %v2237
        %v2264 = vpack.c.bf16 %v2240, %v2239
        %v2265 = vpack.c.bf16 %v2242, %v2241
        %v2266 = vpack.c.bf16 %v2244, %v2243
        %v2267 = vpack.c.bf16 %v2246, %v2245
        %v2268 = vpack.c.bf16 %v2248, %v2247
        %v2269 = vpack.c.bf16 %v2250, %v2249
        %v2270 = vpack.c.bf16 %v2252, %v2251
        %v2271 = vpack.c.bf16 %v2254, %v2253
        %v2272 = vpack.c.bf16 %v2256, %v2255
        %v2273 = vld [vmem:[%s5] sm:$0xf]
        %v2274 = vld [vmem:[%s5 + $0x4] sm:$0xf]
        %v2275 = vld [vmem:[%s5 + $0x8] sm:$0xf]
        %v2276 = vld [vmem:[%s5 + $0xc] sm:$0xf]
        %v2277 = vld [vmem:[%s8] sm:$0x1]
        %v2279 = vperm.slane %v2277, 0
        %v2285 = vunpack.c.l.b16 %v2273
        %v2286 = vunpack.c.l.b16 %v2274
        %v2287 = vunpack.c.l.b16 %v2275
        %v2288 = vunpack.c.l.b16 %v2276
        %v2289 = vpack.c.b16 %v2286, %v2285
        %v2290 = vpack.c.b16 %v2288, %v2287
        %v2294 = vsel %vm1401, %v2257, 0
        %v2297 = vsel %vm1401, %v2258, 0
        %v2300 = vsel %vm1401, %v2259, 0
        %v2303 = vsel %vm1401, %v2260, 0
        %v2306 = vsel %vm1401, %v2261, 0
        %v2309 = vsel %vm1401, %v2262, 0
        %v2312 = vsel %vm1401, %v2263, 0
        %v2315 = vsel %vm1401, %v2264, 0
        %v2318 = vsel %vm1401, %v2265, 0
        %v2321 = vsel %vm1401, %v2266, 0
        %v2324 = vsel %vm1401, %v2267, 0
        %v2327 = vsel %vm1401, %v2268, 0
        %v2330 = vsel %vm1401, %v2269, 0
        %v2333 = vsel %vm1401, %v2270, 0
        %v2336 = vsel %vm1401, %v2271, 0
        %v2339 = vsel %vm1401, %v2272, 0
        %2341 = vmatpush.bf16.msra.mxu0 0
        %2342 = vmatpush.bf16.msra.mxu0 0
        %2343 = vmatpush.bf16.msra.mxu0 0
        %2344 = vmatpush.bf16.msra.mxu0 0
        %2345 = vmatpush.bf16.msra.mxu0 0
        %2346 = vmatpush.bf16.msra.mxu0 0
        %2347 = vmatpush.bf16.msra.mxu0 %v2290
        %2348 = vmatpush.bf16.msra.mxu0 %v2289
        %2349 = vmatmul.bf16.gmra.mxu0 %v2294
        %v2350 = vpop.f32.mrf.mxu0
        %v2351 = vadd.f32 %v2279, %v2350
        %v2352 = vpop.f32.mrf.mxu0
        %v2353 = vadd.f32 %v2279, %v2352
        %2354 = vmatmul.bf16.gmra.mxu0 %v2297
        %v2355 = vpop.f32.mrf.mxu0
        %v2356 = vadd.f32 %v2279, %v2355
        %v2357 = vpop.f32.mrf.mxu0
        %v2358 = vadd.f32 %v2279, %v2357
        %2359 = vmatmul.bf16.gmra.mxu0 %v2300
        %v2360 = vpop.f32.mrf.mxu0
        %v2361 = vadd.f32 %v2279, %v2360
        %v2362 = vpop.f32.mrf.mxu0
        %v2363 = vadd.f32 %v2279, %v2362
        %2364 = vmatmul.bf16.gmra.mxu0 %v2303
        %v2365 = vpop.f32.mrf.mxu0
        %v2366 = vadd.f32 %v2279, %v2365
        %v2367 = vpop.f32.mrf.mxu0
        %v2368 = vadd.f32 %v2279, %v2367
        %2369 = vmatmul.bf16.gmra.mxu0 %v2306
        %v2370 = vpop.f32.mrf.mxu0
        %v2371 = vadd.f32 %v2279, %v2370
        %v2372 = vpop.f32.mrf.mxu0
        %v2373 = vadd.f32 %v2279, %v2372
        %2374 = vmatmul.bf16.gmra.mxu0 %v2309
        %v2375 = vpop.f32.mrf.mxu0
        %v2376 = vadd.f32 %v2279, %v2375
        %v2377 = vpop.f32.mrf.mxu0
        %v2378 = vadd.f32 %v2279, %v2377
        %2379 = vmatmul.bf16.gmra.mxu0 %v2312
        %v2380 = vpop.f32.mrf.mxu0
        %v2381 = vadd.f32 %v2279, %v2380
        %v2382 = vpop.f32.mrf.mxu0
        %v2383 = vadd.f32 %v2279, %v2382
        %2384 = vmatmul.bf16.gmra.mxu0 %v2315
        %v2385 = vpop.f32.mrf.mxu0
        %v2386 = vadd.f32 %v2279, %v2385
        %v2387 = vpop.f32.mrf.mxu0
        %v2388 = vadd.f32 %v2279, %v2387
        %2389 = vmatmul.bf16.gmra.mxu0 %v2318
        %v2390 = vpop.f32.mrf.mxu0
        %v2391 = vadd.f32 %v2279, %v2390
        %v2392 = vpop.f32.mrf.mxu0
        %v2393 = vadd.f32 %v2279, %v2392
        %2394 = vmatmul.bf16.gmra.mxu0 %v2321
        %v2395 = vpop.f32.mrf.mxu0
        %v2396 = vadd.f32 %v2279, %v2395
        %v2397 = vpop.f32.mrf.mxu0
        %v2398 = vadd.f32 %v2279, %v2397
        %2399 = vmatmul.bf16.gmra.mxu0 %v2324
        %v2400 = vpop.f32.mrf.mxu0
        %v2401 = vadd.f32 %v2279, %v2400
        %v2402 = vpop.f32.mrf.mxu0
        %v2403 = vadd.f32 %v2279, %v2402
        %2404 = vmatmul.bf16.gmra.mxu0 %v2327
        %v2405 = vpop.f32.mrf.mxu0
        %v2406 = vadd.f32 %v2279, %v2405
        %v2407 = vpop.f32.mrf.mxu0
        %v2408 = vadd.f32 %v2279, %v2407
        %2409 = vmatmul.bf16.gmra.mxu0 %v2330
        %v2410 = vpop.f32.mrf.mxu0
        %v2411 = vadd.f32 %v2279, %v2410
        %v2412 = vpop.f32.mrf.mxu0
        %v2413 = vadd.f32 %v2279, %v2412
        %2414 = vmatmul.bf16.gmra.mxu0 %v2333
        %v2415 = vpop.f32.mrf.mxu0
        %v2416 = vadd.f32 %v2279, %v2415
        %v2417 = vpop.f32.mrf.mxu0
        %v2418 = vadd.f32 %v2279, %v2417
        %2419 = vmatmul.bf16.gmra.mxu0 %v2336
        %v2420 = vpop.f32.mrf.mxu0
        %v2421 = vadd.f32 %v2279, %v2420
        %v2422 = vpop.f32.mrf.mxu0
        %v2423 = vadd.f32 %v2279, %v2422
        %2424 = vmatmul.bf16.gmra.mxu0 %v2339
        %v2425 = vpop.f32.mrf.mxu0
        %v2426 = vadd.f32 %v2279, %v2425
        %v2427 = vpop.f32.mrf.mxu0
        %v2428 = vadd.f32 %v2279, %v2427
        %2429 = vdwg.mxu0
        %v2430 = vunpack.c.l.bf16 %v499
        %v2431 = vunpack.c.l.bf16 %v500
        %v2432 = vunpack.c.l.bf16 %v501
        %v2433 = vunpack.c.l.bf16 %v502
        %v2434 = vunpack.c.l.bf16 %v503
        %v2435 = vunpack.c.l.bf16 %v504
        %v2436 = vunpack.c.l.bf16 %v505
        %v2437 = vunpack.c.l.bf16 %v506
        %v2438 = vunpack.c.l.bf16 %v507
        %v2439 = vunpack.c.l.bf16 %v508
        %v2440 = vunpack.c.l.bf16 %v509
        %v2441 = vunpack.c.l.bf16 %v510
        %v2442 = vunpack.c.l.bf16 %v511
        %v2443 = vunpack.c.l.bf16 %v512
        %v2444 = vunpack.c.l.bf16 %v513
        %v2445 = vunpack.c.l.bf16 %v514
        %v2446 = vunpack.c.l.bf16 %v515
        %v2447 = vunpack.c.l.bf16 %v516
        %v2448 = vunpack.c.l.bf16 %v517
        %v2449 = vunpack.c.l.bf16 %v518
        %v2450 = vunpack.c.l.bf16 %v519
        %v2451 = vunpack.c.l.bf16 %v520
        %v2452 = vunpack.c.l.bf16 %v521
        %v2453 = vunpack.c.l.bf16 %v522
        %v2454 = vunpack.c.l.bf16 %v523
        %v2455 = vunpack.c.l.bf16 %v524
        %v2456 = vunpack.c.l.bf16 %v525
        %v2457 = vunpack.c.l.bf16 %v526
        %v2458 = vunpack.c.l.bf16 %v527
        %v2459 = vunpack.c.l.bf16 %v528
        %v2460 = vunpack.c.l.bf16 %v529
        %v2461 = vunpack.c.l.bf16 %v530
        %v2462 = vadd.f32 %v2351, %v2430
        %v2463 = vadd.f32 %v2353, %v2431
        %v2464 = vadd.f32 %v2356, %v2432
        %v2465 = vadd.f32 %v2358, %v2433
        %v2466 = vadd.f32 %v2361, %v2434
        %v2467 = vadd.f32 %v2363, %v2435
        %v2468 = vadd.f32 %v2366, %v2436
        %v2469 = vadd.f32 %v2368, %v2437
        %v2470 = vadd.f32 %v2371, %v2438
        %v2471 = vadd.f32 %v2373, %v2439
        %v2472 = vadd.f32 %v2376, %v2440
        %v2473 = vadd.f32 %v2378, %v2441
        %v2474 = vadd.f32 %v2381, %v2442
        %v2475 = vadd.f32 %v2383, %v2443
        %v2476 = vadd.f32 %v2386, %v2444
        %v2477 = vadd.f32 %v2388, %v2445
        %v2478 = vadd.f32 %v2391, %v2446
        %v2479 = vadd.f32 %v2393, %v2447
        %v2480 = vadd.f32 %v2396, %v2448
        %v2481 = vadd.f32 %v2398, %v2449
        %v2482 = vadd.f32 %v2401, %v2450
        %v2483 = vadd.f32 %v2403, %v2451
        %v2484 = vadd.f32 %v2406, %v2452
        %v2485 = vadd.f32 %v2408, %v2453
        %v2486 = vadd.f32 %v2411, %v2454
        %v2487 = vadd.f32 %v2413, %v2455
        %v2488 = vadd.f32 %v2416, %v2456
        %v2489 = vadd.f32 %v2418, %v2457
        %v2490 = vadd.f32 %v2421, %v2458
        %v2491 = vadd.f32 %v2423, %v2459
        %v2492 = vadd.f32 %v2426, %v2460
        %v2493 = vadd.f32 %v2428, %v2461
        %v2494 = vmax.f32 %v2462, 0.0
        %v2495 = vmax.f32 %v2463, 0.0
        %v2496 = vmax.f32 %v2464, 0.0
        %v2497 = vmax.f32 %v2465, 0.0
        %v2498 = vmax.f32 %v2466, 0.0
        %v2499 = vmax.f32 %v2467, 0.0
        %v2500 = vmax.f32 %v2468, 0.0
        %v2501 = vmax.f32 %v2469, 0.0
        %v2502 = vmax.f32 %v2470, 0.0
        %v2503 = vmax.f32 %v2471, 0.0
        %v2504 = vmax.f32 %v2472, 0.0
        %v2505 = vmax.f32 %v2473, 0.0
        %v2506 = vmax.f32 %v2474, 0.0
        %v2507 = vmax.f32 %v2475, 0.0
        %v2508 = vmax.f32 %v2476, 0.0
        %v2509 = vmax.f32 %v2477, 0.0
        %v2510 = vmax.f32 %v2478, 0.0
        %v2511 = vmax.f32 %v2479, 0.0
        %v2512 = vmax.f32 %v2480, 0.0
        %v2513 = vmax.f32 %v2481, 0.0
        %v2514 = vmax.f32 %v2482, 0.0
        %v2515 = vmax.f32 %v2483, 0.0
        %v2516 = vmax.f32 %v2484, 0.0
        %v2517 = vmax.f32 %v2485, 0.0
        %v2518 = vmax.f32 %v2486, 0.0
        %v2519 = vmax.f32 %v2487, 0.0
        %v2520 = vmax.f32 %v2488, 0.0
        %v2521 = vmax.f32 %v2489, 0.0
        %v2522 = vmax.f32 %v2490, 0.0
        %v2523 = vmax.f32 %v2491, 0.0
        %v2524 = vmax.f32 %v2492, 0.0
        %v2525 = vmax.f32 %v2493, 0.0
        %v2526 = vpack.c.bf16 %v2494, %v2494
        %v2527 = vpack.c.bf16 %v2495, %v2495
        %v2528 = vpack.c.bf16 %v2496, %v2496
        %v2529 = vpack.c.bf16 %v2497, %v2497
        %v2530 = vpack.c.bf16 %v2498, %v2498
        %v2531 = vpack.c.bf16 %v2499, %v2499
        %v2532 = vpack.c.bf16 %v2500, %v2500
        %v2533 = vpack.c.bf16 %v2501, %v2501
        %v2534 = vpack.c.bf16 %v2502, %v2502
        %v2535 = vpack.c.bf16 %v2503, %v2503
        %v2536 = vpack.c.bf16 %v2504, %v2504
        %v2537 = vpack.c.bf16 %v2505, %v2505
        %v2538 = vpack.c.bf16 %v2506, %v2506
        %v2539 = vpack.c.bf16 %v2507, %v2507
        %v2540 = vpack.c.bf16 %v2508, %v2508
        %v2541 = vpack.c.bf16 %v2509, %v2509
        %v2542 = vpack.c.bf16 %v2510, %v2510
        %v2543 = vpack.c.bf16 %v2511, %v2511
        %v2544 = vpack.c.bf16 %v2512, %v2512
        %v2545 = vpack.c.bf16 %v2513, %v2513
        %v2546 = vpack.c.bf16 %v2514, %v2514
        %v2547 = vpack.c.bf16 %v2515, %v2515
        %v2548 = vpack.c.bf16 %v2516, %v2516
        %v2549 = vpack.c.bf16 %v2517, %v2517
        %v2550 = vpack.c.bf16 %v2518, %v2518
        %v2551 = vpack.c.bf16 %v2519, %v2519
        %v2552 = vpack.c.bf16 %v2520, %v2520
        %v2553 = vpack.c.bf16 %v2521, %v2521
        %v2554 = vpack.c.bf16 %v2522, %v2522
        %v2555 = vpack.c.bf16 %v2523, %v2523
        %v2556 = vpack.c.bf16 %v2524, %v2524
        %v2557 = vpack.c.bf16 %v2525, %v2525
        %2558 = vst [vmem:[%s474] sm:$0xf] %v2526
        %2559 = vst [vmem:[%s474 + $0x4] sm:$0xf] %v2527
        %2560 = vst [vmem:[%s474 + $0x8] sm:$0xf] %v2528
        %2561 = vst [vmem:[%s474 + $0xc] sm:$0xf] %v2529
        %2562 = vst [vmem:[%s474 + $0x10] sm:$0xf] %v2530
        %2563 = vst [vmem:[%s474 + $0x14] sm:$0xf] %v2531
        %2564 = vst [vmem:[%s474 + $0x18] sm:$0xf] %v2532
        %2565 = vst [vmem:[%s474 + $0x1c] sm:$0xf] %v2533
        %2566 = vst [vmem:[%s474 + $0x20] sm:$0xf] %v2534
        %2567 = vst [vmem:[%s474 + $0x24] sm:$0xf] %v2535
        %2568 = vst [vmem:[%s474 + $0x28] sm:$0xf] %v2536
        %2569 = vst [vmem:[%s474 + $0x2c] sm:$0xf] %v2537
        %2570 = vst [vmem:[%s474 + $0x30] sm:$0xf] %v2538
        %2571 = vst [vmem:[%s474 + $0x34] sm:$0xf] %v2539
        %2572 = vst [vmem:[%s474 + $0x38] sm:$0xf] %v2540
        %2573 = vst [vmem:[%s474 + $0x3c] sm:$0xf] %v2541
        %2574 = vst [vmem:[%s474 + $0x40] sm:$0xf] %v2542
        %2575 = vst [vmem:[%s474 + $0x44] sm:$0xf] %v2543
        %2576 = vst [vmem:[%s474 + $0x48] sm:$0xf] %v2544
        %2577 = vst [vmem:[%s474 + $0x4c] sm:$0xf] %v2545
        %2578 = vst [vmem:[%s474 + $0x50] sm:$0xf] %v2546
        %2579 = vst [vmem:[%s474 + $0x54] sm:$0xf] %v2547
        %2580 = vst [vmem:[%s474 + $0x58] sm:$0xf] %v2548
        %2581 = vst [vmem:[%s474 + $0x5c] sm:$0xf] %v2549
        %2582 = vst [vmem:[%s474 + $0x60] sm:$0xf] %v2550
        %2583 = vst [vmem:[%s474 + $0x64] sm:$0xf] %v2551
        %2584 = vst [vmem:[%s474 + $0x68] sm:$0xf] %v2552
        %2585 = vst [vmem:[%s474 + $0x6c] sm:$0xf] %v2553
        %2586 = vst [vmem:[%s474 + $0x70] sm:$0xf] %v2554
        %2587 = vst [vmem:[%s474 + $0x74] sm:$0xf] %v2555
        %2588 = vst [vmem:[%s474 + $0x78] sm:$0xf] %v2556
        %2589 = vst [vmem:[%s474 + $0x7c] sm:$0xf] %v2557
        %s2590 = sand.u32 %s277, 1
        %s2591 = scalar_lea.sflag [#allocation4], %s2590
        %s2592 = sand.u32 %s277, 1
        %s2593 = smul.addr %s2592, 128
        %s2594 = scalar_lea.vmem [#allocation7], %s2593
        // Predicated region
        $region65: #{tpu_custom_call.1} parent=55 // pred_check
          %p2595 = pneg %p287
        $region66: #{tpu_custom_call.1} parent=55 // pred_check_branch
          %2597 = sbr.rel (%p2595) target = $region68
        $region67: #{tpu_custom_call.1} parent=55 // pred_region
          %s2598 = smul.u32 16, %s34
          %2600 = vsyncadd %s2591, 0
          %s2601 = smul.addr %s2598, 2
          %s2602 = smul.addr %s33, 32
          %s2603 = sadd.s32 %s2601, %s2602
          %s2604 = smul.addr %s2603, 4
          %s2605 = scalar_lea.hbm %s9, %s2604
          %s2606 = sshll.u32 %s2594, 4
          %s2607 = int_to_ptr.vmem [resolvable:$true] %s2606
          %s2608 = sshll.u32 %s2605, 4
          %s2609 = int_to_ptr.hbm [resolvable:$true] %s2608
          %2614 = dma.vmem_to_hbm [thread:$0]  %s2607, 2048, %s2609, %s2591, 64, 64, 4
        $region68: #{tpu_custom_call.1} parent=55 // pred_fallthru
          _
      $region56: #{tpu_custom_call.1} parent=5 // pred_fallthru
        _
      %p2615 = scmp.le.s32.totalorder 2, %s24
      // Predicated region
      $region69: #{tpu_custom_call.1} parent=5 // pred_check
        %p2616 = pneg %p2615
      $region70: #{tpu_custom_call.1} parent=5 // pred_check_branch
        %2618 = sbr.rel (%p2616) target = $region72
      $region71: #{tpu_custom_call.1} parent=5 // pred_region
        %s2619 = ssub.s32 %s24, 2
        // Predicated region
        $region73: #{tpu_custom_call.1} parent=71 // pred_check
          %p2620 = pneg %p293
        $region74: #{tpu_custom_call.1} parent=71 // pred_check_branch
          %2622 = sbr.rel (%p2620) target = $region76
        $region75: #{tpu_custom_call.1} parent=71 // pred_region
          %s2623 = sand.u32 %s278, 1
          %s2624 = scalar_lea.sflag [#allocation4], %s2623
          %s2625 = sand.u32 %s278, 1
          %s2626 = smul.addr %s2625, 128
          %s2627 = scalar_lea.vmem [#allocation7], %s2626
          %2629 = dma.done %s2624, 2048
        $region76: #{tpu_custom_call.1} parent=71 // pred_fallthru
          _
      $region72: #{tpu_custom_call.1} parent=5 // pred_fallthru
        _
    $region6: #{tpu_custom_call.1} parent=1 // loop_footer
      %s28 = sadd.s32 1, %s24
    $region7: #{tpu_custom_call.1} parent=1 // loop_footer_branch
      %23 = sbr.rel target = $region3
    $region8: #{tpu_custom_call.1} parent=1 // loop_exit
      _
    %2630 = vsyncpa [#allocation3], 1
    %s2631 = scalar_lea.sflag [#allocation3], 1
    %2632 = vsyncpa %s2631, 1
    %2633 = vsyncpa [#allocation6], 1
    %s2634 = scalar_lea.sflag [#allocation6], 1
    %2635 = vsyncpa %s2634, 1
    %2636 = vsyncpa [#allocation4], 1
    %s2637 = scalar_lea.sflag [#allocation4], 1
    %2638 = vsyncpa %s2637, 1

// kernel: tpu_custom_call.1
$region0: #{tpu_custom_call.1}
  #allocation0 [shape = 'u32[]', space=smem, size = 0x4, offset = 0x4, fixed_abs, tag = 'smem constant byte address 0x4 - core index']
  #allocation1 [shape = 'u32[72,128]{1,0:T(1,128)}', space=vmem, size = 0x9000, scoped, tag = 'internal scratch']
  %s0 = inlined_call_operand.vmem [shape: bf16[2,16,16,128], index: 0, kind: input, shape index: {}]
  %s1 = inlined_call_operand.hbm [shape: bf16[2,16,16,128], index: 1, kind: input, shape index: {}]
  %s2 = inlined_call_operand.hbm [shape: bf16[2,16,16,128], index: 2, kind: input, shape index: {}]
  %s3 = inlined_call_operand.vmem [shape: bf16[128,32], index: 3, kind: input, shape index: {}]
  %s4 = inlined_call_operand.vmem [shape: bf16[288,32], index: 4, kind: input, shape index: {}]
  %s5 = inlined_call_operand.vmem [shape: bf16[32,128], index: 5, kind: input, shape index: {}]
  %s6 = inlined_call_operand.vmem [shape: f32[1,32], index: 6, kind: input, shape index: {}]
  %s7 = inlined_call_operand.vmem [shape: f32[1,32], index: 7, kind: input, shape index: {}]
  %s8 = inlined_call_operand.vmem [shape: f32[1,128], index: 8, kind: input, shape index: {}]
  %s9 = inlined_call_operand.hbm [shape: bf16[2,16,16,128], index: 9, kind: output, shape index: {}]
  %s10 = sld [smem:[#allocation0]]
  $region77: #{tpu_custom_call.1} parent=0
    _
  %s12 = ssub.s32 1, %s10
  %s13 = scalar_select 0, %s12, %s10
  $region1: #{tpu_custom_call.1} parent=0
    #allocation2 [shape = 'u8[131072]{0}', space=vmem, size = 0x20000, scoped, tag = 'input window, operand 1']
    #allocation3 [shape = 's32[2]{0}', space=sflag, size = 0x8, scoped, tag = 'scoped memory for tpu_custom_call.1']
    #allocation4 [shape = 's32[2]{0}', space=sflag, size = 0x8, scoped, tag = 'scoped memory for tpu_custom_call.1']
    #allocation5 [shape = 'u8[8192]{0}', space=vmem, size = 0x2000, scoped, tag = 'input window, operand 2']
    #allocation6 [shape = 's32[2]{0}', space=sflag, size = 0x8, scoped, tag = 'scoped memory for tpu_custom_call.1']
    #allocation7 [shape = 'u8[131072]{0}', space=vmem, size = 0x20000, scoped, tag = 'output window, operand 0']
    %14 = vsyncpa [#allocation3], 0
    %s15 = scalar_lea.sflag [#allocation3], 1
    %16 = vsyncpa %s15, 0
    %17 = vsyncpa [#allocation6], 0
    %s18 = scalar_lea.sflag [#allocation6], 1
    %19 = vsyncpa %s18, 0
    %20 = vsyncpa [#allocation4], 0
    %s21 = scalar_lea.sflag [#allocation4], 1
    %22 = vsyncpa %s21, 0
    loop: start=0, step=1, limit=4
    $region2: #{tpu_custom_call.1} parent=1 // loop_pre_header
      _
    $region3: #{tpu_custom_call.1} parent=1 // loop_header
      %s24 = sphi 0, %s28
      %p25 = scmp.ge.s32.totalorder %s24, 4
      %s31 = sphi 0, %s43
      %s32 = sphi 0, %s39
      %s33 = sphi 0, %s31
      %s34 = sphi 0, %s32
      %s35 = sphi 0, %s33
      %s36 = sphi 0, %s34
      %s56 = sphi 0, %s58
      %s59 = sphi 0, %s56
      %s60 = sphi 0, %s59
      %s76 = sphi 0, %s60
      %s84 = sphi 0, %s86
      %s87 = sphi 0, %s84
      %s88 = sphi 0, %s87
      %s104 = sphi 0, %s88
      %s120 = sphi 0, %s122
      %s123 = sphi 0, %s120
      %s124 = sphi 0, %s123
      %s140 = sphi 0, %s124
      %s144 = sphi 0, %s144
      %s146 = sphi 0, %s144
      %s147 = sphi 0, %s146
      %s161 = sphi 0, %s147
      %s165 = sphi 0, %s165
      %s167 = sphi 0, %s165
      %s168 = sphi 0, %s167
      %s182 = sphi 0, %s168
      %s186 = sphi 0, %s186
      %s188 = sphi 0, %s186
      %s189 = sphi 0, %s188
      %s203 = sphi 0, %s189
      %s207 = sphi 0, %s207
      %s209 = sphi 0, %s207
      %s210 = sphi 0, %s209
      %s224 = sphi 0, %s210
      %s228 = sphi 0, %s228
      %s230 = sphi 0, %s228
      %s231 = sphi 0, %s230
      %s245 = sphi 0, %s231
      %s249 = sphi 0, %s249
      %s251 = sphi 0, %s249
      %s252 = sphi 0, %s251
      %s266 = sphi 0, %s252
      %s274 = sphi 0, %s276
      %s277 = sphi 0, %s274
      %s278 = sphi 0, %s277
      %s294 = sphi 0, %s278
    $region4: #{tpu_custom_call.1} parent=1 // loop_header_branch
      %27 = sbr.rel (%p25) target = $region8
    $region5: #{tpu_custom_call.1} parent=1 // loop_body
      %s29 = ssub.s32 %s24, 1
      %s30 = ssub.s32 %s24, 2
      %s37 = sadd.s32 1, %s32
      %p38 = scmp.ge.s32.totalorder %s37, 1
      %s39 = scalar_select %p38, 0, %s37
      %s40 = sadd.s32 1, %s31
      %s41 = scalar_select %p38, %s40, %s31
      %p42 = scmp.ge.s32.totalorder %s41, 2
      %s43 = scalar_select %p42, 0, %s41
      %s44 = smul.u32 %s32, 16
      %s45 = ssub.s32 %s44, 1
      %p46 = scmp.gt.s32.totalorder %s45, 0
      %s47 = scalar_select %p46, %s45, 0
      %s48 = smul.u32 %s39, 16
      %s49 = ssub.s32 %s48, 1
      %p50 = scmp.gt.s32.totalorder %s49, 0
      %s51 = scalar_select %p50, %s49, 0
      %s52 = ssub.s32 %s31, %s43
      %s53 = ssub.s32 %s47, %s51
      %s54 = sor.u32 %s52, %s53
      %p55 = scmp.eq.s32.totalorder %s54, 0
      %s57 = sadd.s32 %s56, 1
      %s58 = scalar_select %p55, %s56, %s57
      %p61 = pneg %p55
      %p62 = scmp.eq.s32.totalorder %s24, 1
      %p63 = por %p61, %p62
      %p64 = scmp.ne.s32.totalorder %s56, %s59
      %p65 = scmp.eq.s32.totalorder %s24, 0
      %p66 = por %p64, %p65
      %p67 = scmp.ne.s32.totalorder %s56, %s59
      %p68 = scmp.eq.s32.totalorder %s29, 1
      %p69 = por %p67, %p68
      %p70 = scmp.ne.s32.totalorder %s59, %s60
      %p71 = scmp.eq.s32.totalorder %s29, 0
      %p72 = por %p70, %p71
      %p73 = scmp.ne.s32.totalorder %s59, %s60
      %p74 = scmp.eq.s32.totalorder %s30, 1
      %p75 = por %p73, %p74
      %p77 = scmp.ne.s32.totalorder %s60, %s76
      %p78 = scmp.eq.s32.totalorder %s30, 0
      %p79 = por %p77, %p78
      %s80 = ssub.s32 %s31, %s43
      %s81 = ssub.s32 %s32, %s39
      %s82 = sor.u32 %s80, %s81
      %p83 = scmp.eq.s32.totalorder %s82, 0
      %s85 = sadd.s32 %s84, 1
      %s86 = scalar_select %p83, %s84, %s85
      %p89 = pneg %p83
      %p90 = scmp.eq.s32.totalorder %s24, 1
      %p91 = por %p89, %p90
      %p92 = scmp.ne.s32.totalorder %s84, %s87
      %p93 = scmp.eq.s32.totalorder %s24, 0
      %p94 = por %p92, %p93
      %p95 = scmp.ne.s32.totalorder %s84, %s87
      %p96 = scmp.eq.s32.totalorder %s29, 1
      %p97 = por %p95, %p96
      %p98 = scmp.ne.s32.totalorder %s87, %s88
      %p99 = scmp.eq.s32.totalorder %s29, 0
      %p100 = por %p98, %p99
      %p101 = scmp.ne.s32.totalorder %s87, %s88
      %p102 = scmp.eq.s32.totalorder %s30, 1
      %p103 = por %p101, %p102
      %p105 = scmp.ne.s32.totalorder %s88, %s104
      %p106 = scmp.eq.s32.totalorder %s30, 0
      %p107 = por %p105, %p106
      %s108 = sadd.s32 %s32, 1
      %s109 = smul.u32 %s108, 16
      %p110 = scmp.lt.s32.totalorder %s109, 15
      %s111 = scalar_select %p110, %s109, 15
      %s112 = sadd.s32 %s39, 1
      %s113 = smul.u32 %s112, 16
      %p114 = scmp.lt.s32.totalorder %s113, 15
      %s115 = scalar_select %p114, %s113, 15
      %s116 = ssub.s32 %s31, %s43
      %s117 = ssub.s32 %s111, %s115
      %s118 = sor.u32 %s116, %s117
      %p119 = scmp.eq.s32.totalorder %s118, 0
      %s121 = sadd.s32 %s120, 1
      %s122 = scalar_select %p119, %s120, %s121
      %p125 = pneg %p119
      %p126 = scmp.eq.s32.totalorder %s24, 1
      %p127 = por %p125, %p126
      %p128 = scmp.ne.s32.totalorder %s120, %s123
      %p129 = scmp.eq.s32.totalorder %s24, 0
      %p130 = por %p128, %p129
      %p131 = scmp.ne.s32.totalorder %s120, %s123
      %p132 = scmp.eq.s32.totalorder %s29, 1
      %p133 = por %p131, %p132
      %p134 = scmp.ne.s32.totalorder %s123, %s124
      %p135 = scmp.eq.s32.totalorder %s29, 0
      %p136 = por %p134, %p135
      %p137 = scmp.ne.s32.totalorder %s123, %s124
      %p138 = scmp.eq.s32.totalorder %s30, 1
      %p139 = por %p137, %p138
      %p141 = scmp.ne.s32.totalorder %s124, %s140
      %p142 = scmp.eq.s32.totalorder %s30, 0
      %p143 = por %p141, %p142
      %s145 = sadd.s32 %s144, 1
      %p148 = scmp.eq.s32.totalorder %s24, 1
      %p149 = scmp.ne.s32.totalorder %s144, %s146
      %p150 = scmp.eq.s32.totalorder %s24, 0
      %p151 = por %p149, %p150
      %p152 = scmp.ne.s32.totalorder %s144, %s146
      %p153 = scmp.eq.s32.totalorder %s29, 1
      %p154 = por %p152, %p153
      %p155 = scmp.ne.s32.totalorder %s146, %s147
      %p156 = scmp.eq.s32.totalorder %s29, 0
      %p157 = por %p155, %p156
      %p158 = scmp.ne.s32.totalorder %s146, %s147
      %p159 = scmp.eq.s32.totalorder %s30, 1
      %p160 = por %p158, %p159
      %p162 = scmp.ne.s32.totalorder %s147, %s161
      %p163 = scmp.eq.s32.totalorder %s30, 0
      %p164 = por %p162, %p163
      %s166 = sadd.s32 %s165, 1
      %p169 = scmp.eq.s32.totalorder %s24, 1
      %p170 = scmp.ne.s32.totalorder %s165, %s167
      %p171 = scmp.eq.s32.totalorder %s24, 0
      %p172 = por %p170, %p171
      %p173 = scmp.ne.s32.totalorder %s165, %s167
      %p174 = scmp.eq.s32.totalorder %s29, 1
      %p175 = por %p173, %p174
      %p176 = scmp.ne.s32.totalorder %s167, %s168
      %p177 = scmp.eq.s32.totalorder %s29, 0
      %p178 = por %p176, %p177
      %p179 = scmp.ne.s32.totalorder %s167, %s168
      %p180 = scmp.eq.s32.totalorder %s30, 1
      %p181 = por %p179, %p180
      %p183 = scmp.ne.s32.totalorder %s168, %s182
      %p184 = scmp.eq.s32.totalorder %s30, 0
      %p185 = por %p183, %p184
      %s187 = sadd.s32 %s186, 1
      %p190 = scmp.eq.s32.totalorder %s24, 1
      %p191 = scmp.ne.s32.totalorder %s186, %s188
      %p192 = scmp.eq.s32.totalorder %s24, 0
      %p193 = por %p191, %p192
      %p194 = scmp.ne.s32.totalorder %s186, %s188
      %p195 = scmp.eq.s32.totalorder %s29, 1
      %p196 = por %p194, %p195
      %p197 = scmp.ne.s32.totalorder %s188, %s189
      %p198 = scmp.eq.s32.totalorder %s29, 0
      %p199 = por %p197, %p198
      %p200 = scmp.ne.s32.totalorder %s188, %s189
      %p201 = scmp.eq.s32.totalorder %s30, 1
      %p202 = por %p200, %p201
      %p204 = scmp.ne.s32.totalorder %s189, %s203
      %p205 = scmp.eq.s32.totalorder %s30, 0
      %p206 = por %p204, %p205
      %s208 = sadd.s32 %s207, 1
      %p211 = scmp.eq.s32.totalorder %s24, 1
      %p212 = scmp.ne.s32.totalorder %s207, %s209
      %p213 = scmp.eq.s32.totalorder %s24, 0
      %p214 = por %p212, %p213
      %p215 = scmp.ne.s32.totalorder %s207, %s209
      %p216 = scmp.eq.s32.totalorder %s29, 1
      %p217 = por %p215, %p216
      %p218 = scmp.ne.s32.totalorder %s209, %s210
      %p219 = scmp.eq.s32.totalorder %s29, 0
      %p220 = por %p218, %p219
      %p221 = scmp.ne.s32.totalorder %s209, %s210
      %p222 = scmp.eq.s32.totalorder %s30, 1
      %p223 = por %p221, %p222
      %p225 = scmp.ne.s32.totalorder %s210, %s224
      %p226 = scmp.eq.s32.totalorder %s30, 0
      %p227 = por %p225, %p226
      %s229 = sadd.s32 %s228, 1
      %p232 = scmp.eq.s32.totalorder %s24, 1
      %p233 = scmp.ne.s32.totalorder %s228, %s230
      %p234 = scmp.eq.s32.totalorder %s24, 0
      %p235 = por %p233, %p234
      %p236 = scmp.ne.s32.totalorder %s228, %s230
      %p237 = scmp.eq.s32.totalorder %s29, 1
      %p238 = por %p236, %p237
      %p239 = scmp.ne.s32.totalorder %s230, %s231
      %p240 = scmp.eq.s32.totalorder %s29, 0
      %p241 = por %p239, %p240
      %p242 = scmp.ne.s32.totalorder %s230, %s231
      %p243 = scmp.eq.s32.totalorder %s30, 1
      %p244 = por %p242, %p243
      %p246 = scmp.ne.s32.totalorder %s231, %s245
      %p247 = scmp.eq.s32.totalorder %s30, 0
      %p248 = por %p246, %p247
      %s250 = sadd.s32 %s249, 1
      %p253 = scmp.eq.s32.totalorder %s24, 1
      %p254 = scmp.ne.s32.totalorder %s249, %s251
      %p255 = scmp.eq.s32.totalorder %s24, 0
      %p256 = por %p254, %p255
      %p257 = scmp.ne.s32.totalorder %s249, %s251
      %p258 = scmp.eq.s32.totalorder %s29, 1
      %p259 = por %p257, %p258
      %p260 = scmp.ne.s32.totalorder %s251, %s252
      %p261 = scmp.eq.s32.totalorder %s29, 0
      %p262 = por %p260, %p261
      %p263 = scmp.ne.s32.totalorder %s251, %s252
      %p264 = scmp.eq.s32.totalorder %s30, 1
      %p265 = por %p263, %p264
      %p267 = scmp.ne.s32.totalorder %s252, %s266
      %p268 = scmp.eq.s32.totalorder %s30, 0
      %p269 = por %p267, %p268
      %s270 = ssub.s32 %s31, %s43
      %s271 = ssub.s32 %s32, %s39
      %s272 = sor.u32 %s270, %s271
      %p273 = scmp.eq.s32.totalorder %s272, 0
      %s275 = sadd.s32 %s274, 1
      %s276 = scalar_select %p273, %s274, %s275
      %p279 = pneg %p273
      %p280 = scmp.eq.s32.totalorder %s24, 1
      %p281 = por %p279, %p280
      %p282 = scmp.ne.s32.totalorder %s274, %s277
      %p283 = scmp.eq.s32.totalorder %s24, 0
      %p284 = por %p282, %p283
      %p285 = scmp.ne.s32.totalorder %s274, %s277
      %p286 = scmp.eq.s32.totalorder %s29, 1
      %p287 = por %p285, %p286
      %p288 = scmp.ne.s32.totalorder %s277, %s278
      %p289 = scmp.eq.s32.totalorder %s29, 0
      %p290 = por %p288, %p289
      %p291 = scmp.ne.s32.totalorder %s277, %s278
      %p292 = scmp.eq.s32.totalorder %s30, 1
      %p293 = por %p291, %p292
      %p295 = scmp.ne.s32.totalorder %s278, %s294
      %p296 = scmp.eq.s32.totalorder %s30, 0
      %p297 = por %p295, %p296
      %p298 = scmp.le.s32.totalorder 1, %s24
      %p299 = scmp.lt.s32.totalorder %s24, 3
      %p300 = pnand %p298, %p299
      %p301 = pneg %p300
      // Predicated region
      $region9: #{tpu_custom_call.1} parent=5 // pred_check
        _
      $region10: #{tpu_custom_call.1} parent=5 // pred_check_branch
        %303 = sbr.rel (%p300) target = $region12
      $region11: #{tpu_custom_call.1} parent=5 // pred_region
        %s304 = ssub.s32 %s24, 1
        // Predicated region
        $region13: #{tpu_custom_call.1} parent=11 // pred_check
          %p305 = pneg %p157
        $region14: #{tpu_custom_call.1} parent=11 // pred_check_branch
          %307 = sbr.rel (%p305) target = $region16
        $region15: #{tpu_custom_call.1} parent=11 // pred_region
          _
        $region16: #{tpu_custom_call.1} parent=11 // pred_fallthru
          _
        // Predicated region
        $region17: #{tpu_custom_call.1} parent=11 // pred_check
          %p308 = pneg %p178
        $region18: #{tpu_custom_call.1} parent=11 // pred_check_branch
          %310 = sbr.rel (%p308) target = $region20
        $region19: #{tpu_custom_call.1} parent=11 // pred_region
          _
        $region20: #{tpu_custom_call.1} parent=11 // pred_fallthru
          _
        // Predicated region
        $region21: #{tpu_custom_call.1} parent=11 // pred_check
          %p311 = pneg %p199
        $region22: #{tpu_custom_call.1} parent=11 // pred_check_branch
          %313 = sbr.rel (%p311) target = $region24
        $region23: #{tpu_custom_call.1} parent=11 // pred_region
          _
        $region24: #{tpu_custom_call.1} parent=11 // pred_fallthru
          _
        // Predicated region
        $region25: #{tpu_custom_call.1} parent=11 // pred_check
          %p314 = pneg %p220
        $region26: #{tpu_custom_call.1} parent=11 // pred_check_branch
          %316 = sbr.rel (%p314) target = $region28
        $region27: #{tpu_custom_call.1} parent=11 // pred_region
          _
        $region28: #{tpu_custom_call.1} parent=11 // pred_fallthru
          _
        // Predicated region
        $region29: #{tpu_custom_call.1} parent=11 // pred_check
          %p317 = pneg %p241
        $region30: #{tpu_custom_call.1} parent=11 // pred_check_branch
          %319 = sbr.rel (%p317) target = $region32
        $region31: #{tpu_custom_call.1} parent=11 // pred_region
          _
        $region32: #{tpu_custom_call.1} parent=11 // pred_fallthru
          _
        // Predicated region
        $region33: #{tpu_custom_call.1} parent=11 // pred_check
          %p320 = pneg %p262
        $region34: #{tpu_custom_call.1} parent=11 // pred_check_branch
          %322 = sbr.rel (%p320) target = $region36
        $region35: #{tpu_custom_call.1} parent=11 // pred_region
          _
        $region36: #{tpu_custom_call.1} parent=11 // pred_fallthru
          _
      $region12: #{tpu_custom_call.1} parent=5 // pred_fallthru
        _
      %p323 = scmp.lt.s32.totalorder %s24, 2
      // Predicated region
      $region37: #{tpu_custom_call.1} parent=5 // pred_check
        %p324 = pneg %p323
      $region38: #{tpu_custom_call.1} parent=5 // pred_check_branch
        %326 = sbr.rel (%p324) target = $region40
      $region39: #{tpu_custom_call.1} parent=5 // pred_region
        // Predicated region
        $region41: #{tpu_custom_call.1} parent=39 // pred_check
          %p327 = pneg %p66
        $region42: #{tpu_custom_call.1} parent=39 // pred_check_branch
          %329 = sbr.rel (%p327) target = $region44
        $region43: #{tpu_custom_call.1} parent=39 // pred_region
          %s330 = smul.u32 %s32, 16
          %s331 = ssub.s32 %s330, 1
          %p332 = scmp.gt.s32.totalorder %s331, 0
          %s333 = scalar_select %p332, %s331, 0
          %p334 = scmp.lt.s32.totalorder %s31, 1
          %s335 = scalar_select %p334, %s31, 1
          %p336 = scmp.lt.s32.totalorder %s333, 15
          %s337 = scalar_select %p336, %s333, 15
          %s338 = smul.addr %s337, 2
          %s339 = smul.addr %s335, 32
          %s340 = sadd.s32 %s338, %s339
          %s341 = smul.addr %s340, 4
          %s342 = scalar_lea.vmem %s0, %s341
          %s343 = smul.u32 %s32, 16
          %s344 = ssub.s32 %s343, 1
          %p345 = scmp.gt.s32.totalorder %s344, 0
          %s346 = scalar_select %p345, %s344, 0
        $region44: #{tpu_custom_call.1} parent=39 // pred_fallthru
          _
        // Predicated region
        $region45: #{tpu_custom_call.1} parent=39 // pred_check
          %p347 = pneg %p94
        $region46: #{tpu_custom_call.1} parent=39 // pred_check_branch
          %349 = sbr.rel (%p347) target = $region48
        $region47: #{tpu_custom_call.1} parent=39 // pred_region
          %s350 = sand.u32 %s84, 1
          %s351 = scalar_lea.sflag [#allocation3], %s350
          %s352 = sand.u32 %s84, 1
          %s353 = smul.addr %s352, 128
          %s354 = scalar_lea.vmem [#allocation2], %s353
          %s355 = smul.u32 16, %s32
          %357 = vsyncadd %s351, 0
          %s358 = smul.addr %s355, 2
          %s359 = smul.addr %s31, 32
          %s360 = sadd.s32 %s358, %s359
          %s361 = smul.addr %s360, 4
          %s362 = scalar_lea.hbm %s1, %s361
          %s363 = sshll.u32 %s362, 4
          %s364 = int_to_ptr.hbm [resolvable:$true] %s363
          %s365 = sshll.u32 %s354, 4
          %s366 = int_to_ptr.vmem [resolvable:$true] %s365
          %371 = dma.hbm_to_vmem [thread:$0]  %s364, 2048, %s366, %s351, 64, 64, 4
        $region48: #{tpu_custom_call.1} parent=39 // pred_fallthru
          _
        // Predicated region
        $region49: #{tpu_custom_call.1} parent=39 // pred_check
          %p372 = pneg %p130
        $region50: #{tpu_custom_call.1} parent=39 // pred_check_branch
          %374 = sbr.rel (%p372) target = $region52
        $region51: #{tpu_custom_call.1} parent=39 // pred_region
          %s375 = sand.u32 %s120, 1
          %s376 = scalar_lea.sflag [#allocation6], %s375
          %s377 = sand.u32 %s120, 1
          %s378 = smul.addr %s377, 8
          %s379 = scalar_lea.vmem [#allocation5], %s378
          %s380 = sadd.s32 %s32, 1
          %s381 = smul.u32 %s380, 16
          %p382 = scmp.lt.s32.totalorder %s381, 15
          %s383 = scalar_select %p382, %s381, 15
          %385 = vsyncadd %s376, 0
          %s386 = smul.addr %s383, 2
          %s387 = smul.addr %s31, 32
          %s388 = sadd.s32 %s386, %s387
          %s389 = smul.addr %s388, 4
          %s390 = scalar_lea.hbm %s2, %s389
          %s391 = sshll.u32 %s390, 4
          %s392 = int_to_ptr.hbm [resolvable:$true] %s391
          %s393 = sshll.u32 %s379, 4
          %s394 = int_to_ptr.vmem [resolvable:$true] %s393
          %399 = dma.hbm_to_vmem [thread:$0]  %s392, 128, %s394, %s376, 64, 64, 4
        $region52: #{tpu_custom_call.1} parent=39 // pred_fallthru
          _
      $region40: #{tpu_custom_call.1} parent=5 // pred_fallthru
        _
      %p400 = scmp.le.s32.totalorder 1, %s24
      %p401 = scmp.lt.s32.totalorder %s24, 3
      %p402 = pnand %p400, %p401
      %p403 = pneg %p402
      // Predicated region
      $region53: #{tpu_custom_call.1} parent=5 // pred_check
        _
      $region54: #{tpu_custom_call.1} parent=5 // pred_check_branch
        %405 = sbr.rel (%p402) target = $region56
      $region55: #{tpu_custom_call.1} parent=5 // pred_region
        %s406 = ssub.s32 %s24, 1
        %s407 = sand.u32 %s87, 1
        %s408 = scalar_lea.sflag [#allocation3], %s407
        %s409 = sand.u32 %s87, 1
        %s410 = smul.addr %s409, 128
        %s411 = scalar_lea.vmem [#allocation2], %s410
        // Predicated region
        $region57: #{tpu_custom_call.1} parent=55 // pred_check
          %p412 = pneg %p100
        $region58: #{tpu_custom_call.1} parent=55 // pred_check_branch
          %414 = sbr.rel (%p412) target = $region60
        $region59: #{tpu_custom_call.1} parent=55 // pred_region
          %416 = dma.done %s408, 2048
        $region60: #{tpu_custom_call.1} parent=55 // pred_fallthru
          _
        %s417 = sand.u32 %s123, 1
        %s418 = scalar_lea.sflag [#allocation6], %s417
        %s419 = sand.u32 %s123, 1
        %s420 = smul.addr %s419, 8
        %s421 = scalar_lea.vmem [#allocation5], %s420
        // Predicated region
        $region61: #{tpu_custom_call.1} parent=55 // pred_check
          %p422 = pneg %p136
        $region62: #{tpu_custom_call.1} parent=55 // pred_check_branch
          %424 = sbr.rel (%p422) target = $region64
        $region63: #{tpu_custom_call.1} parent=55 // pred_region
          %426 = dma.done %s418, 128
        $region64: #{tpu_custom_call.1} parent=55 // pred_fallthru
          _
        %s427 = smul.u32 %s34, 16
        %s428 = ssub.s32 %s427, 1
        %p429 = scmp.gt.s32.totalorder %s428, 0
        %s430 = scalar_select %p429, %s428, 0
        %p431 = scmp.lt.s32.totalorder %s33, 1
        %s432 = scalar_select %p431, %s33, 1
        %p433 = scmp.lt.s32.totalorder %s430, 15
        %s434 = scalar_select %p433, %s430, 15
        %s435 = smul.addr %s434, 2
        %s436 = smul.addr %s432, 32
        %s437 = sadd.s32 %s435, %s436
        %s438 = smul.addr %s437, 4
        %s439 = scalar_lea.vmem %s0, %s438
        %p440 = pneg %p72
        %p441 = pneg %p69
        %s442 = sand.u32 %s87, 1
        %s443 = scalar_lea.sflag [#allocation3], %s442
        %s444 = sand.u32 %s87, 1
        %s445 = smul.addr %s444, 128
        %s446 = scalar_lea.vmem [#allocation2], %s445
        %p447 = pneg %p100
        %p448 = pneg %p97
        %s449 = sand.u32 %s123, 1
        %s450 = scalar_lea.sflag [#allocation6], %s449
        %s451 = sand.u32 %s123, 1
        %s452 = smul.addr %s451, 8
        %s453 = scalar_lea.vmem [#allocation5], %s452
        %p454 = pneg %p136
        %p455 = pneg %p133
        %p456 = pneg %p157
        %p457 = pneg %p154
        %p458 = pneg %p178
        %p459 = pneg %p175
        %p460 = pneg %p199
        %p461 = pneg %p196
        %p462 = pneg %p220
        %p463 = pneg %p217
        %p464 = pneg %p241
        %p465 = pneg %p238
        %p466 = pneg %p262
        %p467 = pneg %p259
        %p468 = pneg %p290
        %p469 = pneg %p287
        %s470 = sand.u32 %s277, 1
        %s471 = scalar_lea.sflag [#allocation4], %s470
        %s472 = sand.u32 %s277, 1
        %s473 = smul.addr %s472, 128
        %s474 = scalar_lea.vmem [#allocation7], %s473
        %s475 = smul.u32 %s34, 16
        %s476 = ssub.s32 %s475, 1
        %p477 = scmp.gt.s32.totalorder %s476, 0
        %s478 = scalar_select %p477, %s476, 0
        %p479 = scmp.lt.s32.totalorder %s33, 1
        %s480 = scalar_select %p479, %s33, 1
        %p481 = scmp.lt.s32.totalorder %s478, 15
        %s482 = scalar_select %p481, %s478, 15
        %s483 = smul.addr %s482, 2
        %s484 = smul.addr %s480, 32
        %s485 = sadd.s32 %s483, %s484
        %s486 = smul.addr %s485, 4
        %s487 = scalar_lea.vmem %s0, %s486
        %s488 = smul.u32 %s34, 16
        %s489 = ssub.s32 %s488, 1
        %p490 = scmp.gt.s32.totalorder %s489, 0
        %s491 = scalar_select %p490, %s489, 0
        %s492 = smul.u32 16, %s34
        %s493 = sadd.s32 %s34, 1
        %s494 = smul.u32 %s493, 16
        %p495 = scmp.lt.s32.totalorder %s494, 15
        %s496 = scalar_select %p495, %s494, 15
        %s497 = smul.u32 16, %s34
        %v499 = vld [vmem:[%s411] sm:$0xf]
        %v500 = vld [vmem:[%s411 + $0x4] sm:$0xf]
        %v501 = vld [vmem:[%s411 + $0x8] sm:$0xf]
        %v502 = vld [vmem:[%s411 + $0xc] sm:$0xf]
        %v503 = vld [vmem:[%s411 + $0x10] sm:$0xf]
        %v504 = vld [vmem:[%s411 + $0x14] sm:$0xf]
        %v505 = vld [vmem:[%s411 + $0x18] sm:$0xf]
        %v506 = vld [vmem:[%s411 + $0x1c] sm:$0xf]
        %v507 = vld [vmem:[%s411 + $0x20] sm:$0xf]
        %v508 = vld [vmem:[%s411 + $0x24] sm:$0xf]
        %v509 = vld [vmem:[%s411 + $0x28] sm:$0xf]
        %v510 = vld [vmem:[%s411 + $0x2c] sm:$0xf]
        %v511 = vld [vmem:[%s411 + $0x30] sm:$0xf]
        %v512 = vld [vmem:[%s411 + $0x34] sm:$0xf]
        %v513 = vld [vmem:[%s411 + $0x38] sm:$0xf]
        %v514 = vld [vmem:[%s411 + $0x3c] sm:$0xf]
        %v515 = vld [vmem:[%s411 + $0x40] sm:$0xf]
        %v516 = vld [vmem:[%s411 + $0x44] sm:$0xf]
        %v517 = vld [vmem:[%s411 + $0x48] sm:$0xf]
        %v518 = vld [vmem:[%s411 + $0x4c] sm:$0xf]
        %v519 = vld [vmem:[%s411 + $0x50] sm:$0xf]
        %v520 = vld [vmem:[%s411 + $0x54] sm:$0xf]
        %v521 = vld [vmem:[%s411 + $0x58] sm:$0xf]
        %v522 = vld [vmem:[%s411 + $0x5c] sm:$0xf]
        %v523 = vld [vmem:[%s411 + $0x60] sm:$0xf]
        %v524 = vld [vmem:[%s411 + $0x64] sm:$0xf]
        %v525 = vld [vmem:[%s411 + $0x68] sm:$0xf]
        %v526 = vld [vmem:[%s411 + $0x6c] sm:$0xf]
        %v527 = vld [vmem:[%s411 + $0x70] sm:$0xf]
        %v528 = vld [vmem:[%s411 + $0x74] sm:$0xf]
        %v529 = vld [vmem:[%s411 + $0x78] sm:$0xf]
        %v530 = vld [vmem:[%s411 + $0x7c] sm:$0xf]
        %v531 = vld [vmem:[%s3] sm:$0xf]
        %v532 = vld [vmem:[%s3 + $0x4] sm:$0xf]
        %v533 = vld [vmem:[%s3 + $0x8] sm:$0xf]
        %v534 = vld [vmem:[%s3 + $0xc] sm:$0xf]
        %v535 = vld [vmem:[%s3 + $0x10] sm:$0xf]
        %v536 = vld [vmem:[%s3 + $0x14] sm:$0xf]
        %v537 = vld [vmem:[%s3 + $0x18] sm:$0xf]
        %v538 = vld [vmem:[%s3 + $0x1c] sm:$0xf]
        %v539 = vld [vmem:[%s3 + $0x20] sm:$0xf]
        %v540 = vld [vmem:[%s3 + $0x24] sm:$0xf]
        %v541 = vld [vmem:[%s3 + $0x28] sm:$0xf]
        %v542 = vld [vmem:[%s3 + $0x2c] sm:$0xf]
        %v543 = vld [vmem:[%s3 + $0x30] sm:$0xf]
        %v544 = vld [vmem:[%s3 + $0x34] sm:$0xf]
        %v545 = vld [vmem:[%s3 + $0x38] sm:$0xf]
        %v546 = vld [vmem:[%s3 + $0x3c] sm:$0xf]
        %v547 = vld [vmem:[%s6] sm:$0x1]
        %v549 = vperm.slane %v547, 0
        %v583 = vunpack.c.l.b16 %v499
        %v584 = vunpack.c.l.b16 %v500
        %v585 = vunpack.c.l.b16 %v501
        %v586 = vunpack.c.l.b16 %v502
        %v587 = vunpack.c.l.b16 %v503
        %v588 = vunpack.c.l.b16 %v504
        %v589 = vunpack.c.l.b16 %v505
        %v590 = vunpack.c.l.b16 %v506
        %v591 = vunpack.c.l.b16 %v507
        %v592 = vunpack.c.l.b16 %v508
        %v593 = vunpack.c.l.b16 %v509
        %v594 = vunpack.c.l.b16 %v510
        %v595 = vunpack.c.l.b16 %v511
        %v596 = vunpack.c.l.b16 %v512
        %v597 = vunpack.c.l.b16 %v513
        %v598 = vunpack.c.l.b16 %v514
        %v599 = vunpack.c.l.b16 %v515
        %v600 = vunpack.c.l.b16 %v516
        %v601 = vunpack.c.l.b16 %v517
        %v602 = vunpack.c.l.b16 %v518
        %v603 = vunpack.c.l.b16 %v519
        %v604 = vunpack.c.l.b16 %v520
        %v605 = vunpack.c.l.b16 %v521
        %v606 = vunpack.c.l.b16 %v522
        %v607 = vunpack.c.l.b16 %v523
        %v608 = vunpack.c.l.b16 %v524
        %v609 = vunpack.c.l.b16 %v525
        %v610 = vunpack.c.l.b16 %v526
        %v611 = vunpack.c.l.b16 %v527
        %v612 = vunpack.c.l.b16 %v528
        %v613 = vunpack.c.l.b16 %v529
        %v614 = vunpack.c.l.b16 %v530
        %v615 = vpack.c.b16 %v584, %v583
        %v616 = vpack.c.b16 %v586, %v585
        %v617 = vpack.c.b16 %v588, %v587
        %v618 = vpack.c.b16 %v590, %v589
        %v619 = vpack.c.b16 %v592, %v591
        %v620 = vpack.c.b16 %v594, %v593
        %v621 = vpack.c.b16 %v596, %v595
        %v622 = vpack.c.b16 %v598, %v597
        %v623 = vpack.c.b16 %v600, %v599
        %v624 = vpack.c.b16 %v602, %v601
        %v625 = vpack.c.b16 %v604, %v603
        %v626 = vpack.c.b16 %v606, %v605
        %v627 = vpack.c.b16 %v608, %v607
        %v628 = vpack.c.b16 %v610, %v609
        %v629 = vpack.c.b16 %v612, %v611
        %v630 = vpack.c.b16 %v614, %v613
        %v663 = vunpack.c.l.b16 %v531
        %v664 = vunpack.c.l.b16 %v532
        %v665 = vunpack.c.l.b16 %v533
        %v666 = vunpack.c.l.b16 %v534
        %v667 = vunpack.c.l.b16 %v535
        %v668 = vunpack.c.l.b16 %v536
        %v669 = vunpack.c.l.b16 %v537
        %v670 = vunpack.c.l.b16 %v538
        %v671 = vunpack.c.l.b16 %v539
        %v672 = vunpack.c.l.b16 %v540
        %v673 = vunpack.c.l.b16 %v541
        %v674 = vunpack.c.l.b16 %v542
        %v675 = vunpack.c.l.b16 %v543
        %v676 = vunpack.c.l.b16 %v544
        %v677 = vunpack.c.l.b16 %v545
        %v678 = vunpack.c.l.b16 %v546
        %v679 = vpack.c.b16 %v664, %v663
        %v680 = vpack.c.b16 %v666, %v665
        %v681 = vpack.c.b16 %v668, %v667
        %v682 = vpack.c.b16 %v670, %v669
        %v683 = vpack.c.b16 %v672, %v671
        %v684 = vpack.c.b16 %v674, %v673
        %v685 = vpack.c.b16 %v676, %v675
        %v686 = vpack.c.b16 %v678, %v677
        %695 = vmatpush.bf16.msra.mxu0 %v686
        %696 = vmatpush.bf16.msra.mxu0 %v685
        %697 = vmatpush.bf16.msra.mxu0 %v684
        %698 = vmatpush.bf16.msra.mxu0 %v683
        %699 = vmatpush.bf16.msra.mxu0 %v682
        %700 = vmatpush.bf16.msra.mxu0 %v681
        %701 = vmatpush.bf16.msra.mxu0 %v680
        %702 = vmatpush.bf16.msra.mxu0 %v679
        %703 = vmatmul.bf16.gmra.mxu0 %v615
        %v704 = vpop.f32.mrf.mxu0
        %v705 = vadd.f32 %v549, %v704
        %v706 = vpop.f32.mrf.mxu0
        %v707 = vadd.f32 %v549, %v706
        %708 = vmatmul.bf16.gmra.mxu0 %v616
        %v709 = vpop.f32.mrf.mxu0
        %v710 = vadd.f32 %v549, %v709
        %v711 = vpop.f32.mrf.mxu0
        %v712 = vadd.f32 %v549, %v711
        %713 = vmatmul.bf16.gmra.mxu0 %v617
        %v714 = vpop.f32.mrf.mxu0
        %v715 = vadd.f32 %v549, %v714
        %v716 = vpop.f32.mrf.mxu0
        %v717 = vadd.f32 %v549, %v716
        %718 = vmatmul.bf16.gmra.mxu0 %v618
        %v719 = vpop.f32.mrf.mxu0
        %v720 = vadd.f32 %v549, %v719
        %v721 = vpop.f32.mrf.mxu0
        %v722 = vadd.f32 %v549, %v721
        %723 = vmatmul.bf16.gmra.mxu0 %v619
        %v724 = vpop.f32.mrf.mxu0
        %v725 = vadd.f32 %v549, %v724
        %v726 = vpop.f32.mrf.mxu0
        %v727 = vadd.f32 %v549, %v726
        %728 = vmatmul.bf16.gmra.mxu0 %v620
        %v729 = vpop.f32.mrf.mxu0
        %v730 = vadd.f32 %v549, %v729
        %v731 = vpop.f32.mrf.mxu0
        %v732 = vadd.f32 %v549, %v731
        %733 = vmatmul.bf16.gmra.mxu0 %v621
        %v734 = vpop.f32.mrf.mxu0
        %v735 = vadd.f32 %v549, %v734
        %v736 = vpop.f32.mrf.mxu0
        %v737 = vadd.f32 %v549, %v736
        %738 = vmatmul.bf16.gmra.mxu0 %v622
        %v739 = vpop.f32.mrf.mxu0
        %v740 = vadd.f32 %v549, %v739
        %v741 = vpop.f32.mrf.mxu0
        %v742 = vadd.f32 %v549, %v741
        %743 = vmatmul.bf16.gmra.mxu0 %v623
        %v744 = vpop.f32.mrf.mxu0
        %v745 = vadd.f32 %v549, %v744
        %v746 = vpop.f32.mrf.mxu0
        %v747 = vadd.f32 %v549, %v746
        %748 = vmatmul.bf16.gmra.mxu0 %v624
        %v749 = vpop.f32.mrf.mxu0
        %v750 = vadd.f32 %v549, %v749
        %v751 = vpop.f32.mrf.mxu0
        %v752 = vadd.f32 %v549, %v751
        %753 = vmatmul.bf16.gmra.mxu0 %v625
        %v754 = vpop.f32.mrf.mxu0
        %v755 = vadd.f32 %v549, %v754
        %v756 = vpop.f32.mrf.mxu0
        %v757 = vadd.f32 %v549, %v756
        %758 = vmatmul.bf16.gmra.mxu0 %v626
        %v759 = vpop.f32.mrf.mxu0
        %v760 = vadd.f32 %v549, %v759
        %v761 = vpop.f32.mrf.mxu0
        %v762 = vadd.f32 %v549, %v761
        %763 = vmatmul.bf16.gmra.mxu0 %v627
        %v764 = vpop.f32.mrf.mxu0
        %v765 = vadd.f32 %v549, %v764
        %v766 = vpop.f32.mrf.mxu0
        %v767 = vadd.f32 %v549, %v766
        %768 = vmatmul.bf16.gmra.mxu0 %v628
        %v769 = vpop.f32.mrf.mxu0
        %v770 = vadd.f32 %v549, %v769
        %v771 = vpop.f32.mrf.mxu0
        %v772 = vadd.f32 %v549, %v771
        %773 = vmatmul.bf16.gmra.mxu0 %v629
        %v774 = vpop.f32.mrf.mxu0
        %v775 = vadd.f32 %v549, %v774
        %v776 = vpop.f32.mrf.mxu0
        %v777 = vadd.f32 %v549, %v776
        %778 = vmatmul.bf16.gmra.mxu0 %v630
        %v779 = vpop.f32.mrf.mxu0
        %v780 = vadd.f32 %v549, %v779
        %v781 = vpop.f32.mrf.mxu0
        %v782 = vadd.f32 %v549, %v781
        %783 = vdwg.mxu0
        %v784 = vmax.f32 %v705, 0.0
        %v785 = vmax.f32 %v707, 0.0
        %v786 = vmax.f32 %v710, 0.0
        %v787 = vmax.f32 %v712, 0.0
        %v788 = vmax.f32 %v715, 0.0
        %v789 = vmax.f32 %v717, 0.0
        %v790 = vmax.f32 %v720, 0.0
        %v791 = vmax.f32 %v722, 0.0
        %v792 = vmax.f32 %v725, 0.0
        %v793 = vmax.f32 %v727, 0.0
        %v794 = vmax.f32 %v730, 0.0
        %v795 = vmax.f32 %v732, 0.0
        %v796 = vmax.f32 %v735, 0.0
        %v797 = vmax.f32 %v737, 0.0
        %v798 = vmax.f32 %v740, 0.0
        %v799 = vmax.f32 %v742, 0.0
        %v800 = vmax.f32 %v745, 0.0
        %v801 = vmax.f32 %v747, 0.0
        %v802 = vmax.f32 %v750, 0.0
        %v803 = vmax.f32 %v752, 0.0
        %v804 = vmax.f32 %v755, 0.0
        %v805 = vmax.f32 %v757, 0.0
        %v806 = vmax.f32 %v760, 0.0
        %v807 = vmax.f32 %v762, 0.0
        %v808 = vmax.f32 %v765, 0.0
        %v809 = vmax.f32 %v767, 0.0
        %v810 = vmax.f32 %v770, 0.0
        %v811 = vmax.f32 %v772, 0.0
        %v812 = vmax.f32 %v775, 0.0
        %v813 = vmax.f32 %v777, 0.0
        %v814 = vmax.f32 %v780, 0.0
        %v815 = vmax.f32 %v782, 0.0
        %v816 = vld [vmem:[%s487] sm:$0xf]
        %v817 = vld [vmem:[%s487 + $0x4] sm:$0xf]
        %v820 = vunpack.c.l.b16 %v816
        %v821 = vunpack.c.l.b16 %v817
        %v822 = vpack.c.b16 %v821, %v820
        %824 = vmatpush.bf16.msra.mxu0 %v686
        %825 = vmatpush.bf16.msra.mxu0 %v685
        %826 = vmatpush.bf16.msra.mxu0 %v684
        %827 = vmatpush.bf16.msra.mxu0 %v683
        %828 = vmatpush.bf16.msra.mxu0 %v682
        %829 = vmatpush.bf16.msra.mxu0 %v681
        %830 = vmatpush.bf16.msra.mxu0 %v680
        %831 = vmatpush.bf16.msra.mxu0 %v679
        %832 = vmatmul.bf16.gmra.mxu0 %v822
        %v833 = vpop.f32.mrf.mxu0
        %v834 = vadd.f32 %v549, %v833
        %v835 = vpop.f32.mrf.mxu0
        %v836 = vadd.f32 %v549, %v835
        %837 = vdwg.mxu0
        %v838 = vmax.f32 %v834, 0.0
        %v839 = vmax.f32 %v836, 0.0
        %v840 = vld [vmem:[%s421] sm:$0xf]
        %v841 = vld [vmem:[%s421 + $0x4] sm:$0xf]
        %v844 = vunpack.c.l.b16 %v840
        %v845 = vunpack.c.l.b16 %v841
        %v846 = vpack.c.b16 %v845, %v844
        %848 = vmatpush.bf16.msra.mxu0 %v686
        %849 = vmatpush.bf16.msra.mxu0 %v685
        %850 = vmatpush.bf16.msra.mxu0 %v684
        %851 = vmatpush.bf16.msra.mxu0 %v683
        %852 = vmatpush.bf16.msra.mxu0 %v682
        %853 = vmatpush.bf16.msra.mxu0 %v681
        %854 = vmatpush.bf16.msra.mxu0 %v680
        %855 = vmatpush.bf16.msra.mxu0 %v679
        %856 = vmatmul.bf16.gmra.mxu0 %v846
        %v857 = vpop.f32.mrf.mxu0
        %v858 = vadd.f32 %v549, %v857
        %v859 = vpop.f32.mrf.mxu0
        %v860 = vadd.f32 %v549, %v859
        %861 = vdwg.mxu0
        %v862 = vmax.f32 %v858, 0.0
        %v863 = vmax.f32 %v860, 0.0
        %s864 = smul.u32 %s34, 16
        %s865 = ssub.s32 %s864, 1
        %p866 = scmp.ge.s32.totalorder %s865, 0
        %s867 = scalar_select %p866, 1, 0
        %s868 = scvt.s32.f32 %s867
        %v869 = vstv %s868
        %v870 = vmul.f32 %v838, %v869
        %v871 = vmul.f32 %v839, %v869
        %s872 = sadd.s32 %s34, 1
        %s873 = smul.u32 %s872, 16
        %p874 = scmp.lt.s32.totalorder %s873, 16
        %s875 = scalar_select %p874, 1, 0
        %s876 = scvt.s32.f32 %s875
        %v877 = vstv %s876
        %v878 = vmul.f32 %v862, %v877
        %v879 = vmul.f32 %v863, %v877
        %v880 = vlaneseq
        %v881 = vshrl.u32 %v880, 7
        %v882 = vadd.s32 %v881, 8
        %vm883 = vcmp.ge.s32.totalorder %v881, 1
        %vm884 = vcmp.ge.s32.totalorder %v882, 1
        %v885 = vrot.slane %v870, 7
        %v886 = vrot.slane %v784, 7
        %v887 = vrot.slane %v786, 7
        %v888 = vrot.slane %v788, 7
        %v889 = vrot.slane %v790, 7
        %v890 = vrot.slane %v792, 7
        %v891 = vrot.slane %v794, 7
        %v892 = vrot.slane %v796, 7
        %v893 = vrot.slane %v798, 7
        %v894 = vrot.slane %v800, 7
        %v895 = vrot.slane %v802, 7
        %v896 = vrot.slane %v804, 7
        %v897 = vrot.slane %v806, 7
        %v898 = vrot.slane %v808, 7
        %v899 = vrot.slane %v810, 7
        %v900 = vrot.slane %v812, 7
        %v901 = vrot.slane %v814, 7
        %v902 = vrot.slane %v878, 7
        %v903 = vrot.slane %v871, 7
        %v904 = vrot.slane %v785, 7
        %v905 = vrot.slane %v787, 7
        %v906 = vrot.slane %v789, 7
        %v907 = vrot.slane %v791, 7
        %v908 = vrot.slane %v793, 7
        %v909 = vrot.slane %v795, 7
        %v910 = vrot.slane %v797, 7
        %v911 = vrot.slane %v799, 7
        %v912 = vrot.slane %v801, 7
        %v913 = vrot.slane %v803, 7
        %v914 = vrot.slane %v805, 7
        %v915 = vrot.slane %v807, 7
        %v916 = vrot.slane %v809, 7
        %v917 = vrot.slane %v811, 7
        %v918 = vrot.slane %v813, 7
        %v919 = vrot.slane %v815, 7
        %v920 = vrot.slane %v879, 7
        %vm921 = vcmp.lt.s32.totalorder %v881, 1
        %v922 = vsel %vm921, %v885, %v903
        %v923 = vsel %vm921, %v886, %v904
        %v924 = vsel %vm921, %v887, %v905
        %v925 = vsel %vm921, %v888, %v906
        %v926 = vsel %vm921, %v889, %v907
        %v927 = vsel %vm921, %v890, %v908
        %v928 = vsel %vm921, %v891, %v909
        %v929 = vsel %vm921, %v892, %v910
        %v930 = vsel %vm921, %v893, %v911
        %v931 = vsel %vm921, %v894, %v912
        %v932 = vsel %vm921, %v895, %v913
        %v933 = vsel %vm921, %v896, %v914
        %v934 = vsel %vm921, %v897, %v915
        %v935 = vsel %vm921, %v898, %v916
        %v936 = vsel %vm921, %v899, %v917
        %v937 = vsel %vm921, %v900, %v918
        %v938 = vsel %vm921, %v901, %v919
        %v939 = vsel %vm921, %v902, %v920
        %v940 = vsel %vm921, %v903, %v885
        %v941 = vsel %vm921, %v904, %v886
        %v942 = vsel %vm921, %v905, %v887
        %v943 = vsel %vm921, %v906, %v888
        %v944 = vsel %vm921, %v907, %v889
        %v945 = vsel %vm921, %v908, %v890
        %v946 = vsel %vm921, %v909, %v891
        %v947 = vsel %vm921, %v910, %v892
        %v948 = vsel %vm921, %v911, %v893
        %v949 = vsel %vm921, %v912, %v894
        %v950 = vsel %vm921, %v913, %v895
        %v951 = vsel %vm921, %v914, %v896
        %v952 = vsel %vm921, %v915, %v897
        %v953 = vsel %vm921, %v916, %v898
        %v954 = vsel %vm921, %v917, %v899
        %v955 = vsel %vm921, %v918, %v900
        %v956 = vsel %vm921, %v919, %v901
        %v957 = vsel %vm921, %v920, %v902
        %v958 = vsel %vm883, 1, 0
        %v959 = vsel %vm884, 1, 0
        %vm960 = vcmp.eq.s32.totalorder %v958, 1
        %vm961 = vcmp.eq.s32.totalorder %v959, 1
        %v962 = vsel %vm960, %v940, 0.0
        %v963 = vsel %vm961, %v922, 0.0
        %v964 = vsel %vm960, %v941, 0.0
        %v965 = vsel %vm961, %v923, 0.0
        %v966 = vsel %vm960, %v942, 0.0
        %v967 = vsel %vm961, %v924, 0.0
        %v968 = vsel %vm960, %v943, 0.0
        %v969 = vsel %vm961, %v925, 0.0
        %v970 = vsel %vm960, %v944, 0.0
        %v971 = vsel %vm961, %v926, 0.0
        %v972 = vsel %vm960, %v945, 0.0
        %v973 = vsel %vm961, %v927, 0.0
        %v974 = vsel %vm960, %v946, 0.0
        %v975 = vsel %vm961, %v928, 0.0
        %v976 = vsel %vm960, %v947, 0.0
        %v977 = vsel %vm961, %v929, 0.0
        %v978 = vsel %vm960, %v948, 0.0
        %v979 = vsel %vm961, %v930, 0.0
        %v980 = vsel %vm960, %v949, 0.0
        %v981 = vsel %vm961, %v931, 0.0
        %v982 = vsel %vm960, %v950, 0.0
        %v983 = vsel %vm961, %v932, 0.0
        %v984 = vsel %vm960, %v951, 0.0
        %v985 = vsel %vm961, %v933, 0.0
        %v986 = vsel %vm960, %v952, 0.0
        %v987 = vsel %vm961, %v934, 0.0
        %v988 = vsel %vm960, %v953, 0.0
        %v989 = vsel %vm961, %v935, 0.0
        %v990 = vsel %vm960, %v954, 0.0
        %v991 = vsel %vm961, %v936, 0.0
        %v992 = vsel %vm960, %v955, 0.0
        %v993 = vsel %vm961, %v937, 0.0
        %v994 = vsel %vm960, %v956, 0.0
        %v995 = vsel %vm961, %v938, 0.0
        %v996 = vsel %vm960, %v957, 0.0
        %v997 = vsel %vm961, %v939, 0.0
        %vm998 = vcmp.lt.s32.totalorder %v881, 15
        %vm999 = vcmp.lt.s32.totalorder %v882, 15
        %v1000 = vrot.slane %v870, 1
        %v1001 = vrot.slane %v784, 1
        %v1002 = vrot.slane %v786, 1
        %v1003 = vrot.slane %v788, 1
        %v1004 = vrot.slane %v790, 1
        %v1005 = vrot.slane %v792, 1
        %v1006 = vrot.slane %v794, 1
        %v1007 = vrot.slane %v796, 1
        %v1008 = vrot.slane %v798, 1
        %v1009 = vrot.slane %v800, 1
        %v1010 = vrot.slane %v802, 1
        %v1011 = vrot.slane %v804, 1
        %v1012 = vrot.slane %v806, 1
        %v1013 = vrot.slane %v808, 1
        %v1014 = vrot.slane %v810, 1
        %v1015 = vrot.slane %v812, 1
        %v1016 = vrot.slane %v814, 1
        %v1017 = vrot.slane %v878, 1
        %v1018 = vrot.slane %v871, 1
        %v1019 = vrot.slane %v785, 1
        %v1020 = vrot.slane %v787, 1
        %v1021 = vrot.slane %v789, 1
        %v1022 = vrot.slane %v791, 1
        %v1023 = vrot.slane %v793, 1
        %v1024 = vrot.slane %v795, 1
        %v1025 = vrot.slane %v797, 1
        %v1026 = vrot.slane %v799, 1
        %v1027 = vrot.slane %v801, 1
        %v1028 = vrot.slane %v803, 1
        %v1029 = vrot.slane %v805, 1
        %v1030 = vrot.slane %v807, 1
        %v1031 = vrot.slane %v809, 1
        %v1032 = vrot.slane %v811, 1
        %v1033 = vrot.slane %v813, 1
        %v1034 = vrot.slane %v815, 1
        %v1035 = vrot.slane %v879, 1
        %vm1036 = vcmp.lt.s32.totalorder %v881, 7
        %v1037 = vsel %vm1036, %v1000, %v1018
        %v1038 = vsel %vm1036, %v1001, %v1019
        %v1039 = vsel %vm1036, %v1002, %v1020
        %v1040 = vsel %vm1036, %v1003, %v1021
        %v1041 = vsel %vm1036, %v1004, %v1022
        %v1042 = vsel %vm1036, %v1005, %v1023
        %v1043 = vsel %vm1036, %v1006, %v1024
        %v1044 = vsel %vm1036, %v1007, %v1025
        %v1045 = vsel %vm1036, %v1008, %v1026
        %v1046 = vsel %vm1036, %v1009, %v1027
        %v1047 = vsel %vm1036, %v1010, %v1028
        %v1048 = vsel %vm1036, %v1011, %v1029
        %v1049 = vsel %vm1036, %v1012, %v1030
        %v1050 = vsel %vm1036, %v1013, %v1031
        %v1051 = vsel %vm1036, %v1014, %v1032
        %v1052 = vsel %vm1036, %v1015, %v1033
        %v1053 = vsel %vm1036, %v1016, %v1034
        %v1054 = vsel %vm1036, %v1017, %v1035
        %v1055 = vsel %vm1036, %v1018, %v1000
        %v1056 = vsel %vm1036, %v1019, %v1001
        %v1057 = vsel %vm1036, %v1020, %v1002
        %v1058 = vsel %vm1036, %v1021, %v1003
        %v1059 = vsel %vm1036, %v1022, %v1004
        %v1060 = vsel %vm1036, %v1023, %v1005
        %v1061 = vsel %vm1036, %v1024, %v1006
        %v1062 = vsel %vm1036, %v1025, %v1007
        %v1063 = vsel %vm1036, %v1026, %v1008
        %v1064 = vsel %vm1036, %v1027, %v1009
        %v1065 = vsel %vm1036, %v1028, %v1010
        %v1066 = vsel %vm1036, %v1029, %v1011
        %v1067 = vsel %vm1036, %v1030, %v1012
        %v1068 = vsel %vm1036, %v1031, %v1013
        %v1069 = vsel %vm1036, %v1032, %v1014
        %v1070 = vsel %vm1036, %v1033, %v1015
        %v1071 = vsel %vm1036, %v1034, %v1016
        %v1072 = vsel %vm1036, %v1035, %v1017
        %v1073 = vsel %vm998, 1, 0
        %v1074 = vsel %vm999, 1, 0
        %vm1075 = vcmp.eq.s32.totalorder %v1073, 1
        %vm1076 = vcmp.eq.s32.totalorder %v1074, 1
        %v1077 = vsel %vm1075, %v1037, 0.0
        %v1078 = vsel %vm1076, %v1055, 0.0
        %v1079 = vsel %vm1075, %v1038, 0.0
        %v1080 = vsel %vm1076, %v1056, 0.0
        %v1081 = vsel %vm1075, %v1039, 0.0
        %v1082 = vsel %vm1076, %v1057, 0.0
        %v1083 = vsel %vm1075, %v1040, 0.0
        %v1084 = vsel %vm1076, %v1058, 0.0
        %v1085 = vsel %vm1075, %v1041, 0.0
        %v1086 = vsel %vm1076, %v1059, 0.0
        %v1087 = vsel %vm1075, %v1042, 0.0
        %v1088 = vsel %vm1076, %v1060, 0.0
        %v1089 = vsel %vm1075, %v1043, 0.0
        %v1090 = vsel %vm1076, %v1061, 0.0
        %v1091 = vsel %vm1075, %v1044, 0.0
        %v1092 = vsel %vm1076, %v1062, 0.0
        %v1093 = vsel %vm1075, %v1045, 0.0
        %v1094 = vsel %vm1076, %v1063, 0.0
        %v1095 = vsel %vm1075, %v1046, 0.0
        %v1096 = vsel %vm1076, %v1064, 0.0
        %v1097 = vsel %vm1075, %v1047, 0.0
        %v1098 = vsel %vm1076, %v1065, 0.0
        %v1099 = vsel %vm1075, %v1048, 0.0
        %v1100 = vsel %vm1076, %v1066, 0.0
        %v1101 = vsel %vm1075, %v1049, 0.0
        %v1102 = vsel %vm1076, %v1067, 0.0
        %v1103 = vsel %vm1075, %v1050, 0.0
        %v1104 = vsel %vm1076, %v1068, 0.0
        %v1105 = vsel %vm1075, %v1051, 0.0
        %v1106 = vsel %vm1076, %v1069, 0.0
        %v1107 = vsel %vm1075, %v1052, 0.0
        %v1108 = vsel %vm1076, %v1070, 0.0
        %v1109 = vsel %vm1075, %v1053, 0.0
        %v1110 = vsel %vm1076, %v1071, 0.0
        %v1111 = vsel %vm1075, %v1054, 0.0
        %v1112 = vsel %vm1076, %v1072, 0.0
        %1149 = vrot.lane.b32.xlu0 %v870, 32
        %v1150 = vpop.permute.xlu0 %1149
        %1151 = vrot.lane.b32.xlu0 %v871, 32
        %v1152 = vpop.permute.xlu0 %1151
        %1153 = vrot.lane.b32.xlu0 %v784, 32
        %v1154 = vpop.permute.xlu0 %1153
        %1155 = vrot.lane.b32.xlu0 %v785, 32
        %v1156 = vpop.permute.xlu0 %1155
        %1157 = vrot.lane.b32.xlu0 %v786, 32
        %v1158 = vpop.permute.xlu0 %1157
        %1159 = vrot.lane.b32.xlu0 %v787, 32
        %v1160 = vpop.permute.xlu0 %1159
        %1161 = vrot.lane.b32.xlu0 %v788, 32
        %v1162 = vpop.permute.xlu0 %1161
        %1163 = vrot.lane.b32.xlu0 %v789, 32
        %v1164 = vpop.permute.xlu0 %1163
        %1165 = vrot.lane.b32.xlu0 %v790, 32
        %v1166 = vpop.permute.xlu0 %1165
        %1167 = vrot.lane.b32.xlu0 %v791, 32
        %v1168 = vpop.permute.xlu0 %1167
        %1169 = vrot.lane.b32.xlu0 %v792, 32
        %v1170 = vpop.permute.xlu0 %1169
        %1171 = vrot.lane.b32.xlu0 %v793, 32
        %v1172 = vpop.permute.xlu0 %1171
        %1173 = vrot.lane.b32.xlu0 %v794, 32
        %v1174 = vpop.permute.xlu0 %1173
        %1175 = vrot.lane.b32.xlu0 %v795, 32
        %v1176 = vpop.permute.xlu0 %1175
        %1177 = vrot.lane.b32.xlu0 %v796, 32
        %v1178 = vpop.permute.xlu0 %1177
        %1179 = vrot.lane.b32.xlu0 %v797, 32
        %v1180 = vpop.permute.xlu0 %1179
        %1181 = vrot.lane.b32.xlu0 %v798, 32
        %v1182 = vpop.permute.xlu0 %1181
        %1183 = vrot.lane.b32.xlu0 %v799, 32
        %v1184 = vpop.permute.xlu0 %1183
        %1185 = vrot.lane.b32.xlu0 %v800, 32
        %v1186 = vpop.permute.xlu0 %1185
        %1187 = vrot.lane.b32.xlu0 %v801, 32
        %v1188 = vpop.permute.xlu0 %1187
        %1189 = vrot.lane.b32.xlu0 %v802, 32
        %v1190 = vpop.permute.xlu0 %1189
        %1191 = vrot.lane.b32.xlu0 %v803, 32
        %v1192 = vpop.permute.xlu0 %1191
        %1193 = vrot.lane.b32.xlu0 %v804, 32
        %v1194 = vpop.permute.xlu0 %1193
        %1195 = vrot.lane.b32.xlu0 %v805, 32
        %v1196 = vpop.permute.xlu0 %1195
        %1197 = vrot.lane.b32.xlu0 %v806, 32
        %v1198 = vpop.permute.xlu0 %1197
        %1199 = vrot.lane.b32.xlu0 %v807, 32
        %v1200 = vpop.permute.xlu0 %1199
        %1201 = vrot.lane.b32.xlu0 %v808, 32
        %v1202 = vpop.permute.xlu0 %1201
        %1203 = vrot.lane.b32.xlu0 %v809, 32
        %v1204 = vpop.permute.xlu0 %1203
        %1205 = vrot.lane.b32.xlu0 %v810, 32
        %v1206 = vpop.permute.xlu0 %1205
        %1207 = vrot.lane.b32.xlu0 %v811, 32
        %v1208 = vpop.permute.xlu0 %1207
        %1209 = vrot.lane.b32.xlu0 %v812, 32
        %v1210 = vpop.permute.xlu0 %1209
        %1211 = vrot.lane.b32.xlu0 %v813, 32
        %v1212 = vpop.permute.xlu0 %1211
        %1213 = vrot.lane.b32.xlu0 %v814, 32
        %v1214 = vpop.permute.xlu0 %1213
        %1215 = vrot.lane.b32.xlu0 %v815, 32
        %v1216 = vpop.permute.xlu0 %1215
        %1217 = vrot.lane.b32.xlu0 %v878, 32
        %v1218 = vpop.permute.xlu0 %1217
        %1219 = vrot.lane.b32.xlu0 %v879, 32
        %v1220 = vpop.permute.xlu0 %1219
        %1293 = vrot.lane.b32.xlu0 %v1077, 64
        %v1294 = vpop.permute.xlu0 %1293
        %1295 = vrot.lane.b32.xlu0 %v1078, 64
        %v1296 = vpop.permute.xlu0 %1295
        %1297 = vrot.lane.b32.xlu0 %v1079, 64
        %v1298 = vpop.permute.xlu0 %1297
        %1299 = vrot.lane.b32.xlu0 %v1080, 64
        %v1300 = vpop.permute.xlu0 %1299
        %1301 = vrot.lane.b32.xlu0 %v1081, 64
        %v1302 = vpop.permute.xlu0 %1301
        %1303 = vrot.lane.b32.xlu0 %v1082, 64
        %v1304 = vpop.permute.xlu0 %1303
        %1305 = vrot.lane.b32.xlu0 %v1083, 64
        %v1306 = vpop.permute.xlu0 %1305
        %1307 = vrot.lane.b32.xlu0 %v1084, 64
        %v1308 = vpop.permute.xlu0 %1307
        %1309 = vrot.lane.b32.xlu0 %v1085, 64
        %v1310 = vpop.permute.xlu0 %1309
        %1311 = vrot.lane.b32.xlu0 %v1086, 64
        %v1312 = vpop.permute.xlu0 %1311
        %1313 = vrot.lane.b32.xlu0 %v1087, 64
        %v1314 = vpop.permute.xlu0 %1313
        %1315 = vrot.lane.b32.xlu0 %v1088, 64
        %v1316 = vpop.permute.xlu0 %1315
        %1317 = vrot.lane.b32.xlu0 %v1089, 64
        %v1318 = vpop.permute.xlu0 %1317
        %1319 = vrot.lane.b32.xlu0 %v1090, 64
        %v1320 = vpop.permute.xlu0 %1319
        %1321 = vrot.lane.b32.xlu0 %v1091, 64
        %v1322 = vpop.permute.xlu0 %1321
        %1323 = vrot.lane.b32.xlu0 %v1092, 64
        %v1324 = vpop.permute.xlu0 %1323
        %1325 = vrot.lane.b32.xlu0 %v1093, 64
        %v1326 = vpop.permute.xlu0 %1325
        %1327 = vrot.lane.b32.xlu0 %v1094, 64
        %v1328 = vpop.permute.xlu0 %1327
        %1329 = vrot.lane.b32.xlu0 %v1095, 64
        %v1330 = vpop.permute.xlu0 %1329
        %1331 = vrot.lane.b32.xlu0 %v1096, 64
        %v1332 = vpop.permute.xlu0 %1331
        %1333 = vrot.lane.b32.xlu0 %v1097, 64
        %v1334 = vpop.permute.xlu0 %1333
        %1335 = vrot.lane.b32.xlu0 %v1098, 64
        %v1336 = vpop.permute.xlu0 %1335
        %1337 = vrot.lane.b32.xlu0 %v1099, 64
        %v1338 = vpop.permute.xlu0 %1337
        %1339 = vrot.lane.b32.xlu0 %v1100, 64
        %v1340 = vpop.permute.xlu0 %1339
        %1341 = vrot.lane.b32.xlu0 %v1101, 64
        %v1342 = vpop.permute.xlu0 %1341
        %1343 = vrot.lane.b32.xlu0 %v1102, 64
        %v1344 = vpop.permute.xlu0 %1343
        %1345 = vrot.lane.b32.xlu0 %v1103, 64
        %v1346 = vpop.permute.xlu0 %1345
        %1347 = vrot.lane.b32.xlu0 %v1104, 64
        %v1348 = vpop.permute.xlu0 %1347
        %1349 = vrot.lane.b32.xlu0 %v1105, 64
        %v1350 = vpop.permute.xlu0 %1349
        %1351 = vrot.lane.b32.xlu0 %v1106, 64
        %v1352 = vpop.permute.xlu0 %1351
        %1353 = vrot.lane.b32.xlu0 %v1107, 64
        %v1354 = vpop.permute.xlu0 %1353
        %1355 = vrot.lane.b32.xlu0 %v1108, 64
        %v1356 = vpop.permute.xlu0 %1355
        %1357 = vrot.lane.b32.xlu0 %v1109, 64
        %v1358 = vpop.permute.xlu0 %1357
        %1359 = vrot.lane.b32.xlu0 %v1110, 64
        %v1360 = vpop.permute.xlu0 %1359
        %1361 = vrot.lane.b32.xlu0 %v1111, 64
        %v1362 = vpop.permute.xlu0 %1361
        %1363 = vrot.lane.b32.xlu0 %v1112, 64
        %v1364 = vpop.permute.xlu0 %1363
        %vm1401 = vcmask 261120
        %v1402 = vsel %vm1401, %v962, %v1150
        %v1403 = vsel %vm1401, %v963, %v1152
        %v1404 = vsel %vm1401, %v964, %v1154
        %v1405 = vsel %vm1401, %v965, %v1156
        %v1406 = vsel %vm1401, %v966, %v1158
        %v1407 = vsel %vm1401, %v967, %v1160
        %v1408 = vsel %vm1401, %v968, %v1162
        %v1409 = vsel %vm1401, %v969, %v1164
        %v1410 = vsel %vm1401, %v970, %v1166
        %v1411 = vsel %vm1401, %v971, %v1168
        %v1412 = vsel %vm1401, %v972, %v1170
        %v1413 = vsel %vm1401, %v973, %v1172
        %v1414 = vsel %vm1401, %v974, %v1174
        %v1415 = vsel %vm1401, %v975, %v1176
        %v1416 = vsel %vm1401, %v976, %v1178
        %v1417 = vsel %vm1401, %v977, %v1180
        %v1418 = vsel %vm1401, %v978, %v1182
        %v1419 = vsel %vm1401, %v979, %v1184
        %v1420 = vsel %vm1401, %v980, %v1186
        %v1421 = vsel %vm1401, %v981, %v1188
        %v1422 = vsel %vm1401, %v982, %v1190
        %v1423 = vsel %vm1401, %v983, %v1192
        %v1424 = vsel %vm1401, %v984, %v1194
        %v1425 = vsel %vm1401, %v985, %v1196
        %v1426 = vsel %vm1401, %v986, %v1198
        %v1427 = vsel %vm1401, %v987, %v1200
        %v1428 = vsel %vm1401, %v988, %v1202
        %v1429 = vsel %vm1401, %v989, %v1204
        %v1430 = vsel %vm1401, %v990, %v1206
        %v1431 = vsel %vm1401, %v991, %v1208
        %v1432 = vsel %vm1401, %v992, %v1210
        %v1433 = vsel %vm1401, %v993, %v1212
        %v1434 = vsel %vm1401, %v994, %v1214
        %v1435 = vsel %vm1401, %v995, %v1216
        %v1436 = vsel %vm1401, %v996, %v1218
        %v1437 = vsel %vm1401, %v997, %v1220
        %vm1438 = vcmask 523264
        %v1439 = vsel %vm1438, %v1402, %v1294
        %v1440 = vsel %vm1438, %v1403, %v1296
        %v1441 = vsel %vm1438, %v1404, %v1298
        %v1442 = vsel %vm1438, %v1405, %v1300
        %v1443 = vsel %vm1438, %v1406, %v1302
        %v1444 = vsel %vm1438, %v1407, %v1304
        %v1445 = vsel %vm1438, %v1408, %v1306
        %v1446 = vsel %vm1438, %v1409, %v1308
        %v1447 = vsel %vm1438, %v1410, %v1310
        %v1448 = vsel %vm1438, %v1411, %v1312
        %v1449 = vsel %vm1438, %v1412, %v1314
        %v1450 = vsel %vm1438, %v1413, %v1316
        %v1451 = vsel %vm1438, %v1414, %v1318
        %v1452 = vsel %vm1438, %v1415, %v1320
        %v1453 = vsel %vm1438, %v1416, %v1322
        %v1454 = vsel %vm1438, %v1417, %v1324
        %v1455 = vsel %vm1438, %v1418, %v1326
        %v1456 = vsel %vm1438, %v1419, %v1328
        %v1457 = vsel %vm1438, %v1420, %v1330
        %v1458 = vsel %vm1438, %v1421, %v1332
        %v1459 = vsel %vm1438, %v1422, %v1334
        %v1460 = vsel %vm1438, %v1423, %v1336
        %v1461 = vsel %vm1438, %v1424, %v1338
        %v1462 = vsel %vm1438, %v1425, %v1340
        %v1463 = vsel %vm1438, %v1426, %v1342
        %v1464 = vsel %vm1438, %v1427, %v1344
        %v1465 = vsel %vm1438, %v1428, %v1346
        %v1466 = vsel %vm1438, %v1429, %v1348
        %v1467 = vsel %vm1438, %v1430, %v1350
        %v1468 = vsel %vm1438, %v1431, %v1352
        %v1469 = vsel %vm1438, %v1432, %v1354
        %v1470 = vsel %vm1438, %v1433, %v1356
        %v1471 = vsel %vm1438, %v1434, %v1358
        %v1472 = vsel %vm1438, %v1435, %v1360
        %v1473 = vsel %vm1438, %v1436, %v1362
        %v1474 = vsel %vm1438, %v1437, %v1364
        %v1475 = vpack.c.bf16 %v1439, %v1439
        %v1476 = vpack.c.bf16 %v1440, %v1440
        %v1477 = vpack.c.bf16 %v1441, %v1441
        %v1478 = vpack.c.bf16 %v1442, %v1442
        %v1479 = vpack.c.bf16 %v1443, %v1443
        %v1480 = vpack.c.bf16 %v1444, %v1444
        %v1481 = vpack.c.bf16 %v1445, %v1445
        %v1482 = vpack.c.bf16 %v1446, %v1446
        %v1483 = vpack.c.bf16 %v1447, %v1447
        %v1484 = vpack.c.bf16 %v1448, %v1448
        %v1485 = vpack.c.bf16 %v1449, %v1449
        %v1486 = vpack.c.bf16 %v1450, %v1450
        %v1487 = vpack.c.bf16 %v1451, %v1451
        %v1488 = vpack.c.bf16 %v1452, %v1452
        %v1489 = vpack.c.bf16 %v1453, %v1453
        %v1490 = vpack.c.bf16 %v1454, %v1454
        %v1491 = vpack.c.bf16 %v1455, %v1455
        %v1492 = vpack.c.bf16 %v1456, %v1456
        %v1493 = vpack.c.bf16 %v1457, %v1457
        %v1494 = vpack.c.bf16 %v1458, %v1458
        %v1495 = vpack.c.bf16 %v1459, %v1459
        %v1496 = vpack.c.bf16 %v1460, %v1460
        %v1497 = vpack.c.bf16 %v1461, %v1461
        %v1498 = vpack.c.bf16 %v1462, %v1462
        %v1499 = vpack.c.bf16 %v1463, %v1463
        %v1500 = vpack.c.bf16 %v1464, %v1464
        %v1501 = vpack.c.bf16 %v1465, %v1465
        %v1502 = vpack.c.bf16 %v1466, %v1466
        %v1503 = vpack.c.bf16 %v1467, %v1467
        %v1504 = vpack.c.bf16 %v1468, %v1468
        %v1505 = vpack.c.bf16 %v1469, %v1469
        %v1506 = vpack.c.bf16 %v1470, %v1470
        %v1507 = vpack.c.bf16 %v1471, %v1471
        %v1508 = vpack.c.bf16 %v1472, %v1472
        %v1509 = vpack.c.bf16 %v1473, %v1473
        %v1510 = vpack.c.bf16 %v1474, %v1474
        %v1543 = vunpack.c.l.b16 %v1475
        %v1544 = vunpack.c.l.b16 %v1476
        %v1545 = vunpack.c.l.b16 %v1477
        %v1546 = vunpack.c.l.b16 %v1478
        %v1547 = vunpack.c.l.b16 %v1479
        %v1548 = vunpack.c.l.b16 %v1480
        %v1549 = vunpack.c.l.b16 %v1481
        %v1550 = vunpack.c.l.b16 %v1482
        %v1551 = vunpack.c.l.b16 %v1483
        %v1552 = vunpack.c.l.b16 %v1484
        %v1553 = vunpack.c.l.b16 %v1485
        %v1554 = vunpack.c.l.b16 %v1486
        %v1555 = vunpack.c.l.b16 %v1487
        %v1556 = vunpack.c.l.b16 %v1488
        %v1557 = vunpack.c.l.b16 %v1489
        %v1558 = vunpack.c.l.b16 %v1490
        %v1559 = vunpack.c.l.b16 %v1491
        %v1560 = vunpack.c.l.b16 %v1492
        %v1561 = vunpack.c.l.b16 %v1493
        %v1562 = vunpack.c.l.b16 %v1494
        %v1563 = vunpack.c.l.b16 %v1495
        %v1564 = vunpack.c.l.b16 %v1496
        %v1565 = vunpack.c.l.b16 %v1497
        %v1566 = vunpack.c.l.b16 %v1498
        %v1567 = vunpack.c.l.b16 %v1499
        %v1568 = vunpack.c.l.b16 %v1500
        %v1569 = vunpack.c.l.b16 %v1501
        %v1570 = vunpack.c.l.b16 %v1502
        %v1571 = vunpack.c.l.b16 %v1503
        %v1572 = vunpack.c.l.b16 %v1504
        %v1573 = vunpack.c.l.b16 %v1505
        %v1574 = vunpack.c.l.b16 %v1506
        %v1575 = vpack.c.b16 %v1544, %v1543
        %v1576 = vpack.c.b16 %v1546, %v1545
        %v1577 = vpack.c.b16 %v1548, %v1547
        %v1578 = vpack.c.b16 %v1550, %v1549
        %v1579 = vpack.c.b16 %v1552, %v1551
        %v1580 = vpack.c.b16 %v1554, %v1553
        %v1581 = vpack.c.b16 %v1556, %v1555
        %v1582 = vpack.c.b16 %v1558, %v1557
        %v1583 = vpack.c.b16 %v1560, %v1559
        %v1584 = vpack.c.b16 %v1562, %v1561
        %v1585 = vpack.c.b16 %v1564, %v1563
        %v1586 = vpack.c.b16 %v1566, %v1565
        %v1587 = vpack.c.b16 %v1568, %v1567
        %v1588 = vpack.c.b16 %v1570, %v1569
        %v1589 = vpack.c.b16 %v1572, %v1571
        %v1590 = vpack.c.b16 %v1574, %v1573
        %v1593 = vunpack.c.l.b16 %v1507
        %v1594 = vunpack.c.l.b16 %v1508
        %v1595 = vpack.c.b16 %v1594, %v1593
        %1596 = vrot.lane.b32.xlu0 %v1576, 96
        %v1597 = vpop.permute.xlu0 %1596
        %1598 = vrot.lane.b32.xlu0 %v1577, 96
        %v1599 = vpop.permute.xlu0 %1598
        %1600 = vrot.lane.b32.xlu0 %v1578, 96
        %v1601 = vpop.permute.xlu0 %1600
        %1602 = vrot.lane.b32.xlu0 %v1579, 96
        %v1603 = vpop.permute.xlu0 %1602
        %1604 = vrot.lane.b32.xlu0 %v1580, 96
        %v1605 = vpop.permute.xlu0 %1604
        %1606 = vrot.lane.b32.xlu0 %v1581, 96
        %v1607 = vpop.permute.xlu0 %1606
        %1608 = vrot.lane.b32.xlu0 %v1582, 96
        %v1609 = vpop.permute.xlu0 %1608
        %1610 = vrot.lane.b32.xlu0 %v1583, 96
        %v1611 = vpop.permute.xlu0 %1610
        %1612 = vrot.lane.b32.xlu0 %v1584, 96
        %v1613 = vpop.permute.xlu0 %1612
        %1614 = vrot.lane.b32.xlu0 %v1585, 96
        %v1615 = vpop.permute.xlu0 %1614
        %1616 = vrot.lane.b32.xlu0 %v1586, 96
        %v1617 = vpop.permute.xlu0 %1616
        %1618 = vrot.lane.b32.xlu0 %v1587, 96
        %v1619 = vpop.permute.xlu0 %1618
        %1620 = vrot.lane.b32.xlu0 %v1588, 96
        %v1621 = vpop.permute.xlu0 %1620
        %1622 = vrot.lane.b32.xlu0 %v1589, 96
        %v1623 = vpop.permute.xlu0 %1622
        %1624 = vrot.lane.b32.xlu0 %v1590, 96
        %v1625 = vpop.permute.xlu0 %1624
        %1626 = vrot.lane.b32.xlu0 %v1595, 96
        %v1627 = vpop.permute.xlu0 %1626
        %v1630 = vunpack.c.l.b16 %v1509
        %v1631 = vunpack.c.l.b16 %v1510
        %v1632 = vpack.c.b16 %v1631, %v1630
        %1633 = vrot.lane.b32.xlu0 %v1577, 64
        %v1634 = vpop.permute.xlu0 %1633
        %1635 = vrot.lane.b32.xlu0 %v1578, 64
        %v1636 = vpop.permute.xlu0 %1635
        %1637 = vrot.lane.b32.xlu0 %v1579, 64
        %v1638 = vpop.permute.xlu0 %1637
        %1639 = vrot.lane.b32.xlu0 %v1580, 64
        %v1640 = vpop.permute.xlu0 %1639
        %1641 = vrot.lane.b32.xlu0 %v1581, 64
        %v1642 = vpop.permute.xlu0 %1641
        %1643 = vrot.lane.b32.xlu0 %v1582, 64
        %v1644 = vpop.permute.xlu0 %1643
        %1645 = vrot.lane.b32.xlu0 %v1583, 64
        %v1646 = vpop.permute.xlu0 %1645
        %1647 = vrot.lane.b32.xlu0 %v1584, 64
        %v1648 = vpop.permute.xlu0 %1647
        %1649 = vrot.lane.b32.xlu0 %v1585, 64
        %v1650 = vpop.permute.xlu0 %1649
        %1651 = vrot.lane.b32.xlu0 %v1586, 64
        %v1652 = vpop.permute.xlu0 %1651
        %1653 = vrot.lane.b32.xlu0 %v1587, 64
        %v1654 = vpop.permute.xlu0 %1653
        %1655 = vrot.lane.b32.xlu0 %v1588, 64
        %v1656 = vpop.permute.xlu0 %1655
        %1657 = vrot.lane.b32.xlu0 %v1589, 64
        %v1658 = vpop.permute.xlu0 %1657
        %1659 = vrot.lane.b32.xlu0 %v1590, 64
        %v1660 = vpop.permute.xlu0 %1659
        %1661 = vrot.lane.b32.xlu0 %v1595, 64
        %v1662 = vpop.permute.xlu0 %1661
        %1663 = vrot.lane.b32.xlu0 %v1632, 64
        %v1664 = vpop.permute.xlu0 %1663
        %vm1665 = vcmask 785408
        %v1668 = vsel %vm1665, %v1575, %v1597
        %v1672 = vsel %vm1665, %v1576, %v1599
        %v1676 = vsel %vm1665, %v1577, %v1601
        %v1680 = vsel %vm1665, %v1578, %v1603
        %v1684 = vsel %vm1665, %v1579, %v1605
        %v1688 = vsel %vm1665, %v1580, %v1607
        %v1692 = vsel %vm1665, %v1581, %v1609
        %v1696 = vsel %vm1665, %v1582, %v1611
        %v1700 = vsel %vm1665, %v1583, %v1613
        %v1704 = vsel %vm1665, %v1584, %v1615
        %v1708 = vsel %vm1665, %v1585, %v1617
        %v1712 = vsel %vm1665, %v1586, %v1619
        %v1716 = vsel %vm1665, %v1587, %v1621
        %v1720 = vsel %vm1665, %v1588, %v1623
        %v1724 = vsel %vm1665, %v1589, %v1625
        %v1728 = vsel %vm1665, %v1590, %v1627
        %v1731 = vsel %vm1438, %v1597, %v1634
        %v1734 = vsel %vm1438, %v1599, %v1636
        %v1737 = vsel %vm1438, %v1601, %v1638
        %v1740 = vsel %vm1438, %v1603, %v1640
        %v1743 = vsel %vm1438, %v1605, %v1642
        %v1746 = vsel %vm1438, %v1607, %v1644
        %v1749 = vsel %vm1438, %v1609, %v1646
        %v1752 = vsel %vm1438, %v1611, %v1648
        %v1755 = vsel %vm1438, %v1613, %v1650
        %v1758 = vsel %vm1438, %v1615, %v1652
        %v1761 = vsel %vm1438, %v1617, %v1654
        %v1764 = vsel %vm1438, %v1619, %v1656
        %v1767 = vsel %vm1438, %v1621, %v1658
        %v1770 = vsel %vm1438, %v1623, %v1660
        %v1773 = vsel %vm1438, %v1625, %v1662
        %v1776 = vsel %vm1438, %v1627, %v1664
        %v1778 = vld [vmem:[%s4] sm:$0xf]
        %v1779 = vld [vmem:[%s4 + $0x4] sm:$0xf]
        %v1780 = vld [vmem:[%s4 + $0x8] sm:$0xf]
        %v1781 = vld [vmem:[%s4 + $0xc] sm:$0xf]
        %v1782 = vld [vmem:[%s4 + $0x10] sm:$0xf]
        %v1783 = vld [vmem:[%s4 + $0x14] sm:$0xf]
        %v1784 = vld [vmem:[%s4 + $0x18] sm:$0xf]
        %v1785 = vld [vmem:[%s4 + $0x1c] sm:$0xf]
        %v1786 = vld [vmem:[%s4 + $0x20] sm:$0xf]
        %v1787 = vld [vmem:[%s4 + $0x24] sm:$0xf]
        %v1788 = vld [vmem:[%s4 + $0x28] sm:$0xf]
        %v1789 = vld [vmem:[%s4 + $0x2c] sm:$0xf]
        %v1790 = vld [vmem:[%s4 + $0x30] sm:$0xf]
        %v1791 = vld [vmem:[%s4 + $0x34] sm:$0xf]
        %v1792 = vld [vmem:[%s4 + $0x38] sm:$0xf]
        %v1793 = vld [vmem:[%s4 + $0x3c] sm:$0xf]
        %v1794 = vld [vmem:[%s4 + $0x40] sm:$0xf]
        %v1795 = vld [vmem:[%s4 + $0x44] sm:$0xf]
        %v1796 = vld [vmem:[%s4 + $0x48] sm:$0xf]
        %v1797 = vld [vmem:[%s4 + $0x4c] sm:$0xf]
        %v1798 = vld [vmem:[%s4 + $0x50] sm:$0xf]
        %v1799 = vld [vmem:[%s4 + $0x54] sm:$0xf]
        %v1800 = vld [vmem:[%s4 + $0x58] sm:$0xf]
        %v1801 = vld [vmem:[%s4 + $0x5c] sm:$0xf]
        %v1802 = vld [vmem:[%s4 + $0x60] sm:$0xf]
        %v1803 = vld [vmem:[%s4 + $0x64] sm:$0xf]
        %v1804 = vld [vmem:[%s4 + $0x68] sm:$0xf]
        %v1805 = vld [vmem:[%s4 + $0x6c] sm:$0xf]
        %v1806 = vld [vmem:[%s4 + $0x70] sm:$0xf]
        %v1807 = vld [vmem:[%s4 + $0x74] sm:$0xf]
        %v1808 = vld [vmem:[%s4 + $0x78] sm:$0xf]
        %v1809 = vld [vmem:[%s4 + $0x7c] sm:$0xf]
        %v1810 = vld [vmem:[%s4 + $0x80] sm:$0xf]
        %v1811 = vld [vmem:[%s4 + $0x84] sm:$0xf]
        %v1812 = vld [vmem:[%s4 + $0x88] sm:$0xf]
        %v1813 = vld [vmem:[%s4 + $0x8c] sm:$0xf]
        %v1814 = vld [vmem:[%s7] sm:$0x1]
        %v1816 = vperm.slane %v1814, 0
        %v1854 = vunpack.c.l.b16 %v1778
        %v1855 = vunpack.c.l.b16 %v1779
        %v1856 = vunpack.c.l.b16 %v1780
        %v1857 = vunpack.c.l.b16 %v1781
        %v1858 = vunpack.c.l.b16 %v1782
        %v1859 = vunpack.c.l.b16 %v1783
        %v1860 = vunpack.c.l.b16 %v1784
        %v1861 = vunpack.c.l.b16 %v1785
        %v1862 = vunpack.c.l.b16 %v1786
        %v1863 = vunpack.c.l.b16 %v1787
        %v1864 = vunpack.c.l.b16 %v1788
        %v1865 = vunpack.c.l.b16 %v1789
        %v1866 = vunpack.c.l.b16 %v1790
        %v1867 = vunpack.c.l.b16 %v1791
        %v1868 = vunpack.c.l.b16 %v1792
        %v1869 = vunpack.c.l.b16 %v1793
        %v1870 = vunpack.c.l.b16 %v1794
        %v1871 = vunpack.c.l.b16 %v1795
        %v1872 = vunpack.c.l.b16 %v1796
        %v1873 = vunpack.c.l.b16 %v1797
        %v1874 = vunpack.c.l.b16 %v1798
        %v1875 = vunpack.c.l.b16 %v1799
        %v1876 = vunpack.c.l.b16 %v1800
        %v1877 = vunpack.c.l.b16 %v1801
        %v1878 = vunpack.c.l.b16 %v1802
        %v1879 = vunpack.c.l.b16 %v1803
        %v1880 = vunpack.c.l.b16 %v1804
        %v1881 = vunpack.c.l.b16 %v1805
        %v1882 = vunpack.c.l.b16 %v1806
        %v1883 = vunpack.c.l.b16 %v1807
        %v1884 = vunpack.c.l.b16 %v1808
        %v1885 = vunpack.c.l.b16 %v1809
        %v1886 = vunpack.c.l.b16 %v1810
        %v1887 = vunpack.c.l.b16 %v1811
        %v1888 = vunpack.c.l.b16 %v1812
        %v1889 = vunpack.c.l.b16 %v1813
        %v1890 = vpack.c.b16 %v1855, %v1854
        %v1891 = vpack.c.b16 %v1857, %v1856
        %v1892 = vpack.c.b16 %v1859, %v1858
        %v1893 = vpack.c.b16 %v1861, %v1860
        %v1894 = vpack.c.b16 %v1863, %v1862
        %v1895 = vpack.c.b16 %v1865, %v1864
        %v1896 = vpack.c.b16 %v1867, %v1866
        %v1897 = vpack.c.b16 %v1869, %v1868
        %v1898 = vpack.c.b16 %v1871, %v1870
        %v1899 = vpack.c.b16 %v1873, %v1872
        %v1900 = vpack.c.b16 %v1875, %v1874
        %v1901 = vpack.c.b16 %v1877, %v1876
        %v1902 = vpack.c.b16 %v1879, %v1878
        %v1903 = vpack.c.b16 %v1881, %v1880
        %v1904 = vpack.c.b16 %v1883, %v1882
        %v1905 = vpack.c.b16 %v1885, %v1884
        %v1906 = vpack.c.b16 %v1887, %v1886
        %v1907 = vpack.c.b16 %v1889, %v1888
        %v1926 = vsel %vm1401, %v1634, 0
        %v1928 = vsel %vm1401, %v1636, 0
        %v1930 = vsel %vm1401, %v1638, 0
        %v1932 = vsel %vm1401, %v1640, 0
        %v1934 = vsel %vm1401, %v1642, 0
        %v1936 = vsel %vm1401, %v1644, 0
        %v1938 = vsel %vm1401, %v1646, 0
        %v1940 = vsel %vm1401, %v1648, 0
        %v1942 = vsel %vm1401, %v1650, 0
        %v1944 = vsel %vm1401, %v1652, 0
        %v1946 = vsel %vm1401, %v1654, 0
        %v1948 = vsel %vm1401, %v1656, 0
        %v1950 = vsel %vm1401, %v1658, 0
        %v1952 = vsel %vm1401, %v1660, 0
        %v1954 = vsel %vm1401, %v1662, 0
        %v1956 = vsel %vm1401, %v1664, 0
        %1958 = vmatpush.bf16.msra.mxu0 %v1897
        %1959 = vmatpush.bf16.msra.mxu0 %v1896
        %1960 = vmatpush.bf16.msra.mxu0 %v1895
        %1961 = vmatpush.bf16.msra.mxu0 %v1894
        %1962 = vmatpush.bf16.msra.mxu0 %v1893
        %1963 = vmatpush.bf16.msra.mxu0 %v1892
        %1964 = vmatpush.bf16.msra.mxu0 %v1891
        %1965 = vmatpush.bf16.msra.mxu0 %v1890
        %1966 = vmatmul.bf16.gmra.mxu0 %v1668
        %v1967 = vpop.f32.mrf.mxu0
        %v1968 = vadd.f32 %v1816, %v1967
        %v1969 = vpop.f32.mrf.mxu0
        %v1970 = vadd.f32 %v1816, %v1969
        %1971 = vmatmul.bf16.gmra.mxu0 %v1672
        %v1972 = vpop.f32.mrf.mxu0
        %v1973 = vadd.f32 %v1816, %v1972
        %v1974 = vpop.f32.mrf.mxu0
        %v1975 = vadd.f32 %v1816, %v1974
        %1976 = vmatmul.bf16.gmra.mxu0 %v1676
        %v1977 = vpop.f32.mrf.mxu0
        %v1978 = vadd.f32 %v1816, %v1977
        %v1979 = vpop.f32.mrf.mxu0
        %v1980 = vadd.f32 %v1816, %v1979
        %1981 = vmatmul.bf16.gmra.mxu0 %v1680
        %v1982 = vpop.f32.mrf.mxu0
        %v1983 = vadd.f32 %v1816, %v1982
        %v1984 = vpop.f32.mrf.mxu0
        %v1985 = vadd.f32 %v1816, %v1984
        %1986 = vmatmul.bf16.gmra.mxu0 %v1684
        %v1987 = vpop.f32.mrf.mxu0
        %v1988 = vadd.f32 %v1816, %v1987
        %v1989 = vpop.f32.mrf.mxu0
        %v1990 = vadd.f32 %v1816, %v1989
        %1991 = vmatmul.bf16.gmra.mxu0 %v1688
        %v1992 = vpop.f32.mrf.mxu0
        %v1993 = vadd.f32 %v1816, %v1992
        %v1994 = vpop.f32.mrf.mxu0
        %v1995 = vadd.f32 %v1816, %v1994
        %1996 = vmatmul.bf16.gmra.mxu0 %v1692
        %v1997 = vpop.f32.mrf.mxu0
        %v1998 = vadd.f32 %v1816, %v1997
        %v1999 = vpop.f32.mrf.mxu0
        %v2000 = vadd.f32 %v1816, %v1999
        %2001 = vmatmul.bf16.gmra.mxu0 %v1696
        %v2002 = vpop.f32.mrf.mxu0
        %v2003 = vadd.f32 %v1816, %v2002
        %v2004 = vpop.f32.mrf.mxu0
        %v2005 = vadd.f32 %v1816, %v2004
        %2006 = vmatmul.bf16.gmra.mxu0 %v1700
        %v2007 = vpop.f32.mrf.mxu0
        %v2008 = vadd.f32 %v1816, %v2007
        %v2009 = vpop.f32.mrf.mxu0
        %v2010 = vadd.f32 %v1816, %v2009
        %2011 = vmatmul.bf16.gmra.mxu0 %v1704
        %v2012 = vpop.f32.mrf.mxu0
        %v2013 = vadd.f32 %v1816, %v2012
        %v2014 = vpop.f32.mrf.mxu0
        %v2015 = vadd.f32 %v1816, %v2014
        %2016 = vmatmul.bf16.gmra.mxu0 %v1708
        %v2017 = vpop.f32.mrf.mxu0
        %v2018 = vadd.f32 %v1816, %v2017
        %v2019 = vpop.f32.mrf.mxu0
        %v2020 = vadd.f32 %v1816, %v2019
        %2021 = vmatmul.bf16.gmra.mxu0 %v1712
        %v2022 = vpop.f32.mrf.mxu0
        %v2023 = vadd.f32 %v1816, %v2022
        %v2024 = vpop.f32.mrf.mxu0
        %v2025 = vadd.f32 %v1816, %v2024
        %2026 = vmatmul.bf16.gmra.mxu0 %v1716
        %v2027 = vpop.f32.mrf.mxu0
        %v2028 = vadd.f32 %v1816, %v2027
        %v2029 = vpop.f32.mrf.mxu0
        %v2030 = vadd.f32 %v1816, %v2029
        %2031 = vmatmul.bf16.gmra.mxu0 %v1720
        %v2032 = vpop.f32.mrf.mxu0
        %v2033 = vadd.f32 %v1816, %v2032
        %v2034 = vpop.f32.mrf.mxu0
        %v2035 = vadd.f32 %v1816, %v2034
        %2036 = vmatmul.bf16.gmra.mxu0 %v1724
        %v2037 = vpop.f32.mrf.mxu0
        %v2038 = vadd.f32 %v1816, %v2037
        %v2039 = vpop.f32.mrf.mxu0
        %v2040 = vadd.f32 %v1816, %v2039
        %2041 = vmatmul.bf16.gmra.mxu0 %v1728
        %v2042 = vpop.f32.mrf.mxu0
        %v2043 = vadd.f32 %v1816, %v2042
        %v2044 = vpop.f32.mrf.mxu0
        %v2045 = vadd.f32 %v1816, %v2044
        %2046 = vdwg.mxu0
        %2047 = vmatpush.bf16.msra.mxu0 %v1905
        %2048 = vmatpush.bf16.msra.mxu0 %v1904
        %2049 = vmatpush.bf16.msra.mxu0 %v1903
        %2050 = vmatpush.bf16.msra.mxu0 %v1902
        %2051 = vmatpush.bf16.msra.mxu0 %v1901
        %2052 = vmatpush.bf16.msra.mxu0 %v1900
        %2053 = vmatpush.bf16.msra.mxu0 %v1899
        %2054 = vmatpush.bf16.msra.mxu0 %v1898
        %2055 = vmatmul.bf16.gmra.mxu0 %v1731
        %v2056 = vpop.f32.mrf.mxu0
        %v2057 = vadd.f32 %v1968, %v2056
        %v2058 = vpop.f32.mrf.mxu0
        %v2059 = vadd.f32 %v1970, %v2058
        %2060 = vmatmul.bf16.gmra.mxu0 %v1734
        %v2061 = vpop.f32.mrf.mxu0
        %v2062 = vadd.f32 %v1973, %v2061
        %v2063 = vpop.f32.mrf.mxu0
        %v2064 = vadd.f32 %v1975, %v2063
        %2065 = vmatmul.bf16.gmra.mxu0 %v1737
        %v2066 = vpop.f32.mrf.mxu0
        %v2067 = vadd.f32 %v1978, %v2066
        %v2068 = vpop.f32.mrf.mxu0
        %v2069 = vadd.f32 %v1980, %v2068
        %2070 = vmatmul.bf16.gmra.mxu0 %v1740
        %v2071 = vpop.f32.mrf.mxu0
        %v2072 = vadd.f32 %v1983, %v2071
        %v2073 = vpop.f32.mrf.mxu0
        %v2074 = vadd.f32 %v1985, %v2073
        %2075 = vmatmul.bf16.gmra.mxu0 %v1743
        %v2076 = vpop.f32.mrf.mxu0
        %v2077 = vadd.f32 %v1988, %v2076
        %v2078 = vpop.f32.mrf.mxu0
        %v2079 = vadd.f32 %v1990, %v2078
        %2080 = vmatmul.bf16.gmra.mxu0 %v1746
        %v2081 = vpop.f32.mrf.mxu0
        %v2082 = vadd.f32 %v1993, %v2081
        %v2083 = vpop.f32.mrf.mxu0
        %v2084 = vadd.f32 %v1995, %v2083
        %2085 = vmatmul.bf16.gmra.mxu0 %v1749
        %v2086 = vpop.f32.mrf.mxu0
        %v2087 = vadd.f32 %v1998, %v2086
        %v2088 = vpop.f32.mrf.mxu0
        %v2089 = vadd.f32 %v2000, %v2088
        %2090 = vmatmul.bf16.gmra.mxu0 %v1752
        %v2091 = vpop.f32.mrf.mxu0
        %v2092 = vadd.f32 %v2003, %v2091
        %v2093 = vpop.f32.mrf.mxu0
        %v2094 = vadd.f32 %v2005, %v2093
        %2095 = vmatmul.bf16.gmra.mxu0 %v1755
        %v2096 = vpop.f32.mrf.mxu0
        %v2097 = vadd.f32 %v2008, %v2096
        %v2098 = vpop.f32.mrf.mxu0
        %v2099 = vadd.f32 %v2010, %v2098
        %2100 = vmatmul.bf16.gmra.mxu0 %v1758
        %v2101 = vpop.f32.mrf.mxu0
        %v2102 = vadd.f32 %v2013, %v2101
        %v2103 = vpop.f32.mrf.mxu0
        %v2104 = vadd.f32 %v2015, %v2103
        %2105 = vmatmul.bf16.gmra.mxu0 %v1761
        %v2106 = vpop.f32.mrf.mxu0
        %v2107 = vadd.f32 %v2018, %v2106
        %v2108 = vpop.f32.mrf.mxu0
        %v2109 = vadd.f32 %v2020, %v2108
        %2110 = vmatmul.bf16.gmra.mxu0 %v1764
        %v2111 = vpop.f32.mrf.mxu0
        %v2112 = vadd.f32 %v2023, %v2111
        %v2113 = vpop.f32.mrf.mxu0
        %v2114 = vadd.f32 %v2025, %v2113
        %2115 = vmatmul.bf16.gmra.mxu0 %v1767
        %v2116 = vpop.f32.mrf.mxu0
        %v2117 = vadd.f32 %v2028, %v2116
        %v2118 = vpop.f32.mrf.mxu0
        %v2119 = vadd.f32 %v2030, %v2118
        %2120 = vmatmul.bf16.gmra.mxu0 %v1770
        %v2121 = vpop.f32.mrf.mxu0
        %v2122 = vadd.f32 %v2033, %v2121
        %v2123 = vpop.f32.mrf.mxu0
        %v2124 = vadd.f32 %v2035, %v2123
        %2125 = vmatmul.bf16.gmra.mxu0 %v1773
        %v2126 = vpop.f32.mrf.mxu0
        %v2127 = vadd.f32 %v2038, %v2126
        %v2128 = vpop.f32.mrf.mxu0
        %v2129 = vadd.f32 %v2040, %v2128
        %2130 = vmatmul.bf16.gmra.mxu0 %v1776
        %v2131 = vpop.f32.mrf.mxu0
        %v2132 = vadd.f32 %v2043, %v2131
        %v2133 = vpop.f32.mrf.mxu0
        %v2134 = vadd.f32 %v2045, %v2133
        %2135 = vdwg.mxu0
        %2136 = vmatpush.bf16.msra.mxu0 0
        %2137 = vmatpush.bf16.msra.mxu0 0
        %2138 = vmatpush.bf16.msra.mxu0 0
        %2139 = vmatpush.bf16.msra.mxu0 0
        %2140 = vmatpush.bf16.msra.mxu0 0
        %2141 = vmatpush.bf16.msra.mxu0 0
        %2142 = vmatpush.bf16.msra.mxu0 %v1907
        %2143 = vmatpush.bf16.msra.mxu0 %v1906
        %2144 = vmatmul.bf16.gmra.mxu0 %v1926
        %v2145 = vpop.f32.mrf.mxu0
        %v2146 = vadd.f32 %v2057, %v2145
        %v2147 = vpop.f32.mrf.mxu0
        %v2148 = vadd.f32 %v2059, %v2147
        %2149 = vmatmul.bf16.gmra.mxu0 %v1928
        %v2150 = vpop.f32.mrf.mxu0
        %v2151 = vadd.f32 %v2062, %v2150
        %v2152 = vpop.f32.mrf.mxu0
        %v2153 = vadd.f32 %v2064, %v2152
        %2154 = vmatmul.bf16.gmra.mxu0 %v1930
        %v2155 = vpop.f32.mrf.mxu0
        %v2156 = vadd.f32 %v2067, %v2155
        %v2157 = vpop.f32.mrf.mxu0
        %v2158 = vadd.f32 %v2069, %v2157
        %2159 = vmatmul.bf16.gmra.mxu0 %v1932
        %v2160 = vpop.f32.mrf.mxu0
        %v2161 = vadd.f32 %v2072, %v2160
        %v2162 = vpop.f32.mrf.mxu0
        %v2163 = vadd.f32 %v2074, %v2162
        %2164 = vmatmul.bf16.gmra.mxu0 %v1934
        %v2165 = vpop.f32.mrf.mxu0
        %v2166 = vadd.f32 %v2077, %v2165
        %v2167 = vpop.f32.mrf.mxu0
        %v2168 = vadd.f32 %v2079, %v2167
        %2169 = vmatmul.bf16.gmra.mxu0 %v1936
        %v2170 = vpop.f32.mrf.mxu0
        %v2171 = vadd.f32 %v2082, %v2170
        %v2172 = vpop.f32.mrf.mxu0
        %v2173 = vadd.f32 %v2084, %v2172
        %2174 = vmatmul.bf16.gmra.mxu0 %v1938
        %v2175 = vpop.f32.mrf.mxu0
        %v2176 = vadd.f32 %v2087, %v2175
        %v2177 = vpop.f32.mrf.mxu0
        %v2178 = vadd.f32 %v2089, %v2177
        %2179 = vmatmul.bf16.gmra.mxu0 %v1940
        %v2180 = vpop.f32.mrf.mxu0
        %v2181 = vadd.f32 %v2092, %v2180
        %v2182 = vpop.f32.mrf.mxu0
        %v2183 = vadd.f32 %v2094, %v2182
        %2184 = vmatmul.bf16.gmra.mxu0 %v1942
        %v2185 = vpop.f32.mrf.mxu0
        %v2186 = vadd.f32 %v2097, %v2185
        %v2187 = vpop.f32.mrf.mxu0
        %v2188 = vadd.f32 %v2099, %v2187
        %2189 = vmatmul.bf16.gmra.mxu0 %v1944
        %v2190 = vpop.f32.mrf.mxu0
        %v2191 = vadd.f32 %v2102, %v2190
        %v2192 = vpop.f32.mrf.mxu0
        %v2193 = vadd.f32 %v2104, %v2192
        %2194 = vmatmul.bf16.gmra.mxu0 %v1946
        %v2195 = vpop.f32.mrf.mxu0
        %v2196 = vadd.f32 %v2107, %v2195
        %v2197 = vpop.f32.mrf.mxu0
        %v2198 = vadd.f32 %v2109, %v2197
        %2199 = vmatmul.bf16.gmra.mxu0 %v1948
        %v2200 = vpop.f32.mrf.mxu0
        %v2201 = vadd.f32 %v2112, %v2200
        %v2202 = vpop.f32.mrf.mxu0
        %v2203 = vadd.f32 %v2114, %v2202
        %2204 = vmatmul.bf16.gmra.mxu0 %v1950
        %v2205 = vpop.f32.mrf.mxu0
        %v2206 = vadd.f32 %v2117, %v2205
        %v2207 = vpop.f32.mrf.mxu0
        %v2208 = vadd.f32 %v2119, %v2207
        %2209 = vmatmul.bf16.gmra.mxu0 %v1952
        %v2210 = vpop.f32.mrf.mxu0
        %v2211 = vadd.f32 %v2122, %v2210
        %v2212 = vpop.f32.mrf.mxu0
        %v2213 = vadd.f32 %v2124, %v2212
        %2214 = vmatmul.bf16.gmra.mxu0 %v1954
        %v2215 = vpop.f32.mrf.mxu0
        %v2216 = vadd.f32 %v2127, %v2215
        %v2217 = vpop.f32.mrf.mxu0
        %v2218 = vadd.f32 %v2129, %v2217
        %2219 = vmatmul.bf16.gmra.mxu0 %v1956
        %v2220 = vpop.f32.mrf.mxu0
        %v2221 = vadd.f32 %v2132, %v2220
        %v2222 = vpop.f32.mrf.mxu0
        %v2223 = vadd.f32 %v2134, %v2222
        %2224 = vdwg.mxu0
        %v2225 = vmax.f32 %v2146, 0.0
        %v2226 = vmax.f32 %v2148, 0.0
        %v2227 = vmax.f32 %v2151, 0.0
        %v2228 = vmax.f32 %v2153, 0.0
        %v2229 = vmax.f32 %v2156, 0.0
        %v2230 = vmax.f32 %v2158, 0.0
        %v2231 = vmax.f32 %v2161, 0.0
        %v2232 = vmax.f32 %v2163, 0.0
        %v2233 = vmax.f32 %v2166, 0.0
        %v2234 = vmax.f32 %v2168, 0.0
        %v2235 = vmax.f32 %v2171, 0.0
        %v2236 = vmax.f32 %v2173, 0.0
        %v2237 = vmax.f32 %v2176, 0.0
        %v2238 = vmax.f32 %v2178, 0.0
        %v2239 = vmax.f32 %v2181, 0.0
        %v2240 = vmax.f32 %v2183, 0.0
        %v2241 = vmax.f32 %v2186, 0.0
        %v2242 = vmax.f32 %v2188, 0.0
        %v2243 = vmax.f32 %v2191, 0.0
        %v2244 = vmax.f32 %v2193, 0.0
        %v2245 = vmax.f32 %v2196, 0.0
        %v2246 = vmax.f32 %v2198, 0.0
        %v2247 = vmax.f32 %v2201, 0.0
        %v2248 = vmax.f32 %v2203, 0.0
        %v2249 = vmax.f32 %v2206, 0.0
        %v2250 = vmax.f32 %v2208, 0.0
        %v2251 = vmax.f32 %v2211, 0.0
        %v2252 = vmax.f32 %v2213, 0.0
        %v2253 = vmax.f32 %v2216, 0.0
        %v2254 = vmax.f32 %v2218, 0.0
        %v2255 = vmax.f32 %v2221, 0.0
        %v2256 = vmax.f32 %v2223, 0.0
        %v2257 = vpack.c.bf16 %v2226, %v2225
        %v2258 = vpack.c.bf16 %v2228, %v2227
        %v2259 = vpack.c.bf16 %v2230, %v2229
        %v2260 = vpack.c.bf16 %v2232, %v2231
        %v2261 = vpack.c.bf16 %v2234, %v2233
        %v2262 = vpack.c.bf16 %v2236, %v2235
        %v2263 = vpack.c.bf16 %v2238, %v2237
        %v2264 = vpack.c.bf16 %v2240, %v2239
        %v2265 = vpack.c.bf16 %v2242, %v2241
        %v2266 = vpack.c.bf16 %v2244, %v2243
        %v2267 = vpack.c.bf16 %v2246, %v2245
        %v2268 = vpack.c.bf16 %v2248, %v2247
        %v2269 = vpack.c.bf16 %v2250, %v2249
        %v2270 = vpack.c.bf16 %v2252, %v2251
        %v2271 = vpack.c.bf16 %v2254, %v2253
        %v2272 = vpack.c.bf16 %v2256, %v2255
        %v2273 = vld [vmem:[%s5] sm:$0xf]
        %v2274 = vld [vmem:[%s5 + $0x4] sm:$0xf]
        %v2275 = vld [vmem:[%s5 + $0x8] sm:$0xf]
        %v2276 = vld [vmem:[%s5 + $0xc] sm:$0xf]
        %v2277 = vld [vmem:[%s8] sm:$0x1]
        %v2279 = vperm.slane %v2277, 0
        %v2285 = vunpack.c.l.b16 %v2273
        %v2286 = vunpack.c.l.b16 %v2274
        %v2287 = vunpack.c.l.b16 %v2275
        %v2288 = vunpack.c.l.b16 %v2276
        %v2289 = vpack.c.b16 %v2286, %v2285
        %v2290 = vpack.c.b16 %v2288, %v2287
        %v2294 = vsel %vm1401, %v2257, 0
        %v2297 = vsel %vm1401, %v2258, 0
        %v2300 = vsel %vm1401, %v2259, 0
        %v2303 = vsel %vm1401, %v2260, 0
        %v2306 = vsel %vm1401, %v2261, 0
        %v2309 = vsel %vm1401, %v2262, 0
        %v2312 = vsel %vm1401, %v2263, 0
        %v2315 = vsel %vm1401, %v2264, 0
        %v2318 = vsel %vm1401, %v2265, 0
        %v2321 = vsel %vm1401, %v2266, 0
        %v2324 = vsel %vm1401, %v2267, 0
        %v2327 = vsel %vm1401, %v2268, 0
        %v2330 = vsel %vm1401, %v2269, 0
        %v2333 = vsel %vm1401, %v2270, 0
        %v2336 = vsel %vm1401, %v2271, 0
        %v2339 = vsel %vm1401, %v2272, 0
        %2341 = vmatpush.bf16.msra.mxu0 0
        %2342 = vmatpush.bf16.msra.mxu0 0
        %2343 = vmatpush.bf16.msra.mxu0 0
        %2344 = vmatpush.bf16.msra.mxu0 0
        %2345 = vmatpush.bf16.msra.mxu0 0
        %2346 = vmatpush.bf16.msra.mxu0 0
        %2347 = vmatpush.bf16.msra.mxu0 %v2290
        %2348 = vmatpush.bf16.msra.mxu0 %v2289
        %2349 = vmatmul.bf16.gmra.mxu0 %v2294
        %v2350 = vpop.f32.mrf.mxu0
        %v2351 = vadd.f32 %v2279, %v2350
        %v2352 = vpop.f32.mrf.mxu0
        %v2353 = vadd.f32 %v2279, %v2352
        %2354 = vmatmul.bf16.gmra.mxu0 %v2297
        %v2355 = vpop.f32.mrf.mxu0
        %v2356 = vadd.f32 %v2279, %v2355
        %v2357 = vpop.f32.mrf.mxu0
        %v2358 = vadd.f32 %v2279, %v2357
        %2359 = vmatmul.bf16.gmra.mxu0 %v2300
        %v2360 = vpop.f32.mrf.mxu0
        %v2361 = vadd.f32 %v2279, %v2360
        %v2362 = vpop.f32.mrf.mxu0
        %v2363 = vadd.f32 %v2279, %v2362
        %2364 = vmatmul.bf16.gmra.mxu0 %v2303
        %v2365 = vpop.f32.mrf.mxu0
        %v2366 = vadd.f32 %v2279, %v2365
        %v2367 = vpop.f32.mrf.mxu0
        %v2368 = vadd.f32 %v2279, %v2367
        %2369 = vmatmul.bf16.gmra.mxu0 %v2306
        %v2370 = vpop.f32.mrf.mxu0
        %v2371 = vadd.f32 %v2279, %v2370
        %v2372 = vpop.f32.mrf.mxu0
        %v2373 = vadd.f32 %v2279, %v2372
        %2374 = vmatmul.bf16.gmra.mxu0 %v2309
        %v2375 = vpop.f32.mrf.mxu0
        %v2376 = vadd.f32 %v2279, %v2375
        %v2377 = vpop.f32.mrf.mxu0
        %v2378 = vadd.f32 %v2279, %v2377
        %2379 = vmatmul.bf16.gmra.mxu0 %v2312
        %v2380 = vpop.f32.mrf.mxu0
        %v2381 = vadd.f32 %v2279, %v2380
        %v2382 = vpop.f32.mrf.mxu0
        %v2383 = vadd.f32 %v2279, %v2382
        %2384 = vmatmul.bf16.gmra.mxu0 %v2315
        %v2385 = vpop.f32.mrf.mxu0
        %v2386 = vadd.f32 %v2279, %v2385
        %v2387 = vpop.f32.mrf.mxu0
        %v2388 = vadd.f32 %v2279, %v2387
        %2389 = vmatmul.bf16.gmra.mxu0 %v2318
        %v2390 = vpop.f32.mrf.mxu0
        %v2391 = vadd.f32 %v2279, %v2390
        %v2392 = vpop.f32.mrf.mxu0
        %v2393 = vadd.f32 %v2279, %v2392
        %2394 = vmatmul.bf16.gmra.mxu0 %v2321
        %v2395 = vpop.f32.mrf.mxu0
        %v2396 = vadd.f32 %v2279, %v2395
        %v2397 = vpop.f32.mrf.mxu0
        %v2398 = vadd.f32 %v2279, %v2397
        %2399 = vmatmul.bf16.gmra.mxu0 %v2324
        %v2400 = vpop.f32.mrf.mxu0
        %v2401 = vadd.f32 %v2279, %v2400
        %v2402 = vpop.f32.mrf.mxu0
        %v2403 = vadd.f32 %v2279, %v2402
        %2404 = vmatmul.bf16.gmra.mxu0 %v2327
        %v2405 = vpop.f32.mrf.mxu0
        %v2406 = vadd.f32 %v2279, %v2405
        %v2407 = vpop.f32.mrf.mxu0
        %v2408 = vadd.f32 %v2279, %v2407
        %2409 = vmatmul.bf16.gmra.mxu0 %v2330
        %v2410 = vpop.f32.mrf.mxu0
        %v2411 = vadd.f32 %v2279, %v2410
        %v2412 = vpop.f32.mrf.mxu0
        %v2413 = vadd.f32 %v2279, %v2412
        %2414 = vmatmul.bf16.gmra.mxu0 %v2333
        %v2415 = vpop.f32.mrf.mxu0
        %v2416 = vadd.f32 %v2279, %v2415
        %v2417 = vpop.f32.mrf.mxu0
        %v2418 = vadd.f32 %v2279, %v2417
        %2419 = vmatmul.bf16.gmra.mxu0 %v2336
        %v2420 = vpop.f32.mrf.mxu0
        %v2421 = vadd.f32 %v2279, %v2420
        %v2422 = vpop.f32.mrf.mxu0
        %v2423 = vadd.f32 %v2279, %v2422
        %2424 = vmatmul.bf16.gmra.mxu0 %v2339
        %v2425 = vpop.f32.mrf.mxu0
        %v2426 = vadd.f32 %v2279, %v2425
        %v2427 = vpop.f32.mrf.mxu0
        %v2428 = vadd.f32 %v2279, %v2427
        %2429 = vdwg.mxu0
        %v2430 = vunpack.c.l.bf16 %v499
        %v2431 = vunpack.c.l.bf16 %v500
        %v2432 = vunpack.c.l.bf16 %v501
        %v2433 = vunpack.c.l.bf16 %v502
        %v2434 = vunpack.c.l.bf16 %v503
        %v2435 = vunpack.c.l.bf16 %v504
        %v2436 = vunpack.c.l.bf16 %v505
        %v2437 = vunpack.c.l.bf16 %v506
        %v2438 = vunpack.c.l.bf16 %v507
        %v2439 = vunpack.c.l.bf16 %v508
        %v2440 = vunpack.c.l.bf16 %v509
        %v2441 = vunpack.c.l.bf16 %v510
        %v2442 = vunpack.c.l.bf16 %v511
        %v2443 = vunpack.c.l.bf16 %v512
        %v2444 = vunpack.c.l.bf16 %v513
        %v2445 = vunpack.c.l.bf16 %v514
        %v2446 = vunpack.c.l.bf16 %v515
        %v2447 = vunpack.c.l.bf16 %v516
        %v2448 = vunpack.c.l.bf16 %v517
        %v2449 = vunpack.c.l.bf16 %v518
        %v2450 = vunpack.c.l.bf16 %v519
        %v2451 = vunpack.c.l.bf16 %v520
        %v2452 = vunpack.c.l.bf16 %v521
        %v2453 = vunpack.c.l.bf16 %v522
        %v2454 = vunpack.c.l.bf16 %v523
        %v2455 = vunpack.c.l.bf16 %v524
        %v2456 = vunpack.c.l.bf16 %v525
        %v2457 = vunpack.c.l.bf16 %v526
        %v2458 = vunpack.c.l.bf16 %v527
        %v2459 = vunpack.c.l.bf16 %v528
        %v2460 = vunpack.c.l.bf16 %v529
        %v2461 = vunpack.c.l.bf16 %v530
        %v2462 = vadd.f32 %v2351, %v2430
        %v2463 = vadd.f32 %v2353, %v2431
        %v2464 = vadd.f32 %v2356, %v2432
        %v2465 = vadd.f32 %v2358, %v2433
        %v2466 = vadd.f32 %v2361, %v2434
        %v2467 = vadd.f32 %v2363, %v2435
        %v2468 = vadd.f32 %v2366, %v2436
        %v2469 = vadd.f32 %v2368, %v2437
        %v2470 = vadd.f32 %v2371, %v2438
        %v2471 = vadd.f32 %v2373, %v2439
        %v2472 = vadd.f32 %v2376, %v2440
        %v2473 = vadd.f32 %v2378, %v2441
        %v2474 = vadd.f32 %v2381, %v2442
        %v2475 = vadd.f32 %v2383, %v2443
        %v2476 = vadd.f32 %v2386, %v2444
        %v2477 = vadd.f32 %v2388, %v2445
        %v2478 = vadd.f32 %v2391, %v2446
        %v2479 = vadd.f32 %v2393, %v2447
        %v2480 = vadd.f32 %v2396, %v2448
        %v2481 = vadd.f32 %v2398, %v2449
        %v2482 = vadd.f32 %v2401, %v2450
        %v2483 = vadd.f32 %v2403, %v2451
        %v2484 = vadd.f32 %v2406, %v2452
        %v2485 = vadd.f32 %v2408, %v2453
        %v2486 = vadd.f32 %v2411, %v2454
        %v2487 = vadd.f32 %v2413, %v2455
        %v2488 = vadd.f32 %v2416, %v2456
        %v2489 = vadd.f32 %v2418, %v2457
        %v2490 = vadd.f32 %v2421, %v2458
        %v2491 = vadd.f32 %v2423, %v2459
        %v2492 = vadd.f32 %v2426, %v2460
        %v2493 = vadd.f32 %v2428, %v2461
        %v2494 = vmax.f32 %v2462, 0.0
        %v2495 = vmax.f32 %v2463, 0.0
        %v2496 = vmax.f32 %v2464, 0.0
        %v2497 = vmax.f32 %v2465, 0.0
        %v2498 = vmax.f32 %v2466, 0.0
        %v2499 = vmax.f32 %v2467, 0.0
        %v2500 = vmax.f32 %v2468, 0.0
        %v2501 = vmax.f32 %v2469, 0.0
        %v2502 = vmax.f32 %v2470, 0.0
        %v2503 = vmax.f32 %v2471, 0.0
        %v2504 = vmax.f32 %v2472, 0.0
        %v2505 = vmax.f32 %v2473, 0.0
        %v2506 = vmax.f32 %v2474, 0.0
        %v2507 = vmax.f32 %v2475, 0.0
        %v2508 = vmax.f32 %v2476, 0.0
        %v2509 = vmax.f32 %v2477, 0.0
        %v2510 = vmax.f32 %v2478, 0.0
        %v2511 = vmax.f32 %v2479, 0.0
        %v2512 = vmax.f32 %v2480, 0.0
        %v2513 = vmax.f32 %v2481, 0.0
        %v2514 = vmax.f32 %v2482, 0.0
        %v2515 = vmax.f32 %v2483, 0.0
        %v2516 = vmax.f32 %v2484, 0.0
        %v2517 = vmax.f32 %v2485, 0.0
        %v2518 = vmax.f32 %v2486, 0.0
        %v2519 = vmax.f32 %v2487, 0.0
        %v2520 = vmax.f32 %v2488, 0.0
        %v2521 = vmax.f32 %v2489, 0.0
        %v2522 = vmax.f32 %v2490, 0.0
        %v2523 = vmax.f32 %v2491, 0.0
        %v2524 = vmax.f32 %v2492, 0.0
        %v2525 = vmax.f32 %v2493, 0.0
        %v2526 = vpack.c.bf16 %v2494, %v2494
        %v2527 = vpack.c.bf16 %v2495, %v2495
        %v2528 = vpack.c.bf16 %v2496, %v2496
        %v2529 = vpack.c.bf16 %v2497, %v2497
        %v2530 = vpack.c.bf16 %v2498, %v2498
        %v2531 = vpack.c.bf16 %v2499, %v2499
        %v2532 = vpack.c.bf16 %v2500, %v2500
        %v2533 = vpack.c.bf16 %v2501, %v2501
        %v2534 = vpack.c.bf16 %v2502, %v2502
        %v2535 = vpack.c.bf16 %v2503, %v2503
        %v2536 = vpack.c.bf16 %v2504, %v2504
        %v2537 = vpack.c.bf16 %v2505, %v2505
        %v2538 = vpack.c.bf16 %v2506, %v2506
        %v2539 = vpack.c.bf16 %v2507, %v2507
        %v2540 = vpack.c.bf16 %v2508, %v2508
        %v2541 = vpack.c.bf16 %v2509, %v2509
        %v2542 = vpack.c.bf16 %v2510, %v2510
        %v2543 = vpack.c.bf16 %v2511, %v2511
        %v2544 = vpack.c.bf16 %v2512, %v2512
        %v2545 = vpack.c.bf16 %v2513, %v2513
        %v2546 = vpack.c.bf16 %v2514, %v2514
        %v2547 = vpack.c.bf16 %v2515, %v2515
        %v2548 = vpack.c.bf16 %v2516, %v2516
        %v2549 = vpack.c.bf16 %v2517, %v2517
        %v2550 = vpack.c.bf16 %v2518, %v2518
        %v2551 = vpack.c.bf16 %v2519, %v2519
        %v2552 = vpack.c.bf16 %v2520, %v2520
        %v2553 = vpack.c.bf16 %v2521, %v2521
        %v2554 = vpack.c.bf16 %v2522, %v2522
        %v2555 = vpack.c.bf16 %v2523, %v2523
        %v2556 = vpack.c.bf16 %v2524, %v2524
        %v2557 = vpack.c.bf16 %v2525, %v2525
        %2558 = vst [vmem:[%s474] sm:$0xf] %v2526
        %2559 = vst [vmem:[%s474 + $0x4] sm:$0xf] %v2527
        %2560 = vst [vmem:[%s474 + $0x8] sm:$0xf] %v2528
        %2561 = vst [vmem:[%s474 + $0xc] sm:$0xf] %v2529
        %2562 = vst [vmem:[%s474 + $0x10] sm:$0xf] %v2530
        %2563 = vst [vmem:[%s474 + $0x14] sm:$0xf] %v2531
        %2564 = vst [vmem:[%s474 + $0x18] sm:$0xf] %v2532
        %2565 = vst [vmem:[%s474 + $0x1c] sm:$0xf] %v2533
        %2566 = vst [vmem:[%s474 + $0x20] sm:$0xf] %v2534
        %2567 = vst [vmem:[%s474 + $0x24] sm:$0xf] %v2535
        %2568 = vst [vmem:[%s474 + $0x28] sm:$0xf] %v2536
        %2569 = vst [vmem:[%s474 + $0x2c] sm:$0xf] %v2537
        %2570 = vst [vmem:[%s474 + $0x30] sm:$0xf] %v2538
        %2571 = vst [vmem:[%s474 + $0x34] sm:$0xf] %v2539
        %2572 = vst [vmem:[%s474 + $0x38] sm:$0xf] %v2540
        %2573 = vst [vmem:[%s474 + $0x3c] sm:$0xf] %v2541
        %2574 = vst [vmem:[%s474 + $0x40] sm:$0xf] %v2542
        %2575 = vst [vmem:[%s474 + $0x44] sm:$0xf] %v2543
        %2576 = vst [vmem:[%s474 + $0x48] sm:$0xf] %v2544
        %2577 = vst [vmem:[%s474 + $0x4c] sm:$0xf] %v2545
        %2578 = vst [vmem:[%s474 + $0x50] sm:$0xf] %v2546
        %2579 = vst [vmem:[%s474 + $0x54] sm:$0xf] %v2547
        %2580 = vst [vmem:[%s474 + $0x58] sm:$0xf] %v2548
        %2581 = vst [vmem:[%s474 + $0x5c] sm:$0xf] %v2549
        %2582 = vst [vmem:[%s474 + $0x60] sm:$0xf] %v2550
        %2583 = vst [vmem:[%s474 + $0x64] sm:$0xf] %v2551
        %2584 = vst [vmem:[%s474 + $0x68] sm:$0xf] %v2552
        %2585 = vst [vmem:[%s474 + $0x6c] sm:$0xf] %v2553
        %2586 = vst [vmem:[%s474 + $0x70] sm:$0xf] %v2554
        %2587 = vst [vmem:[%s474 + $0x74] sm:$0xf] %v2555
        %2588 = vst [vmem:[%s474 + $0x78] sm:$0xf] %v2556
        %2589 = vst [vmem:[%s474 + $0x7c] sm:$0xf] %v2557
        %s2590 = sand.u32 %s277, 1
        %s2591 = scalar_lea.sflag [#allocation4], %s2590
        %s2592 = sand.u32 %s277, 1
        %s2593 = smul.addr %s2592, 128
        %s2594 = scalar_lea.vmem [#allocation7], %s2593
        // Predicated region
        $region65: #{tpu_custom_call.1} parent=55 // pred_check
          %p2595 = pneg %p287
        $region66: #{tpu_custom_call.1} parent=55 // pred_check_branch
          %2597 = sbr.rel (%p2595) target = $region68
        $region67: #{tpu_custom_call.1} parent=55 // pred_region
          %s2598 = smul.u32 16, %s34
          %2600 = vsyncadd %s2591, 0
          %s2601 = smul.addr %s2598, 2
          %s2602 = smul.addr %s33, 32
          %s2603 = sadd.s32 %s2601, %s2602
          %s2604 = smul.addr %s2603, 4
          %s2605 = scalar_lea.hbm %s9, %s2604
          %s2606 = sshll.u32 %s2594, 4
          %s2607 = int_to_ptr.vmem [resolvable:$true] %s2606
          %s2608 = sshll.u32 %s2605, 4
          %s2609 = int_to_ptr.hbm [resolvable:$true] %s2608
          %2614 = dma.vmem_to_hbm [thread:$0]  %s2607, 2048, %s2609, %s2591, 64, 64, 4
        $region68: #{tpu_custom_call.1} parent=55 // pred_fallthru
          _
      $region56: #{tpu_custom_call.1} parent=5 // pred_fallthru
        _
      %p2615 = scmp.le.s32.totalorder 2, %s24
      // Predicated region
      $region69: #{tpu_custom_call.1} parent=5 // pred_check
        %p2616 = pneg %p2615
      $region70: #{tpu_custom_call.1} parent=5 // pred_check_branch
        %2618 = sbr.rel (%p2616) target = $region72
      $region71: #{tpu_custom_call.1} parent=5 // pred_region
        %s2619 = ssub.s32 %s24, 2
        // Predicated region
        $region73: #{tpu_custom_call.1} parent=71 // pred_check
          %p2620 = pneg %p293
        $region74: #{tpu_custom_call.1} parent=71 // pred_check_branch
          %2622 = sbr.rel (%p2620) target = $region76
        $region75: #{tpu_custom_call.1} parent=71 // pred_region
          %s2623 = sand.u32 %s278, 1
          %s2624 = scalar_lea.sflag [#allocation4], %s2623
          %s2625 = sand.u32 %s278, 1
          %s2626 = smul.addr %s2625, 128
          %s2627 = scalar_lea.vmem [#allocation7], %s2626
          %2629 = dma.done %s2624, 2048
        $region76: #{tpu_custom_call.1} parent=71 // pred_fallthru
          _
      $region72: #{tpu_custom_call.1} parent=5 // pred_fallthru
        _
    $region6: #{tpu_custom_call.1} parent=1 // loop_footer
      %s28 = sadd.s32 1, %s24
    $region7: #{tpu_custom_call.1} parent=1 // loop_footer_branch
      %23 = sbr.rel target = $region3
    $region8: #{tpu_custom_call.1} parent=1 // loop_exit
      _
    %2630 = vsyncpa [#allocation3], 1
    %s2631 = scalar_lea.sflag [#allocation3], 1
    %2632 = vsyncpa %s2631, 1
    %2633 = vsyncpa [#allocation6], 1
    %s2634 = scalar_lea.sflag [#allocation6], 1
    %2635 = vsyncpa %s2634, 1
    %2636 = vsyncpa [#allocation4], 1
    %s2637 = scalar_lea.sflag [#allocation4], 1
    %2638 = vsyncpa %s2637, 1

</llo_original>
